<compile_context>
chip_gen: v7x
topology: tpu7x:2x2x1
jax: 0.10.0
libtpu: 0.0.40
codegen_flags: <defaults>
</compile_context>

<pallas_src>
import jax
import jax.numpy as jnp
from jax import lax
from jax.experimental import pallas as pl
from jax.experimental.pallas import tpu as pltpu

# ---- problem sizes ---------------------------------------------------------
BATCH = 4          # number of graphs processed per call (grid axis)
N_NODES = 128
F_IN = 16
HIDDEN = 64        # GNN hidden dim == DiffGroupNorm in_channels
K_GROUPS = 8       # DiffGroupNorm groups (k)
OUT_DIM = 16
N_EDGES = 512
LAMDA = 0.01
EPS = 1e-5

H_PAD = 128        # padded channel / lane width
K_PAD = 128        # padded group width (groups live on lanes of s)
NEG = -1e30        # softmax mask for padded lanes

# Row layout of the packed bf16 dense-weight slab (all rows H_PAD wide).
_W_W1 = 0
_W_W2 = _W_W1 + F_IN          # 16
_W_WG = _W_W2 + H_PAD         # 144
_W_ROWS = _W_WG + H_PAD       # 272

# Row layout of the packed f32 parameter slab (all rows H_PAD wide).
_P_GAMMA = 0
_P_BETA = _P_GAMMA + K_PAD    # 128
_P_WS = _P_BETA + K_PAD       # 256
_P_WO = _P_WS + H_PAD         # 384
_P_B1 = _P_WO + H_PAD         # 512
_P_B2 = _P_B1 + 1
_P_BG = _P_B2 + 1
_P_SMASK = _P_BG + 1
_P_BO = _P_SMASK + 1
_P_ROWS = _P_B1 + 8           # 520 (bias block padded to 8 rows)


def _softmax_k(x):
    """In-kernel softmax: exp on EUP, approx reciprocal of the [N,1] denom (EUP)."""
    m = jnp.max(x, axis=-1, keepdims=True)
    e = jnp.exp(x - m)
    return e * pl.reciprocal(jnp.sum(e, axis=-1, keepdims=True), approx=True)


def _softmax_ref(x):
    m = jnp.max(x, axis=-1, keepdims=True)
    e = jnp.exp(x - m)
    return e / jnp.sum(e, axis=-1, keepdims=True)


def gnn_dgn_kernel(a_ref, x_ref, w_ref, p_ref, y_ref):
    f32 = jnp.float32
    bf16 = jnp.bfloat16

    a = a_ref[...]                                      # [N, N]      bf16
    x = x_ref[...]                                      # [N, F_IN]   bf16

    # bf16 weight slab (GCN path).
    w1 = w_ref[_W_W1:_W_W2, :]                          # [F_IN, H_PAD]
    w2 = w_ref[_W_W2:_W_WG, :]                          # [H_PAD, H_PAD]
    wg = w_ref[_W_WG:_W_ROWS, :]                        # [H_PAD, H_PAD]

    # f32 parameter slab.
    gamma = p_ref[_P_GAMMA:_P_BETA, :]                  # [K_PAD, H_PAD]
    beta = p_ref[_P_BETA:_P_WS, :]                      # [K_PAD, H_PAD]
    ws = p_ref[_P_WS:_P_WO, :]                          # [H_PAD, K_PAD]
    wo = p_ref[_P_WO:_P_B1, :]                          # [H_PAD, H_PAD]
    b1 = p_ref[_P_B1:_P_B1 + 1, :]                      # [1, H_PAD]
    b2 = p_ref[_P_B2:_P_B2 + 1, :]                      # [1, H_PAD]
    bg = p_ref[_P_BG:_P_BG + 1, :]                      # [1, H_PAD] (pad lanes = -1e30)
    smask = p_ref[_P_SMASK:_P_SMASK + 1, :]             # [1, K_PAD] (pad lanes = -1e30)
    bo = p_ref[_P_BO:_P_BO + 1, :]                      # [1, H_PAD] (pad lanes = -1e30)

    # --- inner GNN: two GCNConv layers, bf16 operands / f32 accumulation ---
    h = jnp.dot(x, w1, preferred_element_type=f32)                       # [N, H_PAD]
    h = jnp.dot(a, h.astype(bf16), preferred_element_type=f32) + b1
    h = jnp.dot(h.astype(bf16), w2, preferred_element_type=f32)
    h = jnp.dot(a, h.astype(bf16), preferred_element_type=f32) + b2

    # --- inner GNN output head: Linear + Softmax(dim=-1) (pad lanes masked) ---
    z = _softmax_k(jnp.dot(h.astype(bf16), wg, preferred_element_type=f32) + bg)

    # --- DiffGroupNorm: group assignment + closed-form batch stats (f32) ---
    s = _softmax_k(jnp.dot(z, ws, preferred_element_type=f32) + smask)   # [N, K_PAD]

    hi = lax.Precision.HIGHEST            # keep batch statistics exact f32
    cdims = (((0,), (0,)), ((), ()))      # contract over the node axis
    inv_n = 1.0 / N_NODES
    mu = lax.dot_general(s, z, cdims, precision=hi,
                         preferred_element_type=f32) * inv_n             # [K_PAD, H_PAD]
    m2 = lax.dot_general(s * s, z * z, cdims, precision=hi,
                         preferred_element_type=f32) * inv_n             # [K_PAD, H_PAD]
    var = jnp.maximum(m2 - mu * mu, 0.0)  # clamp cancellation noise
    gi = gamma * lax.rsqrt(var + EPS)     # gamma * inv_std (0 in padded rows/cols)
    scale = jnp.dot(s, gi, precision=hi, preferred_element_type=f32)     # [N, H_PAD]
    shift = jnp.sum(beta - mu * gi, axis=0, keepdims=True)               # [1, H_PAD]
    z = z + LAMDA * (z * scale + shift)
    # TODO(synk): BatchNorm1d running_mean/running_var buffer updates (stateful,
    # no effect on this forward output) are not represented.

    # --- wrapper output head: Linear + Softmax(dim=-1), lane-dense store ---
    y = jnp.dot(z, wo, preferred_element_type=f32) + bo                  # [N, H_PAD]
    y_ref[...] = _softmax_k(y)


def pack_params(w1, b1, w2, b2, wg, bg, ws, gamma, beta, wo, bo):
    """One-time parameter packing (hoisted out of the per-forward path)."""
    f32 = jnp.float32

    def padto(m, rows, cols):
        return jnp.pad(m.astype(f32), ((0, rows - m.shape[0]), (0, cols - m.shape[1])))

    # bf16 dense-weight slab for the GCN path.
    w_slab = jnp.concatenate(
        [padto(w1, F_IN, H_PAD), padto(w2, H_PAD, H_PAD), padto(wg, H_PAD, H_PAD)],
        axis=0).astype(jnp.bfloat16)                                      # [272, 128]

    # f32 parameter slab: gamma, beta, ws, wo, then the bias/mask block.
    b1p = padto(b1, 1, H_PAD)
    b2p = padto(b2, 1, H_PAD)
    bgp = jnp.concatenate([bg.astype(f32), jnp.full((1, H_PAD - HIDDEN), NEG, f32)], 1)
    smask = jnp.concatenate([jnp.zeros((1, K_GROUPS), f32),
                             jnp.full((1, K_PAD - K_GROUPS), NEG, f32)], 1)
    bop = jnp.concatenate([bo.astype(f32), jnp.full((1, H_PAD - OUT_DIM), NEG, f32)], 1)
    bias_block = jnp.concatenate([b1p, b2p, bgp, smask, bop,
                                  jnp.zeros((3, H_PAD), f32)], axis=0)    # [8, 128]
    p_slab = jnp.concatenate(
        [padto(gamma, K_PAD, H_PAD), padto(beta, K_PAD, H_PAD),
         padto(ws, H_PAD, K_PAD), padto(wo, H_PAD, H_PAD), bias_block],
        axis=0)                                                           # [520, 128]
    return w_slab, p_slab


@jax.jit
def gnn_dgn_forward(a_hat_b, x_b, w_slab, p_slab):
    """a_hat_b: [B,N,N] f32, x_b: [B,N,F_IN] f32, slabs pre-packed."""
    f32 = jnp.float32
    b_graphs = a_hat_b.shape[0]
    a_bf = a_hat_b.astype(jnp.bfloat16)
    x_bf = x_b.astype(jnp.bfloat16)

    y_pad = pl.pallas_call(
        gnn_dgn_kernel,
        out_shape=jax.ShapeDtypeStruct((b_graphs, N_NODES, H_PAD), f32),
        grid=(b_graphs,),
        in_specs=[
            pl.BlockSpec((None, N_NODES, N_NODES), lambda b: (b, 0, 0)),   # a_hat
            pl.BlockSpec((None, N_NODES, F_IN), lambda b: (b, 0, 0)),      # x
            pl.BlockSpec((_W_ROWS, H_PAD), lambda b: (0, 0)),              # bf16 weights
            pl.BlockSpec((_P_ROWS, H_PAD), lambda b: (0, 0)),              # f32 params
        ],
        out_specs=pl.BlockSpec((None, N_NODES, H_PAD), lambda b: (b, 0, 0)),
        compiler_params=pltpu.CompilerParams(dimension_semantics=("parallel",)),
    )(a_bf, x_bf, w_slab, p_slab)
    return y_pad[:, :, :OUT_DIM]


def reference(a_hat, x, w1, b1, w2, b2, wg, bg, ws, gamma, beta, wo, bo):
    """Pure-f32 per-graph reference matching the PyTorch module."""
    h = a_hat @ (x @ w1) + b1
    h = a_hat @ (h @ w2) + b2
    z = _softmax_ref(h @ wg + bg)
    s = _softmax_ref(z @ ws)
    out = s[:, :, None] * z[:, None, :]                      # [N, K, H]
    mu = jnp.mean(out, axis=0, keepdims=True)
    var = jnp.mean((out - mu) ** 2, axis=0, keepdims=True)
    norm = (out - mu) * lax.rsqrt(var + EPS) * gamma[None] + beta[None]
    z = z + LAMDA * jnp.sum(norm, axis=1)
    return _softmax_ref(z @ wo + bo)


if __name__ == "__main__":
    key = jax.random.PRNGKey(0)
    ks = jax.random.split(key, 12)

    # Batch of graphs: random edge_index -> dense GCN-normalized adjacency (glue).
    def build_a_hat(k):
        edge_index = jax.random.randint(k, (2, N_EDGES), 0, N_NODES)
        src, dst = edge_index[0], edge_index[1]
        A = jnp.zeros((N_NODES, N_NODES), jnp.float32).at[dst, src].add(1.0)
        A = A + jnp.eye(N_NODES, dtype=jnp.float32)           # add_self_loops
        dinv = lax.rsqrt(jnp.sum(A, axis=1))
        return dinv[:, None] * A * dinv[None, :]              # D^-1/2 (A+I) D^-1/2

    graph_keys = jax.random.split(ks[0], BATCH)
    a_hat_b = jnp.stack([build_a_hat(k) for k in graph_keys])            # [B, N, N]
    x_b = jax.random.normal(ks[1], (BATCH, N_NODES, F_IN), jnp.float32)  # [B, N, F]

    def w(k, shape, scale=0.1):
        return scale * jax.random.normal(k, shape, jnp.float32)

    # Deterministic synthetic parameters (shapes match the module __init__).
    w1 = w(ks[2], (F_IN, HIDDEN));   b1 = w(ks[3], (1, HIDDEN))       # GCNConv 1
    w2 = w(ks[4], (HIDDEN, HIDDEN)); b2 = w(ks[5], (1, HIDDEN))       # GCNConv 2
    wg = w(ks[6], (HIDDEN, HIDDEN)); bg = w(ks[7], (1, HIDDEN))       # inner GNN head
    ws = w(ks[8], (HIDDEN, K_GROUPS))                                 # DGN lin (no bias)
    gamma = 1.0 + w(ks[9], (K_GROUPS, HIDDEN))                        # BN affine weight
    beta = w(ks[10], (K_GROUPS, HIDDEN))                              # BN affine bias
    wo = w(ks[11], (HIDDEN, OUT_DIM)); bo = jnp.zeros((1, OUT_DIM), jnp.float32)

    # Pack parameter slabs once (not in the per-forward path).
    w_slab, p_slab = pack_params(w1, b1, w2, b2, wg, bg, ws, gamma, beta, wo, bo)

    y = gnn_dgn_forward(a_hat_b, x_b, w_slab, p_slab)
    y = jax.block_until_ready(y)

    y_ref = jax.vmap(reference, in_axes=(0, 0) + (None,) * 11)(
        a_hat_b, x_b, w1, b1, w2, b2, wg, bg, ws, gamma, beta, wo, bo)

    assert y.shape == (BATCH, N_NODES, OUT_DIM)
    assert bool(jnp.all(jnp.isfinite(y)))
    # Tolerance covers the bf16 GCN-path matmuls and approx softmax reciprocals;
    # DGN statistics and both heads stay f32 so the structure is still checked.
    assert jnp.allclose(y, y_ref, atol=1e-3, rtol=1e-2), "mismatch vs JAX reference"
    print("KERNEL_OK")
</pallas_src>

<mosaic_0001>
module attributes {stable_mosaic.version = 11 : i64} {
  func.func @gnn_dgn_kernel(%arg0: i32, %arg1: memref<1x128x128xbf16, #tpu.memory_space<vmem>>, %arg2: memref<1x128x16xbf16, #tpu.memory_space<vmem>>, %arg3: memref<272x128xbf16, #tpu.memory_space<vmem>>, %arg4: memref<520x128xf32, #tpu.memory_space<vmem>>, %arg5: memref<1x128x128xf32, #tpu.memory_space<vmem>>) attributes {dimension_semantics = [#tpu.dimension_semantics<parallel>], iteration_bounds = array<i64: 4>, scalar_prefetch = 0 : i64, scratch_operands = 0 : i64, tpu.core_type = #tpu.core_type<tc>, window_params = [{transform_indices = @transform_0, window_bounds = array<i64: 1, 128, 128>}, {transform_indices = @transform_1, window_bounds = array<i64: 1, 128, 16>}, {pipeline_mode = #tpu.pipeline_mode<synchronous>, transform_indices = @transform_2, window_bounds = array<i64: 272, 128>}, {pipeline_mode = #tpu.pipeline_mode<synchronous>, transform_indices = @transform_3, window_bounds = array<i64: 520, 128>}, {transform_indices = @transform_4, window_bounds = array<i64: 1, 128, 128>}]} {
    %c0 = arith.constant 0 : index
    %c0_0 = arith.constant 0 : index
    %c0_1 = arith.constant 0 : index
    %0 = vector.load %arg1[%c0, %c0_0, %c0_1] : memref<1x128x128xbf16, #tpu.memory_space<vmem>>, vector<1x128x128xbf16>
    %1 = vector.shape_cast %0 : vector<1x128x128xbf16> to vector<128x128xbf16>
    %c0_2 = arith.constant 0 : index
    %c0_3 = arith.constant 0 : index
    %c0_4 = arith.constant 0 : index
    %2 = vector.load %arg2[%c0_2, %c0_3, %c0_4] : memref<1x128x16xbf16, #tpu.memory_space<vmem>>, vector<1x128x16xbf16>
    %3 = vector.shape_cast %2 : vector<1x128x16xbf16> to vector<128x16xbf16>
    %c0_5 = arith.constant 0 : index
    %c0_6 = arith.constant 0 : index
    %4 = vector.load %arg3[%c0_5, %c0_6] : memref<272x128xbf16, #tpu.memory_space<vmem>>, vector<16x128xbf16>
    %c16 = arith.constant 16 : index
    %c0_7 = arith.constant 0 : index
    %5 = vector.load %arg3[%c16, %c0_7] : memref<272x128xbf16, #tpu.memory_space<vmem>>, vector<128x128xbf16>
    %c144 = arith.constant 144 : index
    %c0_8 = arith.constant 0 : index
    %6 = vector.load %arg3[%c144, %c0_8] : memref<272x128xbf16, #tpu.memory_space<vmem>>, vector<128x128xbf16>
    %c0_9 = arith.constant 0 : index
    %c0_10 = arith.constant 0 : index
    %7 = vector.load %arg4[%c0_9, %c0_10] : memref<520x128xf32, #tpu.memory_space<vmem>>, vector<128x128xf32>
    %c128 = arith.constant 128 : index
    %c0_11 = arith.constant 0 : index
    %8 = vector.load %arg4[%c128, %c0_11] : memref<520x128xf32, #tpu.memory_space<vmem>>, vector<128x128xf32>
    %c256 = arith.constant 256 : index
    %c0_12 = arith.constant 0 : index
    %9 = vector.load %arg4[%c256, %c0_12] : memref<520x128xf32, #tpu.memory_space<vmem>>, vector<128x128xf32>
    %c384 = arith.constant 384 : index
    %c0_13 = arith.constant 0 : index
    %10 = vector.load %arg4[%c384, %c0_13] : memref<520x128xf32, #tpu.memory_space<vmem>>, vector<128x128xf32>
    %c512 = arith.constant 512 : index
    %c0_14 = arith.constant 0 : index
    %11 = vector.load %arg4[%c512, %c0_14] : memref<520x128xf32, #tpu.memory_space<vmem>>, vector<1x128xf32>
    %c513 = arith.constant 513 : index
    %c0_15 = arith.constant 0 : index
    %12 = vector.load %arg4[%c513, %c0_15] : memref<520x128xf32, #tpu.memory_space<vmem>>, vector<1x128xf32>
    %c514 = arith.constant 514 : index
    %c0_16 = arith.constant 0 : index
    %13 = vector.load %arg4[%c514, %c0_16] : memref<520x128xf32, #tpu.memory_space<vmem>>, vector<1x128xf32>
    %c515 = arith.constant 515 : index
    %c0_17 = arith.constant 0 : index
    %14 = vector.load %arg4[%c515, %c0_17] : memref<520x128xf32, #tpu.memory_space<vmem>>, vector<1x128xf32>
    %c516 = arith.constant 516 : index
    %c0_18 = arith.constant 0 : index
    %15 = vector.load %arg4[%c516, %c0_18] : memref<520x128xf32, #tpu.memory_space<vmem>>, vector<1x128xf32>
    %cst = arith.constant dense<0.000000e+00> : vector<128x128xf32>
    %16 = tpu.matmul %3, %4, %cst {dimension_numbers = #tpu.dot_dimension_numbers<[1], [0], [0], [1], [0, 0, 1, 1], [], []>} : vector<128x16xbf16>, vector<16x128xbf16>, vector<128x128xf32> -> vector<128x128xf32>
    %17 = arith.truncf %16 : vector<128x128xf32> to vector<128x128xbf16>
    %cst_19 = arith.constant dense<0.000000e+00> : vector<128x128xf32>
    %18 = tpu.matmul %1, %17, %cst_19 {dimension_numbers = #tpu.dot_dimension_numbers<[1], [0], [0], [1], [0, 0, 1, 1], [], []>} : vector<128x128xbf16>, vector<128x128xbf16>, vector<128x128xf32> -> vector<128x128xf32>
    %19 = vector.broadcast %11 : vector<1x128xf32> to vector<128x128xf32>
    %20 = arith.addf %18, %19 : vector<128x128xf32>
    %21 = arith.truncf %20 : vector<128x128xf32> to vector<128x128xbf16>
    %cst_20 = arith.constant dense<0.000000e+00> : vector<128x128xf32>
    %22 = tpu.matmul %21, %5, %cst_20 {dimension_numbers = #tpu.dot_dimension_numbers<[1], [0], [0], [1], [0, 0, 1, 1], [], []>} : vector<128x128xbf16>, vector<128x128xbf16>, vector<128x128xf32> -> vector<128x128xf32>
    %23 = arith.truncf %22 : vector<128x128xf32> to vector<128x128xbf16>
    %cst_21 = arith.constant dense<0.000000e+00> : vector<128x128xf32>
    %24 = tpu.matmul %1, %23, %cst_21 {dimension_numbers = #tpu.dot_dimension_numbers<[1], [0], [0], [1], [0, 0, 1, 1], [], []>} : vector<128x128xbf16>, vector<128x128xbf16>, vector<128x128xf32> -> vector<128x128xf32>
    %25 = vector.broadcast %12 : vector<1x128xf32> to vector<128x128xf32>
    %26 = arith.addf %24, %25 : vector<128x128xf32>
    %27 = arith.truncf %26 : vector<128x128xf32> to vector<128x128xbf16>
    %cst_22 = arith.constant dense<0.000000e+00> : vector<128x128xf32>
    %28 = tpu.matmul %27, %6, %cst_22 {dimension_numbers = #tpu.dot_dimension_numbers<[1], [0], [0], [1], [0, 0, 1, 1], [], []>} : vector<128x128xbf16>, vector<128x128xbf16>, vector<128x128xf32> -> vector<128x128xf32>
    %29 = vector.broadcast %13 : vector<1x128xf32> to vector<128x128xf32>
    %30 = arith.addf %28, %29 : vector<128x128xf32>
    %cst_23 = arith.constant dense<0xFF800000> : vector<128xf32>
    %31 = vector.multi_reduction <maximumf>, %30, %cst_23 [1] : vector<128x128xf32> to vector<128xf32>
    %32 = vector.shape_cast %31 : vector<128xf32> to vector<128x1xf32>
    %33 = vector.broadcast %32 : vector<128x1xf32> to vector<128x128xf32>
    %34 = arith.subf %30, %33 : vector<128x128xf32>
    %35 = math.exp %34 : vector<128x128xf32>
    %cst_24 = arith.constant dense<0.000000e+00> : vector<128xf32>
    %36 = vector.multi_reduction <add>, %35, %cst_24 [1] : vector<128x128xf32> to vector<128xf32>
    %37 = vector.shape_cast %36 : vector<128xf32> to vector<128x1xf32>
    %38 = tpu.reciprocal %37 {approx = true} : vector<128x1xf32> -> vector<128x1xf32>
    %39 = vector.broadcast %38 : vector<128x1xf32> to vector<128x128xf32>
    %40 = arith.mulf %35, %39 : vector<128x128xf32>
    %cst_25 = arith.constant dense<0.000000e+00> : vector<128x128xf32>
    %41 = tpu.matmul %40, %9, %cst_25 {dimension_numbers = #tpu.dot_dimension_numbers<[1], [0], [0], [1], [0, 0, 1, 1], [], []>} : vector<128x128xf32>, vector<128x128xf32>, vector<128x128xf32> -> vector<128x128xf32>
    %42 = vector.broadcast %14 : vector<1x128xf32> to vector<128x128xf32>
    %43 = arith.addf %41, %42 : vector<128x128xf32>
    %cst_26 = arith.constant dense<0xFF800000> : vector<128xf32>
    %44 = vector.multi_reduction <maximumf>, %43, %cst_26 [1] : vector<128x128xf32> to vector<128xf32>
    %45 = vector.shape_cast %44 : vector<128xf32> to vector<128x1xf32>
    %46 = vector.broadcast %45 : vector<128x1xf32> to vector<128x128xf32>
    %47 = arith.subf %43, %46 : vector<128x128xf32>
    %48 = math.exp %47 : vector<128x128xf32>
    %cst_27 = arith.constant dense<0.000000e+00> : vector<128xf32>
    %49 = vector.multi_reduction <add>, %48, %cst_27 [1] : vector<128x128xf32> to vector<128xf32>
    %50 = vector.shape_cast %49 : vector<128xf32> to vector<128x1xf32>
    %51 = tpu.reciprocal %50 {approx = true} : vector<128x1xf32> -> vector<128x1xf32>
    %52 = vector.broadcast %51 : vector<128x1xf32> to vector<128x128xf32>
    %53 = arith.mulf %48, %52 : vector<128x128xf32>
    %cst_28 = arith.constant dense<0.000000e+00> : vector<128x128xf32>
    %54 = tpu.matmul %53, %40, %cst_28 {dimension_numbers = #tpu.dot_dimension_numbers<[0], [0], [1], [1], [0, 1, 1, 1], [], []>, precision = #tpu.contract_precision<fp32>} : vector<128x128xf32>, vector<128x128xf32>, vector<128x128xf32> -> vector<128x128xf32>
    %cst_29 = arith.constant 7.812500e-03 : f32
    %55 = vector.broadcast %cst_29 : f32 to vector<128x128xf32>
    %56 = arith.mulf %54, %55 : vector<128x128xf32>
    %57 = arith.mulf %53, %53 : vector<128x128xf32>
    %58 = arith.mulf %40, %40 : vector<128x128xf32>
    %cst_30 = arith.constant dense<0.000000e+00> : vector<128x128xf32>
    %59 = tpu.matmul %57, %58, %cst_30 {dimension_numbers = #tpu.dot_dimension_numbers<[0], [0], [1], [1], [0, 1, 1, 1], [], []>, precision = #tpu.contract_precision<fp32>} : vector<128x128xf32>, vector<128x128xf32>, vector<128x128xf32> -> vector<128x128xf32>
    %cst_31 = arith.constant 7.812500e-03 : f32
    %60 = vector.broadcast %cst_31 : f32 to vector<128x128xf32>
    %61 = arith.mulf %59, %60 : vector<128x128xf32>
    %62 = arith.mulf %56, %56 : vector<128x128xf32>
    %63 = arith.subf %61, %62 : vector<128x128xf32>
    %cst_32 = arith.constant 0.000000e+00 : f32
    %64 = vector.broadcast %cst_32 : f32 to vector<128x128xf32>
    %65 = arith.maximumf %63, %64 : vector<128x128xf32>
    %cst_33 = arith.constant 9.99999974E-6 : f32
    %66 = vector.broadcast %cst_33 : f32 to vector<128x128xf32>
    %67 = arith.addf %65, %66 : vector<128x128xf32>
    %68 = math.rsqrt %67 : vector<128x128xf32>
    %69 = arith.mulf %7, %68 : vector<128x128xf32>
    %cst_34 = arith.constant dense<0.000000e+00> : vector<128x128xf32>
    %70 = tpu.matmul %53, %69, %cst_34 {dimension_numbers = #tpu.dot_dimension_numbers<[1], [0], [0], [1], [0, 0, 1, 1], [], []>, precision = #tpu.contract_precision<fp32>} : vector<128x128xf32>, vector<128x128xf32>, vector<128x128xf32> -> vector<128x128xf32>
    %71 = arith.mulf %56, %69 : vector<128x128xf32>
    %72 = arith.subf %8, %71 : vector<128x128xf32>
    %cst_35 = arith.constant dense<0.000000e+00> : vector<128xf32>
    %73 = vector.multi_reduction <add>, %72, %cst_35 [0] : vector<128x128xf32> to vector<128xf32>
    %74 = vector.shape_cast %73 : vector<128xf32> to vector<1x128xf32>
    %75 = arith.mulf %40, %70 : vector<128x128xf32>
    %76 = vector.broadcast %74 : vector<1x128xf32> to vector<128x128xf32>
    %77 = arith.addf %75, %76 : vector<128x128xf32>
    %cst_36 = arith.constant 0.00999999977 : f32
    %78 = vector.broadcast %cst_36 : f32 to vector<128x128xf32>
    %79 = arith.mulf %78, %77 : vector<128x128xf32>
    %80 = arith.addf %40, %79 : vector<128x128xf32>
    %cst_37 = arith.constant dense<0.000000e+00> : vector<128x128xf32>
    %81 = tpu.matmul %80, %10, %cst_37 {dimension_numbers = #tpu.dot_dimension_numbers<[1], [0], [0], [1], [0, 0, 1, 1], [], []>} : vector<128x128xf32>, vector<128x128xf32>, vector<128x128xf32> -> vector<128x128xf32>
    %82 = vector.broadcast %15 : vector<1x128xf32> to vector<128x128xf32>
    %83 = arith.addf %81, %82 : vector<128x128xf32>
    %cst_38 = arith.constant dense<0xFF800000> : vector<128xf32>
    %84 = vector.multi_reduction <maximumf>, %83, %cst_38 [1] : vector<128x128xf32> to vector<128xf32>
    %85 = vector.shape_cast %84 : vector<128xf32> to vector<128x1xf32>
    %86 = vector.broadcast %85 : vector<128x1xf32> to vector<128x128xf32>
    %87 = arith.subf %83, %86 : vector<128x128xf32>
    %88 = math.exp %87 : vector<128x128xf32>
    %cst_39 = arith.constant dense<0.000000e+00> : vector<128xf32>
    %89 = vector.multi_reduction <add>, %88, %cst_39 [1] : vector<128x128xf32> to vector<128xf32>
    %90 = vector.shape_cast %89 : vector<128xf32> to vector<128x1xf32>
    %91 = tpu.reciprocal %90 {approx = true} : vector<128x1xf32> -> vector<128x1xf32>
    %92 = vector.broadcast %91 : vector<128x1xf32> to vector<128x128xf32>
    %93 = arith.mulf %88, %92 : vector<128x128xf32>
    %c0_40 = arith.constant 0 : index
    %c0_41 = arith.constant 0 : index
    %c0_42 = arith.constant 0 : index
    %94 = vector.load %arg5[%c0_40, %c0_41, %c0_42] : memref<1x128x128xf32, #tpu.memory_space<vmem>>, vector<1x128x128xf32>
    %95 = vector.shape_cast %94 : vector<1x128x128xf32> to vector<128x128xf32>
    %96 = vector.shape_cast %93 : vector<128x128xf32> to vector<1x128x128xf32>
    tpu.vector_store %arg5[%c0_40, %c0_41, %c0_42], %96 {strides = array<i32>} : memref<1x128x128xf32, #tpu.memory_space<vmem>>, vector<1x128x128xf32>,
    return
  }
  func.func @transform_0(%arg0: i32) -> (i32, i32, i32) {
    %c0_i32 = arith.constant 0 : i32
    %c0_i32_0 = arith.constant 0 : i32
    %c0_i32_1 = arith.constant 0 : i32
    return %arg0, %c0_i32, %c0_i32_0 : i32, i32, i32
  }
  func.func @transform_1(%arg0: i32) -> (i32, i32, i32) {
    %c0_i32 = arith.constant 0 : i32
    %c0_i32_0 = arith.constant 0 : i32
    %c0_i32_1 = arith.constant 0 : i32
    return %arg0, %c0_i32, %c0_i32_0 : i32, i32, i32
  }
  func.func @transform_2(%arg0: i32) -> (i32, i32) {
    %c0_i32 = arith.constant 0 : i32
    %c0_i32_0 = arith.constant 0 : i32
    %c0_i32_1 = arith.constant 0 : i32
    return %c0_i32, %c0_i32_0 : i32, i32
  }
  func.func @transform_3(%arg0: i32) -> (i32, i32) {
    %c0_i32 = arith.constant 0 : i32
    %c0_i32_0 = arith.constant 0 : i32
    %c0_i32_1 = arith.constant 0 : i32
    return %c0_i32, %c0_i32_0 : i32, i32
  }
  func.func @transform_4(%arg0: i32) -> (i32, i32, i32) {
    %c0_i32 = arith.constant 0 : i32
    %c0_i32_0 = arith.constant 0 : i32
    %c0_i32_1 = arith.constant 0 : i32
    return %arg0, %c0_i32, %c0_i32_0 : i32, i32, i32
  }
}

</mosaic_0001>

<llo_original>
// kernel: gnn_dgn_forward.1
$region0: #{gnn_dgn_forward.1}
  #allocation0 [shape = 'u32[]', space=smem, size = 0x4, offset = 0x4, fixed_abs, tag = 'smem constant byte address 0x4 - core index']
  #allocation1 [shape = 'u32[144,128]{1,0:T(1,128)}', space=vmem, size = 0x12000, scoped, tag = 'internal scratch']
  %s0 = inlined_call_operand.vmem [shape: bf16[4,128,128], index: 0, kind: input, shape index: {}]
  %s1 = inlined_call_operand.vmem [shape: bf16[4,128,16], index: 1, kind: input, shape index: {}]
  %s2 = inlined_call_operand.vmem [shape: bf16[272,128], index: 2, kind: input, shape index: {}]
  %s3 = inlined_call_operand.vmem [shape: f32[520,128], index: 3, kind: input, shape index: {}]
  %s4 = inlined_call_operand.vmem [shape: f32[4,128,128], index: 4, kind: output, shape index: {}]
  %s5 = sld [smem:[#allocation0]]
  $region49: #{gnn_dgn_forward.1} parent=0
    _
  %s7 = ssub.s32 1, %s5
  %s8 = scalar_select 0, %s7, %s5
  loop: start=0, step=1, limit=6
  $region2: #{gnn_dgn_forward.1} parent=0 // loop_pre_header
    _
  $region3: #{gnn_dgn_forward.1} parent=0 // loop_header
    %s10 = sphi 0, %s14
    %p11 = scmp.ge.s32.totalorder %s10, 6
    %s20 = sphi 0, %s22
    %s23 = sphi 0, %s20
    %s24 = sphi 0, %s23
    %s40 = sphi 0, %s24
    %s46 = sphi 0, %s48
    %s49 = sphi 0, %s46
    %s50 = sphi 0, %s49
    %s66 = sphi 0, %s50
    %s70 = sphi 0, %s70
    %s72 = sphi 0, %s70
    %s73 = sphi 0, %s72
    %s87 = sphi 0, %s73
    %s91 = sphi 0, %s91
    %s93 = sphi 0, %s91
    %s94 = sphi 0, %s93
    %s108 = sphi 0, %s94
    %s114 = sphi 0, %s116
    %s117 = sphi 0, %s114
    %s118 = sphi 0, %s117
    %s134 = sphi 0, %s118
  $region4: #{gnn_dgn_forward.1} parent=0 // loop_header_branch
    %13 = sbr.rel (%p11) target = $region8
  $region5: #{gnn_dgn_forward.1} parent=0 // loop_body
    %s15 = ssub.s32 %s10, 1
    %s16 = ssub.s32 %s10, 2
    %s17 = sadd.s32 %s10, 1
    %s18 = ssub.s32 %s10, %s17
    %p19 = scmp.eq.s32.totalorder %s18, 0
    %s21 = sadd.s32 %s20, 1
    %s22 = scalar_select %p19, %s20, %s21
    %p25 = pneg %p19
    %p26 = scmp.eq.s32.totalorder %s10, 3
    %p27 = por %p25, %p26
    %p28 = scmp.ne.s32.totalorder %s20, %s23
    %p29 = scmp.eq.s32.totalorder %s10, 0
    %p30 = por %p28, %p29
    %p31 = scmp.ne.s32.totalorder %s20, %s23
    %p32 = scmp.eq.s32.totalorder %s15, 3
    %p33 = por %p31, %p32
    %p34 = scmp.ne.s32.totalorder %s23, %s24
    %p35 = scmp.eq.s32.totalorder %s15, 0
    %p36 = por %p34, %p35
    %p37 = scmp.ne.s32.totalorder %s23, %s24
    %p38 = scmp.eq.s32.totalorder %s16, 3
    %p39 = por %p37, %p38
    %p41 = scmp.ne.s32.totalorder %s24, %s40
    %p42 = scmp.eq.s32.totalorder %s16, 0
    %p43 = por %p41, %p42
    %s44 = ssub.s32 %s10, %s17
    %p45 = scmp.eq.s32.totalorder %s44, 0
    %s47 = sadd.s32 %s46, 1
    %s48 = scalar_select %p45, %s46, %s47
    %p51 = pneg %p45
    %p52 = scmp.eq.s32.totalorder %s10, 3
    %p53 = por %p51, %p52
    %p54 = scmp.ne.s32.totalorder %s46, %s49
    %p55 = scmp.eq.s32.totalorder %s10, 0
    %p56 = por %p54, %p55
    %p57 = scmp.ne.s32.totalorder %s46, %s49
    %p58 = scmp.eq.s32.totalorder %s15, 3
    %p59 = por %p57, %p58
    %p60 = scmp.ne.s32.totalorder %s49, %s50
    %p61 = scmp.eq.s32.totalorder %s15, 0
    %p62 = por %p60, %p61
    %p63 = scmp.ne.s32.totalorder %s49, %s50
    %p64 = scmp.eq.s32.totalorder %s16, 3
    %p65 = por %p63, %p64
    %p67 = scmp.ne.s32.totalorder %s50, %s66
    %p68 = scmp.eq.s32.totalorder %s16, 0
    %p69 = por %p67, %p68
    %s71 = sadd.s32 %s70, 1
    %p74 = scmp.eq.s32.totalorder %s10, 3
    %p75 = scmp.ne.s32.totalorder %s70, %s72
    %p76 = scmp.eq.s32.totalorder %s10, 0
    %p77 = por %p75, %p76
    %p78 = scmp.ne.s32.totalorder %s70, %s72
    %p79 = scmp.eq.s32.totalorder %s15, 3
    %p80 = por %p78, %p79
    %p81 = scmp.ne.s32.totalorder %s72, %s73
    %p82 = scmp.eq.s32.totalorder %s15, 0
    %p83 = por %p81, %p82
    %p84 = scmp.ne.s32.totalorder %s72, %s73
    %p85 = scmp.eq.s32.totalorder %s16, 3
    %p86 = por %p84, %p85
    %p88 = scmp.ne.s32.totalorder %s73, %s87
    %p89 = scmp.eq.s32.totalorder %s16, 0
    %p90 = por %p88, %p89
    %s92 = sadd.s32 %s91, 1
    %p95 = scmp.eq.s32.totalorder %s10, 3
    %p96 = scmp.ne.s32.totalorder %s91, %s93
    %p97 = scmp.eq.s32.totalorder %s10, 0
    %p98 = por %p96, %p97
    %p99 = scmp.ne.s32.totalorder %s91, %s93
    %p100 = scmp.eq.s32.totalorder %s15, 3
    %p101 = por %p99, %p100
    %p102 = scmp.ne.s32.totalorder %s93, %s94
    %p103 = scmp.eq.s32.totalorder %s15, 0
    %p104 = por %p102, %p103
    %p105 = scmp.ne.s32.totalorder %s93, %s94
    %p106 = scmp.eq.s32.totalorder %s16, 3
    %p107 = por %p105, %p106
    %p109 = scmp.ne.s32.totalorder %s94, %s108
    %p110 = scmp.eq.s32.totalorder %s16, 0
    %p111 = por %p109, %p110
    %s112 = ssub.s32 %s10, %s17
    %p113 = scmp.eq.s32.totalorder %s112, 0
    %s115 = sadd.s32 %s114, 1
    %s116 = scalar_select %p113, %s114, %s115
    %p119 = pneg %p113
    %p120 = scmp.eq.s32.totalorder %s10, 3
    %p121 = por %p119, %p120
    %p122 = scmp.ne.s32.totalorder %s114, %s117
    %p123 = scmp.eq.s32.totalorder %s10, 0
    %p124 = por %p122, %p123
    %p125 = scmp.ne.s32.totalorder %s114, %s117
    %p126 = scmp.eq.s32.totalorder %s15, 3
    %p127 = por %p125, %p126
    %p128 = scmp.ne.s32.totalorder %s117, %s118
    %p129 = scmp.eq.s32.totalorder %s15, 0
    %p130 = por %p128, %p129
    %p131 = scmp.ne.s32.totalorder %s117, %s118
    %p132 = scmp.eq.s32.totalorder %s16, 3
    %p133 = por %p131, %p132
    %p135 = scmp.ne.s32.totalorder %s118, %s134
    %p136 = scmp.eq.s32.totalorder %s16, 0
    %p137 = por %p135, %p136
    %p138 = scmp.le.s32.totalorder 1, %s10
    %p139 = scmp.lt.s32.totalorder %s10, 5
    %p140 = pnand %p138, %p139
    %p141 = pneg %p140
    // Predicated region
    $region9: #{gnn_dgn_forward.1} parent=5 // pred_check
      _
    $region10: #{gnn_dgn_forward.1} parent=5 // pred_check_branch
      %143 = sbr.rel (%p140) target = $region12
    $region11: #{gnn_dgn_forward.1} parent=5 // pred_region
      %s144 = ssub.s32 %s10, 1
      // Predicated region
      $region13: #{gnn_dgn_forward.1} parent=11 // pred_check
        %p145 = pneg %p83
      $region14: #{gnn_dgn_forward.1} parent=11 // pred_check_branch
        %147 = sbr.rel (%p145) target = $region16
      $region15: #{gnn_dgn_forward.1} parent=11 // pred_region
        _
      $region16: #{gnn_dgn_forward.1} parent=11 // pred_fallthru
        _
      // Predicated region
      $region17: #{gnn_dgn_forward.1} parent=11 // pred_check
        %p148 = pneg %p104
      $region18: #{gnn_dgn_forward.1} parent=11 // pred_check_branch
        %150 = sbr.rel (%p148) target = $region20
      $region19: #{gnn_dgn_forward.1} parent=11 // pred_region
        _
      $region20: #{gnn_dgn_forward.1} parent=11 // pred_fallthru
        _
    $region12: #{gnn_dgn_forward.1} parent=5 // pred_fallthru
      _
    %p151 = scmp.lt.s32.totalorder %s10, 4
    // Predicated region
    $region21: #{gnn_dgn_forward.1} parent=5 // pred_check
      %p152 = pneg %p151
    $region22: #{gnn_dgn_forward.1} parent=5 // pred_check_branch
      %154 = sbr.rel (%p152) target = $region24
    $region23: #{gnn_dgn_forward.1} parent=5 // pred_region
      // Predicated region
      $region25: #{gnn_dgn_forward.1} parent=23 // pred_check
        %p155 = pneg %p30
      $region26: #{gnn_dgn_forward.1} parent=23 // pred_check_branch
        %157 = sbr.rel (%p155) target = $region28
      $region27: #{gnn_dgn_forward.1} parent=23 // pred_region
        %p158 = scmp.lt.s32.totalorder %s10, 3
        %s159 = scalar_select %p158, %s10, 3
        %s160 = smul.addr %s159, 16
        %s161 = smul.addr %s160, 4
        %s162 = scalar_lea.vmem %s0, %s161
      $region28: #{gnn_dgn_forward.1} parent=23 // pred_fallthru
        _
      // Predicated region
      $region29: #{gnn_dgn_forward.1} parent=23 // pred_check
        %p163 = pneg %p56
      $region30: #{gnn_dgn_forward.1} parent=23 // pred_check_branch
        %165 = sbr.rel (%p163) target = $region32
      $region31: #{gnn_dgn_forward.1} parent=23 // pred_region
        %p166 = scmp.lt.s32.totalorder %s10, 3
        %s167 = scalar_select %p166, %s10, 3
        %s168 = smul.addr %s167, 16
        %s169 = smul.addr %s168, 4
        %s170 = scalar_lea.vmem %s1, %s169
      $region32: #{gnn_dgn_forward.1} parent=23 // pred_fallthru
        _
    $region24: #{gnn_dgn_forward.1} parent=5 // pred_fallthru
      _
    %p171 = scmp.le.s32.totalorder 1, %s10
    %p172 = scmp.lt.s32.totalorder %s10, 5
    %p173 = pnand %p171, %p172
    %p174 = pneg %p173
    // Predicated region
    $region33: #{gnn_dgn_forward.1} parent=5 // pred_check
      _
    $region34: #{gnn_dgn_forward.1} parent=5 // pred_check_branch
      %176 = sbr.rel (%p173) target = $region36
    $region35: #{gnn_dgn_forward.1} parent=5 // pred_region
      %s177 = ssub.s32 %s10, 1
      %p178 = scmp.lt.s32.totalorder %s15, 3
      %s179 = scalar_select %p178, %s15, 3
      %s180 = smul.addr %s179, 16
      %s181 = smul.addr %s180, 4
      %s182 = scalar_lea.vmem %s0, %s181
      %p183 = pneg %p36
      %p184 = pneg %p33
      %p185 = scmp.lt.s32.totalorder %s15, 3
      %s186 = scalar_select %p185, %s15, 3
      %s187 = smul.addr %s186, 16
      %s188 = smul.addr %s187, 4
      %s189 = scalar_lea.vmem %s1, %s188
      %p190 = pneg %p62
      %p191 = pneg %p59
      %p192 = pneg %p83
      %p193 = pneg %p80
      %p194 = pneg %p104
      %p195 = pneg %p101
      %p196 = pneg %p130
      %p197 = pneg %p127
      %p198 = scmp.lt.s32.totalorder %s15, 3
      %s199 = scalar_select %p198, %s15, 3
      %s200 = smul.addr %s199, 16
      %s201 = smul.addr %s200, 8
      %s202 = scalar_lea.vmem %s4, %s201
      %p203 = scmp.lt.s32.totalorder %s15, 3
      %s204 = scalar_select %p203, %s15, 3
      %s205 = smul.addr %s204, 16
      %s206 = smul.addr %s205, 4
      %s207 = scalar_lea.vmem %s0, %s206
      %p208 = scmp.lt.s32.totalorder %s15, 3
      %s209 = scalar_select %p208, %s15, 3
      %s210 = smul.addr %s209, 16
      %s211 = smul.addr %s210, 4
      %s212 = scalar_lea.vmem %s1, %s211
      %p213 = scmp.lt.s32.totalorder %s15, 3
      %s214 = scalar_select %p213, %s15, 3
      %s215 = smul.addr %s214, 16
      %s216 = smul.addr %s215, 8
      %s217 = scalar_lea.vmem %s4, %s216
      %v219 = vld [vmem:[%s207] sm:$0xf]
      %v220 = vld [vmem:[%s207 + $0x4] sm:$0xf]
      %v221 = vld [vmem:[%s207 + $0x8] sm:$0xf]
      %v222 = vld [vmem:[%s207 + $0xc] sm:$0xf]
      %v223 = vld [vmem:[%s207 + $0x10] sm:$0xf]
      %v224 = vld [vmem:[%s207 + $0x14] sm:$0xf]
      %v225 = vld [vmem:[%s207 + $0x18] sm:$0xf]
      %v226 = vld [vmem:[%s207 + $0x1c] sm:$0xf]
      %v227 = vld [vmem:[%s207 + $0x20] sm:$0xf]
      %v228 = vld [vmem:[%s207 + $0x24] sm:$0xf]
      %v229 = vld [vmem:[%s207 + $0x28] sm:$0xf]
      %v230 = vld [vmem:[%s207 + $0x2c] sm:$0xf]
      %v231 = vld [vmem:[%s207 + $0x30] sm:$0xf]
      %v232 = vld [vmem:[%s207 + $0x34] sm:$0xf]
      %v233 = vld [vmem:[%s207 + $0x38] sm:$0xf]
      %v234 = vld [vmem:[%s207 + $0x3c] sm:$0xf]
      %v235 = vld [vmem:[%s212] sm:$0xf]
      %v236 = vld [vmem:[%s212 + $0x4] sm:$0xf]
      %v237 = vld [vmem:[%s212 + $0x8] sm:$0xf]
      %v238 = vld [vmem:[%s212 + $0xc] sm:$0xf]
      %v239 = vld [vmem:[%s212 + $0x10] sm:$0xf]
      %v240 = vld [vmem:[%s212 + $0x14] sm:$0xf]
      %v241 = vld [vmem:[%s212 + $0x18] sm:$0xf]
      %v242 = vld [vmem:[%s212 + $0x1c] sm:$0xf]
      %v243 = vld [vmem:[%s212 + $0x20] sm:$0xf]
      %v244 = vld [vmem:[%s212 + $0x24] sm:$0xf]
      %v245 = vld [vmem:[%s212 + $0x28] sm:$0xf]
      %v246 = vld [vmem:[%s212 + $0x2c] sm:$0xf]
      %v247 = vld [vmem:[%s212 + $0x30] sm:$0xf]
      %v248 = vld [vmem:[%s212 + $0x34] sm:$0xf]
      %v249 = vld [vmem:[%s212 + $0x38] sm:$0xf]
      %v250 = vld [vmem:[%s212 + $0x3c] sm:$0xf]
      %v251 = vld [vmem:[%s2] sm:$0xf]
      %v252 = vld [vmem:[%s2 + $0x4] sm:$0xf]
      %v253 = vld [vmem:[%s2 + $0x8] sm:$0xf]
      %v254 = vld [vmem:[%s2 + $0xc] sm:$0xf]
      %v255 = vld [vmem:[%s2 + $0x10] sm:$0xf]
      %v256 = vld [vmem:[%s2 + $0x14] sm:$0xf]
      %v257 = vld [vmem:[%s2 + $0x18] sm:$0xf]
      %v258 = vld [vmem:[%s2 + $0x1c] sm:$0xf]
      %v259 = vld [vmem:[%s2 + $0x20] sm:$0xf]
      %v260 = vld [vmem:[%s2 + $0x24] sm:$0xf]
      %v261 = vld [vmem:[%s2 + $0x28] sm:$0xf]
      %v262 = vld [vmem:[%s2 + $0x2c] sm:$0xf]
      %v263 = vld [vmem:[%s2 + $0x30] sm:$0xf]
      %v264 = vld [vmem:[%s2 + $0x34] sm:$0xf]
      %v265 = vld [vmem:[%s2 + $0x38] sm:$0xf]
      %v266 = vld [vmem:[%s2 + $0x3c] sm:$0xf]
      %v267 = vld [vmem:[%s2 + $0x40] sm:$0xf]
      %v268 = vld [vmem:[%s2 + $0x44] sm:$0xf]
      %v269 = vld [vmem:[%s2 + $0x48] sm:$0xf]
      %v270 = vld [vmem:[%s2 + $0x4c] sm:$0xf]
      %v271 = vld [vmem:[%s2 + $0x50] sm:$0xf]
      %v272 = vld [vmem:[%s2 + $0x54] sm:$0xf]
      %v273 = vld [vmem:[%s2 + $0x58] sm:$0xf]
      %v274 = vld [vmem:[%s2 + $0x5c] sm:$0xf]
      %v275 = vld [vmem:[%s2 + $0x60] sm:$0xf]
      %v276 = vld [vmem:[%s2 + $0x64] sm:$0xf]
      %v277 = vld [vmem:[%s2 + $0x68] sm:$0xf]
      %v278 = vld [vmem:[%s2 + $0x6c] sm:$0xf]
      %v279 = vld [vmem:[%s2 + $0x70] sm:$0xf]
      %v280 = vld [vmem:[%s2 + $0x74] sm:$0xf]
      %v281 = vld [vmem:[%s2 + $0x78] sm:$0xf]
      %v282 = vld [vmem:[%s2 + $0x7c] sm:$0xf]
      %v283 = vld [vmem:[%s2 + $0x80] sm:$0xf]
      %v284 = vld [vmem:[%s2 + $0x84] sm:$0xf]
      %v285 = vld [vmem:[%s3] sm:$0xff]
      %v286 = vld [vmem:[%s3 + $0x8] sm:$0xff]
      %v287 = vld [vmem:[%s3 + $0x10] sm:$0xff]
      %v288 = vld [vmem:[%s3 + $0x18] sm:$0xff]
      %v289 = vld [vmem:[%s3 + $0x20] sm:$0xff]
      %v290 = vld [vmem:[%s3 + $0x28] sm:$0xff]
      %v291 = vld [vmem:[%s3 + $0x30] sm:$0xff]
      %v292 = vld [vmem:[%s3 + $0x38] sm:$0xff]
      %v293 = vld [vmem:[%s3 + $0x40] sm:$0xff]
      %v294 = vld [vmem:[%s3 + $0x48] sm:$0xff]
      %v295 = vld [vmem:[%s3 + $0x50] sm:$0xff]
      %v296 = vld [vmem:[%s3 + $0x58] sm:$0xff]
      %v297 = vld [vmem:[%s3 + $0x60] sm:$0xff]
      %v298 = vld [vmem:[%s3 + $0x68] sm:$0xff]
      %v299 = vld [vmem:[%s3 + $0x70] sm:$0xff]
      %v300 = vld [vmem:[%s3 + $0x78] sm:$0xff]
      %v301 = vld [vmem:[%s3 + $0x80] sm:$0xff]
      %v302 = vld [vmem:[%s3 + $0x88] sm:$0xff]
      %v303 = vld [vmem:[%s3 + $0x90] sm:$0xff]
      %v304 = vld [vmem:[%s3 + $0x98] sm:$0xff]
      %v305 = vld [vmem:[%s3 + $0xa0] sm:$0xff]
      %v306 = vld [vmem:[%s3 + $0xa8] sm:$0xff]
      %v307 = vld [vmem:[%s3 + $0xb0] sm:$0xff]
      %v308 = vld [vmem:[%s3 + $0xb8] sm:$0xff]
      %v309 = vld [vmem:[%s3 + $0xc0] sm:$0xff]
      %v310 = vld [vmem:[%s3 + $0xc8] sm:$0xff]
      %v311 = vld [vmem:[%s3 + $0xd0] sm:$0xff]
      %v312 = vld [vmem:[%s3 + $0xd8] sm:$0xff]
      %v313 = vld [vmem:[%s3 + $0xe0] sm:$0xff]
      %v314 = vld [vmem:[%s3 + $0xe8] sm:$0xff]
      %v315 = vld [vmem:[%s3 + $0xf0] sm:$0xff]
      %v316 = vld [vmem:[%s3 + $0xf8] sm:$0xff]
      %v317 = vld [vmem:[%s3 + $0x100] sm:$0xff]
      %v318 = vld [vmem:[%s3 + $0x108] sm:$0xff]
      %v319 = vld [vmem:[%s3 + $0x110] sm:$0xff]
      %v320 = vld [vmem:[%s3 + $0x118] sm:$0xff]
      %v321 = vld [vmem:[%s3 + $0x120] sm:$0xff]
      %v322 = vld [vmem:[%s3 + $0x128] sm:$0xff]
      %v323 = vld [vmem:[%s3 + $0x130] sm:$0xff]
      %v324 = vld [vmem:[%s3 + $0x138] sm:$0xff]
      %v325 = vld [vmem:[%s3 + $0x140] sm:$0xff]
      %v326 = vld [vmem:[%s3 + $0x148] sm:$0xff]
      %v327 = vld [vmem:[%s3 + $0x150] sm:$0xff]
      %v328 = vld [vmem:[%s3 + $0x158] sm:$0xff]
      %v329 = vld [vmem:[%s3 + $0x160] sm:$0xff]
      %v330 = vld [vmem:[%s3 + $0x168] sm:$0xff]
      %v331 = vld [vmem:[%s3 + $0x170] sm:$0xff]
      %v332 = vld [vmem:[%s3 + $0x178] sm:$0xff]
      %v333 = vld [vmem:[%s3 + $0x180] sm:$0xff]
      %v334 = vld [vmem:[%s3 + $0x188] sm:$0xff]
      %v335 = vld [vmem:[%s3 + $0x190] sm:$0xff]
      %v336 = vld [vmem:[%s3 + $0x198] sm:$0xff]
      %v337 = vld [vmem:[%s3 + $0x1a0] sm:$0xff]
      %v338 = vld [vmem:[%s3 + $0x1a8] sm:$0xff]
      %v339 = vld [vmem:[%s3 + $0x1b0] sm:$0xff]
      %v340 = vld [vmem:[%s3 + $0x1b8] sm:$0xff]
      %v341 = vld [vmem:[%s3 + $0x1c0] sm:$0xff]
      %v342 = vld [vmem:[%s3 + $0x1c8] sm:$0xff]
      %v343 = vld [vmem:[%s3 + $0x1d0] sm:$0xff]
      %v344 = vld [vmem:[%s3 + $0x1d8] sm:$0xff]
      %v345 = vld [vmem:[%s3 + $0x1e0] sm:$0xff]
      %v346 = vld [vmem:[%s3 + $0x1e8] sm:$0xff]
      %v347 = vld [vmem:[%s3 + $0x1f0] sm:$0xff]
      %v348 = vld [vmem:[%s3 + $0x1f8] sm:$0xff]
      %v349 = vld [vmem:[%s3 + $0x200] sm:$0x1]
      %v350 = vld [vmem:[%s3 + $0x201] sm:$0x1]
      %v351 = vld [vmem:[%s3 + $0x202] sm:$0x1]
      %v352 = vld [vmem:[%s3 + $0x203] sm:$0x1]
      %v353 = vld [vmem:[%s3 + $0x204] sm:$0x1]
      %v370 = vunpack.c.l.b16 %v235
      %v371 = vunpack.c.l.b16 %v236
      %v372 = vunpack.c.l.b16 %v237
      %v373 = vunpack.c.l.b16 %v238
      %v374 = vunpack.c.l.b16 %v239
      %v375 = vunpack.c.l.b16 %v240
      %v376 = vunpack.c.l.b16 %v241
      %v377 = vunpack.c.l.b16 %v242
      %v378 = vunpack.c.l.b16 %v243
      %v379 = vunpack.c.l.b16 %v244
      %v380 = vunpack.c.l.b16 %v245
      %v381 = vunpack.c.l.b16 %v246
      %v382 = vunpack.c.l.b16 %v247
      %v383 = vunpack.c.l.b16 %v248
      %v384 = vunpack.c.l.b16 %v249
      %v385 = vunpack.c.l.b16 %v250
      %v386 = vpack.c.b16 %v371, %v370
      %v387 = vpack.c.b16 %v373, %v372
      %v388 = vpack.c.b16 %v375, %v374
      %v389 = vpack.c.b16 %v377, %v376
      %v390 = vpack.c.b16 %v379, %v378
      %v391 = vpack.c.b16 %v381, %v380
      %v392 = vpack.c.b16 %v383, %v382
      %v393 = vpack.c.b16 %v385, %v384
      %v396 = vunpack.c.l.b16 %v251
      %v397 = vunpack.c.l.b16 %v252
      %v398 = vpack.c.b16 %v397, %v396
      %vm400 = vcmask 130048
      %v402 = vsel %vm400, %v386, 0
      %v405 = vsel %vm400, %v387, 0
      %v408 = vsel %vm400, %v388, 0
      %v411 = vsel %vm400, %v389, 0
      %v414 = vsel %vm400, %v390, 0
      %v417 = vsel %vm400, %v391, 0
      %v420 = vsel %vm400, %v392, 0
      %v423 = vsel %vm400, %v393, 0
      %425 = vmatprep.subr.bf16.mxu0 0
      %426 = vmatpush1.bf16.msra.mxu0 %v398
      %427 = vmatprep.subr.bf16.mxu0 0
      %428 = vmatpush1.bf16.msra.mxu0 0
      %429 = vmatprep.subr.bf16.mxu0 0
      %430 = vmatpush1.bf16.msra.mxu0 0
      %431 = vmatprep.subr.bf16.mxu0 0
      %432 = vmatpush1.bf16.msra.mxu0 0
      %433 = vmatprep.subr.bf16.mxu0 0
      %434 = vmatpush1.bf16.msra.mxu0 0
      %435 = vmatprep.subr.bf16.mxu0 0
      %436 = vmatpush1.bf16.msra.mxu0 0
      %437 = vmatprep.subr.bf16.mxu0 0
      %438 = vmatpush1.bf16.msra.mxu0 0
      %439 = vmatprep.subr.bf16.mxu0 0
      %440 = vmatpush1.bf16.msra.mxu0 0
      %441 = vmatprep.subr.bf16.mxu0 0
      %442 = vmatpush1.bf16.msra.mxu0 0
      %443 = vmatprep.subr.bf16.mxu0 0
      %444 = vmatpush1.bf16.msra.mxu0 0
      %445 = vmatprep.subr.bf16.mxu0 0
      %446 = vmatpush1.bf16.msra.mxu0 0
      %447 = vmatprep.subr.bf16.mxu0 0
      %448 = vmatpush1.bf16.msra.mxu0 0
      %449 = vmatprep.subr.bf16.mxu0 0
      %450 = vmatpush1.bf16.msra.mxu0 0
      %451 = vmatprep.subr.bf16.mxu0 0
      %452 = vmatpush1.bf16.msra.mxu0 0
      %453 = vmatprep.subr.bf16.mxu0 0
      %454 = vmatpush1.bf16.msra.mxu0 0
      %455 = vmatprep.subr.bf16.mxu0 0
      %456 = vmatpush1.bf16.msra.mxu0 0
      %457 = vmatprep.mubr.bf16.mxu0 0
      %458 = vmatmul.mubr.bf16.gmra.mrb[0].mxu0 %v402
      %v459 = vpop.f32.mrb[0].mxu0
      %v460 = vadd.f32 0.0, %v459
      %v461 = vpop.f32.mrb[0].mxu0
      %v462 = vpop.f32.mrb[0].mxu0
      %v463 = vadd.f32 0.0, %v462
      %v464 = vpop.f32.mrb[0].mxu0
      %465 = vmatprep.mubr.bf16.mxu0 0
      %466 = vmatmul.mubr.bf16.gmra.mrb[0].mxu0 %v405
      %v467 = vpop.f32.mrb[0].mxu0
      %v468 = vadd.f32 0.0, %v467
      %v469 = vpop.f32.mrb[0].mxu0
      %v470 = vpop.f32.mrb[0].mxu0
      %v471 = vadd.f32 0.0, %v470
      %v472 = vpop.f32.mrb[0].mxu0
      %473 = vmatprep.mubr.bf16.mxu0 0
      %474 = vmatmul.mubr.bf16.gmra.mrb[0].mxu0 %v408
      %v475 = vpop.f32.mrb[0].mxu0
      %v476 = vadd.f32 0.0, %v475
      %v477 = vpop.f32.mrb[0].mxu0
      %v478 = vpop.f32.mrb[0].mxu0
      %v479 = vadd.f32 0.0, %v478
      %v480 = vpop.f32.mrb[0].mxu0
      %481 = vmatprep.mubr.bf16.mxu0 0
      %482 = vmatmul.mubr.bf16.gmra.mrb[0].mxu0 %v411
      %v483 = vpop.f32.mrb[0].mxu0
      %v484 = vadd.f32 0.0, %v483
      %v485 = vpop.f32.mrb[0].mxu0
      %v486 = vpop.f32.mrb[0].mxu0
      %v487 = vadd.f32 0.0, %v486
      %v488 = vpop.f32.mrb[0].mxu0
      %489 = vmatprep.mubr.bf16.mxu0 0
      %490 = vmatmul.mubr.bf16.gmra.mrb[0].mxu0 %v414
      %v491 = vpop.f32.mrb[0].mxu0
      %v492 = vadd.f32 0.0, %v491
      %v493 = vpop.f32.mrb[0].mxu0
      %v494 = vpop.f32.mrb[0].mxu0
      %v495 = vadd.f32 0.0, %v494
      %v496 = vpop.f32.mrb[0].mxu0
      %497 = vmatprep.mubr.bf16.mxu0 0
      %498 = vmatmul.mubr.bf16.gmra.mrb[0].mxu0 %v417
      %v499 = vpop.f32.mrb[0].mxu0
      %v500 = vadd.f32 0.0, %v499
      %v501 = vpop.f32.mrb[0].mxu0
      %v502 = vpop.f32.mrb[0].mxu0
      %v503 = vadd.f32 0.0, %v502
      %v504 = vpop.f32.mrb[0].mxu0
      %505 = vmatprep.mubr.bf16.mxu0 0
      %506 = vmatmul.mubr.bf16.gmra.mrb[0].mxu0 %v420
      %v507 = vpop.f32.mrb[0].mxu0
      %v508 = vadd.f32 0.0, %v507
      %v509 = vpop.f32.mrb[0].mxu0
      %v510 = vpop.f32.mrb[0].mxu0
      %v511 = vadd.f32 0.0, %v510
      %v512 = vpop.f32.mrb[0].mxu0
      %513 = vmatprep.mubr.bf16.mxu0 0
      %514 = vmatmul.mubr.bf16.gmra.mrb[0].mxu0 %v423
      %v515 = vpop.f32.mrb[0].mxu0
      %v516 = vadd.f32 0.0, %v515
      %v517 = vpop.f32.mrb[0].mxu0
      %v518 = vpop.f32.mrb[0].mxu0
      %v519 = vadd.f32 0.0, %v518
      %v520 = vpop.f32.mrb[0].mxu0
      %521 = vdwg.mxu0
      %v522 = vpack.c.bf16 %v463, %v460
      %v523 = vpack.c.bf16 %v471, %v468
      %v524 = vpack.c.bf16 %v479, %v476
      %v525 = vpack.c.bf16 %v487, %v484
      %v526 = vpack.c.bf16 %v495, %v492
      %v527 = vpack.c.bf16 %v503, %v500
      %v528 = vpack.c.bf16 %v511, %v508
      %v529 = vpack.c.bf16 %v519, %v516
      %v530 = vlaneseq
      %v531 = vshrl.u32 %v530, 7
      %v532 = vsub.s32 0, %v531
      %v533 = vrot.slane %v349, %v532
      %v550 = vunpack.c.l.b16 %v219
      %v551 = vunpack.c.l.b16 %v220
      %v552 = vunpack.c.l.b16 %v221
      %v553 = vunpack.c.l.b16 %v222
      %v554 = vunpack.c.l.b16 %v223
      %v555 = vunpack.c.l.b16 %v224
      %v556 = vunpack.c.l.b16 %v225
      %v557 = vunpack.c.l.b16 %v226
      %v558 = vunpack.c.l.b16 %v227
      %v559 = vunpack.c.l.b16 %v228
      %v560 = vunpack.c.l.b16 %v229
      %v561 = vunpack.c.l.b16 %v230
      %v562 = vunpack.c.l.b16 %v231
      %v563 = vunpack.c.l.b16 %v232
      %v564 = vunpack.c.l.b16 %v233
      %v565 = vunpack.c.l.b16 %v234
      %v566 = vpack.c.b16 %v551, %v550
      %v567 = vpack.c.b16 %v553, %v552
      %v568 = vpack.c.b16 %v555, %v554
      %v569 = vpack.c.b16 %v557, %v556
      %v570 = vpack.c.b16 %v559, %v558
      %v571 = vpack.c.b16 %v561, %v560
      %v572 = vpack.c.b16 %v563, %v562
      %v573 = vpack.c.b16 %v565, %v564
      %582 = vmatprep.subr.bf16.mxu0 0
      %583 = vmatpush1.bf16.msra.mxu0 %v522
      %584 = vmatprep.subr.bf16.mxu0 0
      %585 = vmatpush1.bf16.msra.mxu0 %v523
      %586 = vmatprep.subr.bf16.mxu0 0
      %587 = vmatpush1.bf16.msra.mxu0 %v524
      %588 = vmatprep.subr.bf16.mxu0 0
      %589 = vmatpush1.bf16.msra.mxu0 %v525
      %590 = vmatprep.subr.bf16.mxu0 0
      %591 = vmatpush1.bf16.msra.mxu0 %v526
      %592 = vmatprep.subr.bf16.mxu0 0
      %593 = vmatpush1.bf16.msra.mxu0 %v527
      %594 = vmatprep.subr.bf16.mxu0 0
      %595 = vmatpush1.bf16.msra.mxu0 %v528
      %596 = vmatprep.subr.bf16.mxu0 0
      %597 = vmatpush1.bf16.msra.mxu0 %v529
      %598 = vmatprep.subr.bf16.mxu0 0
      %599 = vmatpush1.bf16.msra.mxu0 0
      %600 = vmatprep.subr.bf16.mxu0 0
      %601 = vmatpush1.bf16.msra.mxu0 0
      %602 = vmatprep.subr.bf16.mxu0 0
      %603 = vmatpush1.bf16.msra.mxu0 0
      %604 = vmatprep.subr.bf16.mxu0 0
      %605 = vmatpush1.bf16.msra.mxu0 0
      %606 = vmatprep.subr.bf16.mxu0 0
      %607 = vmatpush1.bf16.msra.mxu0 0
      %608 = vmatprep.subr.bf16.mxu0 0
      %609 = vmatpush1.bf16.msra.mxu0 0
      %610 = vmatprep.subr.bf16.mxu0 0
      %611 = vmatpush1.bf16.msra.mxu0 0
      %612 = vmatprep.subr.bf16.mxu0 0
      %613 = vmatpush1.bf16.msra.mxu0 0
      %614 = vmatprep.mubr.bf16.mxu0 0
      %615 = vmatmul.mubr.bf16.gmra.mrb[0].mxu0 %v566
      %v616 = vpop.f32.mrb[0].mxu0
      %v617 = vadd.f32 %v533, %v616
      %v618 = vpop.f32.mrb[0].mxu0
      %v619 = vpop.f32.mrb[0].mxu0
      %v620 = vadd.f32 %v533, %v619
      %v621 = vpop.f32.mrb[0].mxu0
      %622 = vmatprep.mubr.bf16.mxu0 0
      %623 = vmatmul.mubr.bf16.gmra.mrb[0].mxu0 %v567
      %v624 = vpop.f32.mrb[0].mxu0
      %v625 = vadd.f32 %v533, %v624
      %v626 = vpop.f32.mrb[0].mxu0
      %v627 = vpop.f32.mrb[0].mxu0
      %v628 = vadd.f32 %v533, %v627
      %v629 = vpop.f32.mrb[0].mxu0
      %630 = vmatprep.mubr.bf16.mxu0 0
      %631 = vmatmul.mubr.bf16.gmra.mrb[0].mxu0 %v568
      %v632 = vpop.f32.mrb[0].mxu0
      %v633 = vadd.f32 %v533, %v632
      %v634 = vpop.f32.mrb[0].mxu0
      %v635 = vpop.f32.mrb[0].mxu0
      %v636 = vadd.f32 %v533, %v635
      %v637 = vpop.f32.mrb[0].mxu0
      %638 = vmatprep.mubr.bf16.mxu0 0
      %639 = vmatmul.mubr.bf16.gmra.mrb[0].mxu0 %v569
      %v640 = vpop.f32.mrb[0].mxu0
      %v641 = vadd.f32 %v533, %v640
      %v642 = vpop.f32.mrb[0].mxu0
      %v643 = vpop.f32.mrb[0].mxu0
      %v644 = vadd.f32 %v533, %v643
      %v645 = vpop.f32.mrb[0].mxu0
      %646 = vmatprep.mubr.bf16.mxu0 0
      %647 = vmatmul.mubr.bf16.gmra.mrb[0].mxu0 %v570
      %v648 = vpop.f32.mrb[0].mxu0
      %v649 = vadd.f32 %v533, %v648
      %v650 = vpop.f32.mrb[0].mxu0
      %v651 = vpop.f32.mrb[0].mxu0
      %v652 = vadd.f32 %v533, %v651
      %v653 = vpop.f32.mrb[0].mxu0
      %654 = vmatprep.mubr.bf16.mxu0 0
      %655 = vmatmul.mubr.bf16.gmra.mrb[0].mxu0 %v571
      %v656 = vpop.f32.mrb[0].mxu0
      %v657 = vadd.f32 %v533, %v656
      %v658 = vpop.f32.mrb[0].mxu0
      %v659 = vpop.f32.mrb[0].mxu0
      %v660 = vadd.f32 %v533, %v659
      %v661 = vpop.f32.mrb[0].mxu0
      %662 = vmatprep.mubr.bf16.mxu0 0
      %663 = vmatmul.mubr.bf16.gmra.mrb[0].mxu0 %v572
      %v664 = vpop.f32.mrb[0].mxu0
      %v665 = vadd.f32 %v533, %v664
      %v666 = vpop.f32.mrb[0].mxu0
      %v667 = vpop.f32.mrb[0].mxu0
      %v668 = vadd.f32 %v533, %v667
      %v669 = vpop.f32.mrb[0].mxu0
      %670 = vmatprep.mubr.bf16.mxu0 0
      %671 = vmatmul.mubr.bf16.gmra.mrb[0].mxu0 %v573
      %v672 = vpop.f32.mrb[0].mxu0
      %v673 = vadd.f32 %v533, %v672
      %v674 = vpop.f32.mrb[0].mxu0
      %v675 = vpop.f32.mrb[0].mxu0
      %v676 = vadd.f32 %v533, %v675
      %v677 = vpop.f32.mrb[0].mxu0
      %678 = vdwg.mxu0
      %v679 = vpack.c.bf16 %v620, %v617
      %v680 = vpack.c.bf16 %v628, %v625
      %v681 = vpack.c.bf16 %v636, %v633
      %v682 = vpack.c.bf16 %v644, %v641
      %v683 = vpack.c.bf16 %v652, %v649
      %v684 = vpack.c.bf16 %v660, %v657
      %v685 = vpack.c.bf16 %v668, %v665
      %v686 = vpack.c.bf16 %v676, %v673
      %v703 = vunpack.c.l.b16 %v253
      %v704 = vunpack.c.l.b16 %v254
      %v705 = vunpack.c.l.b16 %v255
      %v706 = vunpack.c.l.b16 %v256
      %v707 = vunpack.c.l.b16 %v257
      %v708 = vunpack.c.l.b16 %v258
      %v709 = vunpack.c.l.b16 %v259
      %v710 = vunpack.c.l.b16 %v260
      %v711 = vunpack.c.l.b16 %v261
      %v712 = vunpack.c.l.b16 %v262
      %v713 = vunpack.c.l.b16 %v263
      %v714 = vunpack.c.l.b16 %v264
      %v715 = vunpack.c.l.b16 %v265
      %v716 = vunpack.c.l.b16 %v266
      %v717 = vunpack.c.l.b16 %v267
      %v718 = vunpack.c.l.b16 %v268
      %v719 = vpack.c.b16 %v704, %v703
      %v720 = vpack.c.b16 %v706, %v705
      %v721 = vpack.c.b16 %v708, %v707
      %v722 = vpack.c.b16 %v710, %v709
      %v723 = vpack.c.b16 %v712, %v711
      %v724 = vpack.c.b16 %v714, %v713
      %v725 = vpack.c.b16 %v716, %v715
      %v726 = vpack.c.b16 %v718, %v717
      %735 = vmatprep.subr.bf16.mxu0 0
      %736 = vmatpush1.bf16.msra.mxu0 %v719
      %737 = vmatprep.subr.bf16.mxu0 0
      %738 = vmatpush1.bf16.msra.mxu0 %v720
      %739 = vmatprep.subr.bf16.mxu0 0
      %740 = vmatpush1.bf16.msra.mxu0 %v721
      %741 = vmatprep.subr.bf16.mxu0 0
      %742 = vmatpush1.bf16.msra.mxu0 %v722
      %743 = vmatprep.subr.bf16.mxu0 0
      %744 = vmatpush1.bf16.msra.mxu0 %v723
      %745 = vmatprep.subr.bf16.mxu0 0
      %746 = vmatpush1.bf16.msra.mxu0 %v724
      %747 = vmatprep.subr.bf16.mxu0 0
      %748 = vmatpush1.bf16.msra.mxu0 %v725
      %749 = vmatprep.subr.bf16.mxu0 0
      %750 = vmatpush1.bf16.msra.mxu0 %v726
      %751 = vmatprep.subr.bf16.mxu0 0
      %752 = vmatpush1.bf16.msra.mxu0 0
      %753 = vmatprep.subr.bf16.mxu0 0
      %754 = vmatpush1.bf16.msra.mxu0 0
      %755 = vmatprep.subr.bf16.mxu0 0
      %756 = vmatpush1.bf16.msra.mxu0 0
      %757 = vmatprep.subr.bf16.mxu0 0
      %758 = vmatpush1.bf16.msra.mxu0 0
      %759 = vmatprep.subr.bf16.mxu0 0
      %760 = vmatpush1.bf16.msra.mxu0 0
      %761 = vmatprep.subr.bf16.mxu0 0
      %762 = vmatpush1.bf16.msra.mxu0 0
      %763 = vmatprep.subr.bf16.mxu0 0
      %764 = vmatpush1.bf16.msra.mxu0 0
      %765 = vmatprep.subr.bf16.mxu0 0
      %766 = vmatpush1.bf16.msra.mxu0 0
      %767 = vmatprep.mubr.bf16.mxu0 0
      %768 = vmatmul.mubr.bf16.gmra.mrb[0].mxu0 %v679
      %v769 = vpop.f32.mrb[0].mxu0
      %v770 = vadd.f32 0.0, %v769
      %v771 = vpop.f32.mrb[0].mxu0
      %v772 = vpop.f32.mrb[0].mxu0
      %v773 = vadd.f32 0.0, %v772
      %v774 = vpop.f32.mrb[0].mxu0
      %775 = vmatprep.mubr.bf16.mxu0 0
      %776 = vmatmul.mubr.bf16.gmra.mrb[0].mxu0 %v680
      %v777 = vpop.f32.mrb[0].mxu0
      %v778 = vadd.f32 0.0, %v777
      %v779 = vpop.f32.mrb[0].mxu0
      %v780 = vpop.f32.mrb[0].mxu0
      %v781 = vadd.f32 0.0, %v780
      %v782 = vpop.f32.mrb[0].mxu0
      %783 = vmatprep.mubr.bf16.mxu0 0
      %784 = vmatmul.mubr.bf16.gmra.mrb[0].mxu0 %v681
      %v785 = vpop.f32.mrb[0].mxu0
      %v786 = vadd.f32 0.0, %v785
      %v787 = vpop.f32.mrb[0].mxu0
      %v788 = vpop.f32.mrb[0].mxu0
      %v789 = vadd.f32 0.0, %v788
      %v790 = vpop.f32.mrb[0].mxu0
      %791 = vmatprep.mubr.bf16.mxu0 0
      %792 = vmatmul.mubr.bf16.gmra.mrb[0].mxu0 %v682
      %v793 = vpop.f32.mrb[0].mxu0
      %v794 = vadd.f32 0.0, %v793
      %v795 = vpop.f32.mrb[0].mxu0
      %v796 = vpop.f32.mrb[0].mxu0
      %v797 = vadd.f32 0.0, %v796
      %v798 = vpop.f32.mrb[0].mxu0
      %799 = vmatprep.mubr.bf16.mxu0 0
      %800 = vmatmul.mubr.bf16.gmra.mrb[0].mxu0 %v683
      %v801 = vpop.f32.mrb[0].mxu0
      %v802 = vadd.f32 0.0, %v801
      %v803 = vpop.f32.mrb[0].mxu0
      %v804 = vpop.f32.mrb[0].mxu0
      %v805 = vadd.f32 0.0, %v804
      %v806 = vpop.f32.mrb[0].mxu0
      %807 = vmatprep.mubr.bf16.mxu0 0
      %808 = vmatmul.mubr.bf16.gmra.mrb[0].mxu0 %v684
      %v809 = vpop.f32.mrb[0].mxu0
      %v810 = vadd.f32 0.0, %v809
      %v811 = vpop.f32.mrb[0].mxu0
      %v812 = vpop.f32.mrb[0].mxu0
      %v813 = vadd.f32 0.0, %v812
      %v814 = vpop.f32.mrb[0].mxu0
      %815 = vmatprep.mubr.bf16.mxu0 0
      %816 = vmatmul.mubr.bf16.gmra.mrb[0].mxu0 %v685
      %v817 = vpop.f32.mrb[0].mxu0
      %v818 = vadd.f32 0.0, %v817
      %v819 = vpop.f32.mrb[0].mxu0
      %v820 = vpop.f32.mrb[0].mxu0
      %v821 = vadd.f32 0.0, %v820
      %v822 = vpop.f32.mrb[0].mxu0
      %823 = vmatprep.mubr.bf16.mxu0 0
      %824 = vmatmul.mubr.bf16.gmra.mrb[0].mxu0 %v686
      %v825 = vpop.f32.mrb[0].mxu0
      %v826 = vadd.f32 0.0, %v825
      %v827 = vpop.f32.mrb[0].mxu0
      %v828 = vpop.f32.mrb[0].mxu0
      %v829 = vadd.f32 0.0, %v828
      %v830 = vpop.f32.mrb[0].mxu0
      %831 = vdwg.mxu0
      %v832 = vpack.c.bf16 %v773, %v770
      %v833 = vpack.c.bf16 %v781, %v778
      %v834 = vpack.c.bf16 %v789, %v786
      %v835 = vpack.c.bf16 %v797, %v794
      %v836 = vpack.c.bf16 %v805, %v802
      %v837 = vpack.c.bf16 %v813, %v810
      %v838 = vpack.c.bf16 %v821, %v818
      %v839 = vpack.c.bf16 %v829, %v826
      %v840 = vlaneseq
      %v841 = vshrl.u32 %v840, 7
      %v842 = vsub.s32 0, %v841
      %v843 = vrot.slane %v350, %v842
      %844 = vmatprep.subr.bf16.mxu0 0
      %845 = vmatpush1.bf16.msra.mxu0 %v832
      %846 = vmatprep.subr.bf16.mxu0 0
      %847 = vmatpush1.bf16.msra.mxu0 %v833
      %848 = vmatprep.subr.bf16.mxu0 0
      %849 = vmatpush1.bf16.msra.mxu0 %v834
      %850 = vmatprep.subr.bf16.mxu0 0
      %851 = vmatpush1.bf16.msra.mxu0 %v835
      %852 = vmatprep.subr.bf16.mxu0 0
      %853 = vmatpush1.bf16.msra.mxu0 %v836
      %854 = vmatprep.subr.bf16.mxu0 0
      %855 = vmatpush1.bf16.msra.mxu0 %v837
      %856 = vmatprep.subr.bf16.mxu0 0
      %857 = vmatpush1.bf16.msra.mxu0 %v838
      %858 = vmatprep.subr.bf16.mxu0 0
      %859 = vmatpush1.bf16.msra.mxu0 %v839
      %860 = vmatprep.subr.bf16.mxu0 0
      %861 = vmatpush1.bf16.msra.mxu0 0
      %862 = vmatprep.subr.bf16.mxu0 0
      %863 = vmatpush1.bf16.msra.mxu0 0
      %864 = vmatprep.subr.bf16.mxu0 0
      %865 = vmatpush1.bf16.msra.mxu0 0
      %866 = vmatprep.subr.bf16.mxu0 0
      %867 = vmatpush1.bf16.msra.mxu0 0
      %868 = vmatprep.subr.bf16.mxu0 0
      %869 = vmatpush1.bf16.msra.mxu0 0
      %870 = vmatprep.subr.bf16.mxu0 0
      %871 = vmatpush1.bf16.msra.mxu0 0
      %872 = vmatprep.subr.bf16.mxu0 0
      %873 = vmatpush1.bf16.msra.mxu0 0
      %874 = vmatprep.subr.bf16.mxu0 0
      %875 = vmatpush1.bf16.msra.mxu0 0
      %876 = vmatprep.mubr.bf16.mxu0 0
      %877 = vmatmul.mubr.bf16.gmra.mrb[0].mxu0 %v566
      %v878 = vpop.f32.mrb[0].mxu0
      %v879 = vadd.f32 %v843, %v878
      %v880 = vpop.f32.mrb[0].mxu0
      %v881 = vpop.f32.mrb[0].mxu0
      %v882 = vadd.f32 %v843, %v881
      %v883 = vpop.f32.mrb[0].mxu0
      %884 = vmatprep.mubr.bf16.mxu0 0
      %885 = vmatmul.mubr.bf16.gmra.mrb[0].mxu0 %v567
      %v886 = vpop.f32.mrb[0].mxu0
      %v887 = vadd.f32 %v843, %v886
      %v888 = vpop.f32.mrb[0].mxu0
      %v889 = vpop.f32.mrb[0].mxu0
      %v890 = vadd.f32 %v843, %v889
      %v891 = vpop.f32.mrb[0].mxu0
      %892 = vmatprep.mubr.bf16.mxu0 0
      %893 = vmatmul.mubr.bf16.gmra.mrb[0].mxu0 %v568
      %v894 = vpop.f32.mrb[0].mxu0
      %v895 = vadd.f32 %v843, %v894
      %v896 = vpop.f32.mrb[0].mxu0
      %v897 = vpop.f32.mrb[0].mxu0
      %v898 = vadd.f32 %v843, %v897
      %v899 = vpop.f32.mrb[0].mxu0
      %900 = vmatprep.mubr.bf16.mxu0 0
      %901 = vmatmul.mubr.bf16.gmra.mrb[0].mxu0 %v569
      %v902 = vpop.f32.mrb[0].mxu0
      %v903 = vadd.f32 %v843, %v902
      %v904 = vpop.f32.mrb[0].mxu0
      %v905 = vpop.f32.mrb[0].mxu0
      %v906 = vadd.f32 %v843, %v905
      %v907 = vpop.f32.mrb[0].mxu0
      %908 = vmatprep.mubr.bf16.mxu0 0
      %909 = vmatmul.mubr.bf16.gmra.mrb[0].mxu0 %v570
      %v910 = vpop.f32.mrb[0].mxu0
      %v911 = vadd.f32 %v843, %v910
      %v912 = vpop.f32.mrb[0].mxu0
      %v913 = vpop.f32.mrb[0].mxu0
      %v914 = vadd.f32 %v843, %v913
      %v915 = vpop.f32.mrb[0].mxu0
      %916 = vmatprep.mubr.bf16.mxu0 0
      %917 = vmatmul.mubr.bf16.gmra.mrb[0].mxu0 %v571
      %v918 = vpop.f32.mrb[0].mxu0
      %v919 = vadd.f32 %v843, %v918
      %v920 = vpop.f32.mrb[0].mxu0
      %v921 = vpop.f32.mrb[0].mxu0
      %v922 = vadd.f32 %v843, %v921
      %v923 = vpop.f32.mrb[0].mxu0
      %924 = vmatprep.mubr.bf16.mxu0 0
      %925 = vmatmul.mubr.bf16.gmra.mrb[0].mxu0 %v572
      %v926 = vpop.f32.mrb[0].mxu0
      %v927 = vadd.f32 %v843, %v926
      %v928 = vpop.f32.mrb[0].mxu0
      %v929 = vpop.f32.mrb[0].mxu0
      %v930 = vadd.f32 %v843, %v929
      %v931 = vpop.f32.mrb[0].mxu0
      %932 = vmatprep.mubr.bf16.mxu0 0
      %933 = vmatmul.mubr.bf16.gmra.mrb[0].mxu0 %v573
      %v934 = vpop.f32.mrb[0].mxu0
      %v935 = vadd.f32 %v843, %v934
      %v936 = vpop.f32.mrb[0].mxu0
      %v937 = vpop.f32.mrb[0].mxu0
      %v938 = vadd.f32 %v843, %v937
      %v939 = vpop.f32.mrb[0].mxu0
      %940 = vdwg.mxu0
      %v941 = vpack.c.bf16 %v882, %v879
      %v942 = vpack.c.bf16 %v890, %v887
      %v943 = vpack.c.bf16 %v898, %v895
      %v944 = vpack.c.bf16 %v906, %v903
      %v945 = vpack.c.bf16 %v914, %v911
      %v946 = vpack.c.bf16 %v922, %v919
      %v947 = vpack.c.bf16 %v930, %v927
      %v948 = vpack.c.bf16 %v938, %v935
      %v949 = vlaneseq
      %v950 = vshrl.u32 %v949, 7
      %v951 = vsub.s32 0, %v950
      %v952 = vrot.slane %v351, %v951
      %v969 = vunpack.c.l.b16 %v269
      %v970 = vunpack.c.l.b16 %v270
      %v971 = vunpack.c.l.b16 %v271
      %v972 = vunpack.c.l.b16 %v272
      %v973 = vunpack.c.l.b16 %v273
      %v974 = vunpack.c.l.b16 %v274
      %v975 = vunpack.c.l.b16 %v275
      %v976 = vunpack.c.l.b16 %v276
      %v977 = vunpack.c.l.b16 %v277
      %v978 = vunpack.c.l.b16 %v278
      %v979 = vunpack.c.l.b16 %v279
      %v980 = vunpack.c.l.b16 %v280
      %v981 = vunpack.c.l.b16 %v281
      %v982 = vunpack.c.l.b16 %v282
      %v983 = vunpack.c.l.b16 %v283
      %v984 = vunpack.c.l.b16 %v284
      %v985 = vpack.c.b16 %v970, %v969
      %v986 = vpack.c.b16 %v972, %v971
      %v987 = vpack.c.b16 %v974, %v973
      %v988 = vpack.c.b16 %v976, %v975
      %v989 = vpack.c.b16 %v978, %v977
      %v990 = vpack.c.b16 %v980, %v979
      %v991 = vpack.c.b16 %v982, %v981
      %v992 = vpack.c.b16 %v984, %v983
      %1001 = vmatprep.subr.bf16.mxu0 0
      %1002 = vmatpush1.bf16.msra.mxu0 %v985
      %1003 = vmatprep.subr.bf16.mxu0 0
      %1004 = vmatpush1.bf16.msra.mxu0 %v986
      %1005 = vmatprep.subr.bf16.mxu0 0
      %1006 = vmatpush1.bf16.msra.mxu0 %v987
      %1007 = vmatprep.subr.bf16.mxu0 0
      %1008 = vmatpush1.bf16.msra.mxu0 %v988
      %1009 = vmatprep.subr.bf16.mxu0 0
      %1010 = vmatpush1.bf16.msra.mxu0 %v989
      %1011 = vmatprep.subr.bf16.mxu0 0
      %1012 = vmatpush1.bf16.msra.mxu0 %v990
      %1013 = vmatprep.subr.bf16.mxu0 0
      %1014 = vmatpush1.bf16.msra.mxu0 %v991
      %1015 = vmatprep.subr.bf16.mxu0 0
      %1016 = vmatpush1.bf16.msra.mxu0 %v992
      %1017 = vmatprep.subr.bf16.mxu0 0
      %1018 = vmatpush1.bf16.msra.mxu0 0
      %1019 = vmatprep.subr.bf16.mxu0 0
      %1020 = vmatpush1.bf16.msra.mxu0 0
      %1021 = vmatprep.subr.bf16.mxu0 0
      %1022 = vmatpush1.bf16.msra.mxu0 0
      %1023 = vmatprep.subr.bf16.mxu0 0
      %1024 = vmatpush1.bf16.msra.mxu0 0
      %1025 = vmatprep.subr.bf16.mxu0 0
      %1026 = vmatpush1.bf16.msra.mxu0 0
      %1027 = vmatprep.subr.bf16.mxu0 0
      %1028 = vmatpush1.bf16.msra.mxu0 0
      %1029 = vmatprep.subr.bf16.mxu0 0
      %1030 = vmatpush1.bf16.msra.mxu0 0
      %1031 = vmatprep.subr.bf16.mxu0 0
      %1032 = vmatpush1.bf16.msra.mxu0 0
      %1033 = vmatprep.mubr.bf16.mxu0 0
      %1034 = vmatmul.mubr.bf16.gmra.mrb[0].mxu0 %v941
      %v1035 = vpop.f32.mrb[0].mxu0
      %v1036 = vadd.f32 %v952, %v1035
      %v1037 = vpop.f32.mrb[0].mxu0
      %v1038 = vpop.f32.mrb[0].mxu0
      %v1039 = vadd.f32 %v952, %v1038
      %v1040 = vpop.f32.mrb[0].mxu0
      %1041 = vmatprep.mubr.bf16.mxu0 0
      %1042 = vmatmul.mubr.bf16.gmra.mrb[0].mxu0 %v942
      %v1043 = vpop.f32.mrb[0].mxu0
      %v1044 = vadd.f32 %v952, %v1043
      %v1045 = vpop.f32.mrb[0].mxu0
      %v1046 = vpop.f32.mrb[0].mxu0
      %v1047 = vadd.f32 %v952, %v1046
      %v1048 = vpop.f32.mrb[0].mxu0
      %1049 = vmatprep.mubr.bf16.mxu0 0
      %1050 = vmatmul.mubr.bf16.gmra.mrb[0].mxu0 %v943
      %v1051 = vpop.f32.mrb[0].mxu0
      %v1052 = vadd.f32 %v952, %v1051
      %v1053 = vpop.f32.mrb[0].mxu0
      %v1054 = vpop.f32.mrb[0].mxu0
      %v1055 = vadd.f32 %v952, %v1054
      %v1056 = vpop.f32.mrb[0].mxu0
      %1057 = vmatprep.mubr.bf16.mxu0 0
      %1058 = vmatmul.mubr.bf16.gmra.mrb[0].mxu0 %v944
      %v1059 = vpop.f32.mrb[0].mxu0
      %v1060 = vadd.f32 %v952, %v1059
      %v1061 = vpop.f32.mrb[0].mxu0
      %v1062 = vpop.f32.mrb[0].mxu0
      %v1063 = vadd.f32 %v952, %v1062
      %v1064 = vpop.f32.mrb[0].mxu0
      %1065 = vmatprep.mubr.bf16.mxu0 0
      %1066 = vmatmul.mubr.bf16.gmra.mrb[0].mxu0 %v945
      %v1067 = vpop.f32.mrb[0].mxu0
      %v1068 = vadd.f32 %v952, %v1067
      %v1069 = vpop.f32.mrb[0].mxu0
      %v1070 = vpop.f32.mrb[0].mxu0
      %v1071 = vadd.f32 %v952, %v1070
      %v1072 = vpop.f32.mrb[0].mxu0
      %1073 = vmatprep.mubr.bf16.mxu0 0
      %1074 = vmatmul.mubr.bf16.gmra.mrb[0].mxu0 %v946
      %v1075 = vpop.f32.mrb[0].mxu0
      %v1076 = vadd.f32 %v952, %v1075
      %v1077 = vpop.f32.mrb[0].mxu0
      %v1078 = vpop.f32.mrb[0].mxu0
      %v1079 = vadd.f32 %v952, %v1078
      %v1080 = vpop.f32.mrb[0].mxu0
      %1081 = vmatprep.mubr.bf16.mxu0 0
      %1082 = vmatmul.mubr.bf16.gmra.mrb[0].mxu0 %v947
      %v1083 = vpop.f32.mrb[0].mxu0
      %v1084 = vadd.f32 %v952, %v1083
      %v1085 = vpop.f32.mrb[0].mxu0
      %v1086 = vpop.f32.mrb[0].mxu0
      %v1087 = vadd.f32 %v952, %v1086
      %v1088 = vpop.f32.mrb[0].mxu0
      %1089 = vmatprep.mubr.bf16.mxu0 0
      %1090 = vmatmul.mubr.bf16.gmra.mrb[0].mxu0 %v948
      %v1091 = vpop.f32.mrb[0].mxu0
      %v1092 = vadd.f32 %v952, %v1091
      %v1093 = vpop.f32.mrb[0].mxu0
      %v1094 = vpop.f32.mrb[0].mxu0
      %v1095 = vadd.f32 %v952, %v1094
      %v1096 = vpop.f32.mrb[0].mxu0
      %1097 = vdwg.mxu0
      %1098 = vmax.xlane.f32.xlu0 %v1036
      %v1099 = vpop.xlane.xlu0 %1098
      %1100 = vmax.xlane.f32.xlu0 %v1039
      %v1101 = vpop.xlane.xlu0 %1100
      %1102 = vmax.xlane.f32.xlu0 %v1044
      %v1103 = vpop.xlane.xlu0 %1102
      %1104 = vmax.xlane.f32.xlu0 %v1047
      %v1105 = vpop.xlane.xlu0 %1104
      %1106 = vmax.xlane.f32.xlu0 %v1052
      %v1107 = vpop.xlane.xlu0 %1106
      %1108 = vmax.xlane.f32.xlu0 %v1055
      %v1109 = vpop.xlane.xlu0 %1108
      %1110 = vmax.xlane.f32.xlu0 %v1060
      %v1111 = vpop.xlane.xlu0 %1110
      %1112 = vmax.xlane.f32.xlu0 %v1063
      %v1113 = vpop.xlane.xlu0 %1112
      %1114 = vmax.xlane.f32.xlu0 %v1068
      %v1115 = vpop.xlane.xlu0 %1114
      %1116 = vmax.xlane.f32.xlu0 %v1071
      %v1117 = vpop.xlane.xlu0 %1116
      %1118 = vmax.xlane.f32.xlu0 %v1076
      %v1119 = vpop.xlane.xlu0 %1118
      %1120 = vmax.xlane.f32.xlu0 %v1079
      %v1121 = vpop.xlane.xlu0 %1120
      %1122 = vmax.xlane.f32.xlu0 %v1084
      %v1123 = vpop.xlane.xlu0 %1122
      %1124 = vmax.xlane.f32.xlu0 %v1087
      %v1125 = vpop.xlane.xlu0 %1124
      %1126 = vmax.xlane.f32.xlu0 %v1092
      %v1127 = vpop.xlane.xlu0 %1126
      %1128 = vmax.xlane.f32.xlu0 %v1095
      %v1129 = vpop.xlane.xlu0 %1128
      %v1130 = vsub.f32 %v1036, %v1099
      %v1131 = vsub.f32 %v1039, %v1101
      %v1132 = vsub.f32 %v1044, %v1103
      %v1133 = vsub.f32 %v1047, %v1105
      %v1134 = vsub.f32 %v1052, %v1107
      %v1135 = vsub.f32 %v1055, %v1109
      %v1136 = vsub.f32 %v1060, %v1111
      %v1137 = vsub.f32 %v1063, %v1113
      %v1138 = vsub.f32 %v1068, %v1115
      %v1139 = vsub.f32 %v1071, %v1117
      %v1140 = vsub.f32 %v1076, %v1119
      %v1141 = vsub.f32 %v1079, %v1121
      %v1142 = vsub.f32 %v1084, %v1123
      %v1143 = vsub.f32 %v1087, %v1125
      %v1144 = vsub.f32 %v1092, %v1127
      %v1145 = vsub.f32 %v1095, %v1129
      %v1146 = vmul.f32 %v1130, 1.442695
      %v1147 = vpow.pop %v1146
      %v1148 = vmul.f32 %v1131, 1.442695
      %v1149 = vpow.pop %v1148
      %v1150 = vmul.f32 %v1132, 1.442695
      %v1151 = vpow.pop %v1150
      %v1152 = vmul.f32 %v1133, 1.442695
      %v1153 = vpow.pop %v1152
      %v1154 = vmul.f32 %v1134, 1.442695
      %v1155 = vpow.pop %v1154
      %v1156 = vmul.f32 %v1135, 1.442695
      %v1157 = vpow.pop %v1156
      %v1158 = vmul.f32 %v1136, 1.442695
      %v1159 = vpow.pop %v1158
      %v1160 = vmul.f32 %v1137, 1.442695
      %v1161 = vpow.pop %v1160
      %v1162 = vmul.f32 %v1138, 1.442695
      %v1163 = vpow.pop %v1162
      %v1164 = vmul.f32 %v1139, 1.442695
      %v1165 = vpow.pop %v1164
      %v1166 = vmul.f32 %v1140, 1.442695
      %v1167 = vpow.pop %v1166
      %v1168 = vmul.f32 %v1141, 1.442695
      %v1169 = vpow.pop %v1168
      %v1170 = vmul.f32 %v1142, 1.442695
      %v1171 = vpow.pop %v1170
      %v1172 = vmul.f32 %v1143, 1.442695
      %v1173 = vpow.pop %v1172
      %v1174 = vmul.f32 %v1144, 1.442695
      %v1175 = vpow.pop %v1174
      %v1176 = vmul.f32 %v1145, 1.442695
      %v1177 = vpow.pop %v1176
      %1178 = vadd.xlane.f32.xlu0 %v1147
      %v1179 = vpop.xlane.xlu0 %1178
      %1180 = vadd.xlane.f32.xlu0 %v1149
      %v1181 = vpop.xlane.xlu0 %1180
      %1182 = vadd.xlane.f32.xlu0 %v1151
      %v1183 = vpop.xlane.xlu0 %1182
      %1184 = vadd.xlane.f32.xlu0 %v1153
      %v1185 = vpop.xlane.xlu0 %1184
      %1186 = vadd.xlane.f32.xlu0 %v1155
      %v1187 = vpop.xlane.xlu0 %1186
      %1188 = vadd.xlane.f32.xlu0 %v1157
      %v1189 = vpop.xlane.xlu0 %1188
      %1190 = vadd.xlane.f32.xlu0 %v1159
      %v1191 = vpop.xlane.xlu0 %1190
      %1192 = vadd.xlane.f32.xlu0 %v1161
      %v1193 = vpop.xlane.xlu0 %1192
      %1194 = vadd.xlane.f32.xlu0 %v1163
      %v1195 = vpop.xlane.xlu0 %1194
      %1196 = vadd.xlane.f32.xlu0 %v1165
      %v1197 = vpop.xlane.xlu0 %1196
      %1198 = vadd.xlane.f32.xlu0 %v1167
      %v1199 = vpop.xlane.xlu0 %1198
      %1200 = vadd.xlane.f32.xlu0 %v1169
      %v1201 = vpop.xlane.xlu0 %1200
      %1202 = vadd.xlane.f32.xlu0 %v1171
      %v1203 = vpop.xlane.xlu0 %1202
      %1204 = vadd.xlane.f32.xlu0 %v1173
      %v1205 = vpop.xlane.xlu0 %1204
      %1206 = vadd.xlane.f32.xlu0 %v1175
      %v1207 = vpop.xlane.xlu0 %1206
      %1208 = vadd.xlane.f32.xlu0 %v1177
      %v1209 = vpop.xlane.xlu0 %1208
      %v1210 = vrcp.pop %v1179
      %v1211 = vrcp.pop %v1181
      %v1212 = vrcp.pop %v1183
      %v1213 = vrcp.pop %v1185
      %v1214 = vrcp.pop %v1187
      %v1215 = vrcp.pop %v1189
      %v1216 = vrcp.pop %v1191
      %v1217 = vrcp.pop %v1193
      %v1218 = vrcp.pop %v1195
      %v1219 = vrcp.pop %v1197
      %v1220 = vrcp.pop %v1199
      %v1221 = vrcp.pop %v1201
      %v1222 = vrcp.pop %v1203
      %v1223 = vrcp.pop %v1205
      %v1224 = vrcp.pop %v1207
      %v1225 = vrcp.pop %v1209
      %v1226 = vmul.f32 %v1147, %v1210
      %v1227 = vmul.f32 %v1149, %v1211
      %v1228 = vmul.f32 %v1151, %v1212
      %v1229 = vmul.f32 %v1153, %v1213
      %v1230 = vmul.f32 %v1155, %v1214
      %v1231 = vmul.f32 %v1157, %v1215
      %v1232 = vmul.f32 %v1159, %v1216
      %v1233 = vmul.f32 %v1161, %v1217
      %v1234 = vmul.f32 %v1163, %v1218
      %v1235 = vmul.f32 %v1165, %v1219
      %v1236 = vmul.f32 %v1167, %v1220
      %v1237 = vmul.f32 %v1169, %v1221
      %v1238 = vmul.f32 %v1171, %v1222
      %v1239 = vmul.f32 %v1173, %v1223
      %v1240 = vmul.f32 %v1175, %v1224
      %v1241 = vmul.f32 %v1177, %v1225
      %v1242 = vlaneseq
      %v1243 = vshrl.u32 %v1242, 7
      %v1244 = vsub.s32 0, %v1243
      %v1245 = vrot.slane %v352, %v1244
      %1246 = vmatprep.subr.mxu0 0.0
      %1247 = vmatpush1.msra.mxu0 %v317
      %1248 = vmatprep.subr.mxu0 0.0
      %1249 = vmatpush1.msra.mxu0 %v318
      %1250 = vmatprep.subr.mxu0 0.0
      %1251 = vmatpush1.msra.mxu0 %v319
      %1252 = vmatprep.subr.mxu0 0.0
      %1253 = vmatpush1.msra.mxu0 %v320
      %1254 = vmatprep.subr.mxu0 0.0
      %1255 = vmatpush1.msra.mxu0 %v321
      %1256 = vmatprep.subr.mxu0 0.0
      %1257 = vmatpush1.msra.mxu0 %v322
      %1258 = vmatprep.subr.mxu0 0.0
      %1259 = vmatpush1.msra.mxu0 %v323
      %1260 = vmatprep.subr.mxu0 0.0
      %1261 = vmatpush1.msra.mxu0 %v324
      %1262 = vmatprep.subr.mxu0 0.0
      %1263 = vmatpush1.msra.mxu0 %v325
      %1264 = vmatprep.subr.mxu0 0.0
      %1265 = vmatpush1.msra.mxu0 %v326
      %1266 = vmatprep.subr.mxu0 0.0
      %1267 = vmatpush1.msra.mxu0 %v327
      %1268 = vmatprep.subr.mxu0 0.0
      %1269 = vmatpush1.msra.mxu0 %v328
      %1270 = vmatprep.subr.mxu0 0.0
      %1271 = vmatpush1.msra.mxu0 %v329
      %1272 = vmatprep.subr.mxu0 0.0
      %1273 = vmatpush1.msra.mxu0 %v330
      %1274 = vmatprep.subr.mxu0 0.0
      %1275 = vmatpush1.msra.mxu0 %v331
      %1276 = vmatprep.subr.mxu0 0.0
      %1277 = vmatpush1.msra.mxu0 %v332
      %1278 = vmatprep.subr.mxu0 0.0
      %1279 = vmatpush1.msra.mxu0 0.0
      %1280 = vmatprep.subr.mxu0 0.0
      %1281 = vmatpush1.msra.mxu0 0.0
      %1282 = vmatprep.subr.mxu0 0.0
      %1283 = vmatpush1.msra.mxu0 0.0
      %1284 = vmatprep.subr.mxu0 0.0
      %1285 = vmatpush1.msra.mxu0 0.0
      %1286 = vmatprep.subr.mxu0 0.0
      %1287 = vmatpush1.msra.mxu0 0.0
      %1288 = vmatprep.subr.mxu0 0.0
      %1289 = vmatpush1.msra.mxu0 0.0
      %1290 = vmatprep.subr.mxu0 0.0
      %1291 = vmatpush1.msra.mxu0 0.0
      %1292 = vmatprep.subr.mxu0 0.0
      %1293 = vmatpush1.msra.mxu0 0.0
      %1294 = vmatprep.subr.mxu0 0.0
      %1295 = vmatpush1.msra.mxu0 0.0
      %1296 = vmatprep.subr.mxu0 0.0
      %1297 = vmatpush1.msra.mxu0 0.0
      %1298 = vmatprep.subr.mxu0 0.0
      %1299 = vmatpush1.msra.mxu0 0.0
      %1300 = vmatprep.subr.mxu0 0.0
      %1301 = vmatpush1.msra.mxu0 0.0
      %1302 = vmatprep.subr.mxu0 0.0
      %1303 = vmatpush1.msra.mxu0 0.0
      %1304 = vmatprep.subr.mxu0 0.0
      %1305 = vmatpush1.msra.mxu0 0.0
      %1306 = vmatprep.subr.mxu0 0.0
      %1307 = vmatpush1.msra.mxu0 0.0
      %1308 = vmatprep.subr.mxu0 0.0
      %1309 = vmatpush1.msra.mxu0 0.0
      %1310 = vmatprep.mubr.f32.mxu0 0.0
      %1311 = vmatmul.mubr.f32.gmra.mrb[0].mxu0 %v1226
      %v1312 = vpop.f32.mrb[0].mxu0
      %v1313 = vadd.f32 %v1245, %v1312
      %v1314 = vpop.f32.mrb[0].mxu0
      %1315 = vmatprep.mubr.f32.mxu0 0.0
      %1316 = vmatmul.mubr.f32.gmra.mrb[0].mxu0 %v1227
      %v1317 = vpop.f32.mrb[0].mxu0
      %v1318 = vadd.f32 %v1245, %v1317
      %v1319 = vpop.f32.mrb[0].mxu0
      %1320 = vmatprep.mubr.f32.mxu0 0.0
      %1321 = vmatmul.mubr.f32.gmra.mrb[0].mxu0 %v1228
      %v1322 = vpop.f32.mrb[0].mxu0
      %v1323 = vadd.f32 %v1245, %v1322
      %v1324 = vpop.f32.mrb[0].mxu0
      %1325 = vmatprep.mubr.f32.mxu0 0.0
      %1326 = vmatmul.mubr.f32.gmra.mrb[0].mxu0 %v1229
      %v1327 = vpop.f32.mrb[0].mxu0
      %v1328 = vadd.f32 %v1245, %v1327
      %v1329 = vpop.f32.mrb[0].mxu0
      %1330 = vmatprep.mubr.f32.mxu0 0.0
      %1331 = vmatmul.mubr.f32.gmra.mrb[0].mxu0 %v1230
      %v1332 = vpop.f32.mrb[0].mxu0
      %v1333 = vadd.f32 %v1245, %v1332
      %v1334 = vpop.f32.mrb[0].mxu0
      %1335 = vmatprep.mubr.f32.mxu0 0.0
      %1336 = vmatmul.mubr.f32.gmra.mrb[0].mxu0 %v1231
      %v1337 = vpop.f32.mrb[0].mxu0
      %v1338 = vadd.f32 %v1245, %v1337
      %v1339 = vpop.f32.mrb[0].mxu0
      %1340 = vmatprep.mubr.f32.mxu0 0.0
      %1341 = vmatmul.mubr.f32.gmra.mrb[0].mxu0 %v1232
      %v1342 = vpop.f32.mrb[0].mxu0
      %v1343 = vadd.f32 %v1245, %v1342
      %v1344 = vpop.f32.mrb[0].mxu0
      %1345 = vmatprep.mubr.f32.mxu0 0.0
      %1346 = vmatmul.mubr.f32.gmra.mrb[0].mxu0 %v1233
      %v1347 = vpop.f32.mrb[0].mxu0
      %v1348 = vadd.f32 %v1245, %v1347
      %v1349 = vpop.f32.mrb[0].mxu0
      %1350 = vmatprep.mubr.f32.mxu0 0.0
      %1351 = vmatmul.mubr.f32.gmra.mrb[0].mxu0 %v1234
      %v1352 = vpop.f32.mrb[0].mxu0
      %v1353 = vadd.f32 %v1245, %v1352
      %v1354 = vpop.f32.mrb[0].mxu0
      %1355 = vmatprep.mubr.f32.mxu0 0.0
      %1356 = vmatmul.mubr.f32.gmra.mrb[0].mxu0 %v1235
      %v1357 = vpop.f32.mrb[0].mxu0
      %v1358 = vadd.f32 %v1245, %v1357
      %v1359 = vpop.f32.mrb[0].mxu0
      %1360 = vmatprep.mubr.f32.mxu0 0.0
      %1361 = vmatmul.mubr.f32.gmra.mrb[0].mxu0 %v1236
      %v1362 = vpop.f32.mrb[0].mxu0
      %v1363 = vadd.f32 %v1245, %v1362
      %v1364 = vpop.f32.mrb[0].mxu0
      %1365 = vmatprep.mubr.f32.mxu0 0.0
      %1366 = vmatmul.mubr.f32.gmra.mrb[0].mxu0 %v1237
      %v1367 = vpop.f32.mrb[0].mxu0
      %v1368 = vadd.f32 %v1245, %v1367
      %v1369 = vpop.f32.mrb[0].mxu0
      %1370 = vmatprep.mubr.f32.mxu0 0.0
      %1371 = vmatmul.mubr.f32.gmra.mrb[0].mxu0 %v1238
      %v1372 = vpop.f32.mrb[0].mxu0
      %v1373 = vadd.f32 %v1245, %v1372
      %v1374 = vpop.f32.mrb[0].mxu0
      %1375 = vmatprep.mubr.f32.mxu0 0.0
      %1376 = vmatmul.mubr.f32.gmra.mrb[0].mxu0 %v1239
      %v1377 = vpop.f32.mrb[0].mxu0
      %v1378 = vadd.f32 %v1245, %v1377
      %v1379 = vpop.f32.mrb[0].mxu0
      %1380 = vmatprep.mubr.f32.mxu0 0.0
      %1381 = vmatmul.mubr.f32.gmra.mrb[0].mxu0 %v1240
      %v1382 = vpop.f32.mrb[0].mxu0
      %v1383 = vadd.f32 %v1245, %v1382
      %v1384 = vpop.f32.mrb[0].mxu0
      %1385 = vmatprep.mubr.f32.mxu0 0.0
      %1386 = vmatmul.mubr.f32.gmra.mrb[0].mxu0 %v1241
      %v1387 = vpop.f32.mrb[0].mxu0
      %v1388 = vadd.f32 %v1245, %v1387
      %v1389 = vpop.f32.mrb[0].mxu0
      %1390 = vdwg.mxu0
      %1391 = vmax.xlane.f32.xlu0 %v1313
      %v1392 = vpop.xlane.xlu0 %1391
      %1393 = vmax.xlane.f32.xlu0 %v1318
      %v1394 = vpop.xlane.xlu0 %1393
      %1395 = vmax.xlane.f32.xlu0 %v1323
      %v1396 = vpop.xlane.xlu0 %1395
      %1397 = vmax.xlane.f32.xlu0 %v1328
      %v1398 = vpop.xlane.xlu0 %1397
      %1399 = vmax.xlane.f32.xlu0 %v1333
      %v1400 = vpop.xlane.xlu0 %1399
      %1401 = vmax.xlane.f32.xlu0 %v1338
      %v1402 = vpop.xlane.xlu0 %1401
      %1403 = vmax.xlane.f32.xlu0 %v1343
      %v1404 = vpop.xlane.xlu0 %1403
      %1405 = vmax.xlane.f32.xlu0 %v1348
      %v1406 = vpop.xlane.xlu0 %1405
      %1407 = vmax.xlane.f32.xlu0 %v1353
      %v1408 = vpop.xlane.xlu0 %1407
      %1409 = vmax.xlane.f32.xlu0 %v1358
      %v1410 = vpop.xlane.xlu0 %1409
      %1411 = vmax.xlane.f32.xlu0 %v1363
      %v1412 = vpop.xlane.xlu0 %1411
      %1413 = vmax.xlane.f32.xlu0 %v1368
      %v1414 = vpop.xlane.xlu0 %1413
      %1415 = vmax.xlane.f32.xlu0 %v1373
      %v1416 = vpop.xlane.xlu0 %1415
      %1417 = vmax.xlane.f32.xlu0 %v1378
      %v1418 = vpop.xlane.xlu0 %1417
      %1419 = vmax.xlane.f32.xlu0 %v1383
      %v1420 = vpop.xlane.xlu0 %1419
      %1421 = vmax.xlane.f32.xlu0 %v1388
      %v1422 = vpop.xlane.xlu0 %1421
      %v1423 = vsub.f32 %v1313, %v1392
      %v1424 = vsub.f32 %v1318, %v1394
      %v1425 = vsub.f32 %v1323, %v1396
      %v1426 = vsub.f32 %v1328, %v1398
      %v1427 = vsub.f32 %v1333, %v1400
      %v1428 = vsub.f32 %v1338, %v1402
      %v1429 = vsub.f32 %v1343, %v1404
      %v1430 = vsub.f32 %v1348, %v1406
      %v1431 = vsub.f32 %v1353, %v1408
      %v1432 = vsub.f32 %v1358, %v1410
      %v1433 = vsub.f32 %v1363, %v1412
      %v1434 = vsub.f32 %v1368, %v1414
      %v1435 = vsub.f32 %v1373, %v1416
      %v1436 = vsub.f32 %v1378, %v1418
      %v1437 = vsub.f32 %v1383, %v1420
      %v1438 = vsub.f32 %v1388, %v1422
      %v1439 = vmul.f32 %v1423, 1.442695
      %v1440 = vpow.pop %v1439
      %v1441 = vmul.f32 %v1424, 1.442695
      %v1442 = vpow.pop %v1441
      %v1443 = vmul.f32 %v1425, 1.442695
      %v1444 = vpow.pop %v1443
      %v1445 = vmul.f32 %v1426, 1.442695
      %v1446 = vpow.pop %v1445
      %v1447 = vmul.f32 %v1427, 1.442695
      %v1448 = vpow.pop %v1447
      %v1449 = vmul.f32 %v1428, 1.442695
      %v1450 = vpow.pop %v1449
      %v1451 = vmul.f32 %v1429, 1.442695
      %v1452 = vpow.pop %v1451
      %v1453 = vmul.f32 %v1430, 1.442695
      %v1454 = vpow.pop %v1453
      %v1455 = vmul.f32 %v1431, 1.442695
      %v1456 = vpow.pop %v1455
      %v1457 = vmul.f32 %v1432, 1.442695
      %v1458 = vpow.pop %v1457
      %v1459 = vmul.f32 %v1433, 1.442695
      %v1460 = vpow.pop %v1459
      %v1461 = vmul.f32 %v1434, 1.442695
      %v1462 = vpow.pop %v1461
      %v1463 = vmul.f32 %v1435, 1.442695
      %v1464 = vpow.pop %v1463
      %v1465 = vmul.f32 %v1436, 1.442695
      %v1466 = vpow.pop %v1465
      %v1467 = vmul.f32 %v1437, 1.442695
      %v1468 = vpow.pop %v1467
      %v1469 = vmul.f32 %v1438, 1.442695
      %v1470 = vpow.pop %v1469
      %1471 = vadd.xlane.f32.xlu0 %v1440
      %v1472 = vpop.xlane.xlu0 %1471
      %1473 = vadd.xlane.f32.xlu0 %v1442
      %v1474 = vpop.xlane.xlu0 %1473
      %1475 = vadd.xlane.f32.xlu0 %v1444
      %v1476 = vpop.xlane.xlu0 %1475
      %1477 = vadd.xlane.f32.xlu0 %v1446
      %v1478 = vpop.xlane.xlu0 %1477
      %1479 = vadd.xlane.f32.xlu0 %v1448
      %v1480 = vpop.xlane.xlu0 %1479
      %1481 = vadd.xlane.f32.xlu0 %v1450
      %v1482 = vpop.xlane.xlu0 %1481
      %1483 = vadd.xlane.f32.xlu0 %v1452
      %v1484 = vpop.xlane.xlu0 %1483
      %1485 = vadd.xlane.f32.xlu0 %v1454
      %v1486 = vpop.xlane.xlu0 %1485
      %1487 = vadd.xlane.f32.xlu0 %v1456
      %v1488 = vpop.xlane.xlu0 %1487
      %1489 = vadd.xlane.f32.xlu0 %v1458
      %v1490 = vpop.xlane.xlu0 %1489
      %1491 = vadd.xlane.f32.xlu0 %v1460
      %v1492 = vpop.xlane.xlu0 %1491
      %1493 = vadd.xlane.f32.xlu0 %v1462
      %v1494 = vpop.xlane.xlu0 %1493
      %1495 = vadd.xlane.f32.xlu0 %v1464
      %v1496 = vpop.xlane.xlu0 %1495
      %1497 = vadd.xlane.f32.xlu0 %v1466
      %v1498 = vpop.xlane.xlu0 %1497
      %1499 = vadd.xlane.f32.xlu0 %v1468
      %v1500 = vpop.xlane.xlu0 %1499
      %1501 = vadd.xlane.f32.xlu0 %v1470
      %v1502 = vpop.xlane.xlu0 %1501
      %v1503 = vrcp.pop %v1472
      %v1504 = vrcp.pop %v1474
      %v1505 = vrcp.pop %v1476
      %v1506 = vrcp.pop %v1478
      %v1507 = vrcp.pop %v1480
      %v1508 = vrcp.pop %v1482
      %v1509 = vrcp.pop %v1484
      %v1510 = vrcp.pop %v1486
      %v1511 = vrcp.pop %v1488
      %v1512 = vrcp.pop %v1490
      %v1513 = vrcp.pop %v1492
      %v1514 = vrcp.pop %v1494
      %v1515 = vrcp.pop %v1496
      %v1516 = vrcp.pop %v1498
      %v1517 = vrcp.pop %v1500
      %v1518 = vrcp.pop %v1502
      %v1519 = vmul.f32 %v1440, %v1503
      %v1520 = vmul.f32 %v1442, %v1504
      %v1521 = vmul.f32 %v1444, %v1505
      %v1522 = vmul.f32 %v1446, %v1506
      %v1523 = vmul.f32 %v1448, %v1507
      %v1524 = vmul.f32 %v1450, %v1508
      %v1525 = vmul.f32 %v1452, %v1509
      %v1526 = vmul.f32 %v1454, %v1510
      %v1527 = vmul.f32 %v1456, %v1511
      %v1528 = vmul.f32 %v1458, %v1512
      %v1529 = vmul.f32 %v1460, %v1513
      %v1530 = vmul.f32 %v1462, %v1514
      %v1531 = vmul.f32 %v1464, %v1515
      %v1532 = vmul.f32 %v1466, %v1516
      %v1533 = vmul.f32 %v1468, %v1517
      %v1534 = vmul.f32 %v1470, %v1518
      %1535 = vxpose.xlu0.b32.start [1/16] %v1519, 128
      %1536 = vxpose.xlu0.b32.cont [2/16] %v1520, 128
      %1537 = vxpose.xlu0.b32.cont [3/16] %v1521, 128
      %1538 = vxpose.xlu0.b32.cont [4/16] %v1522, 128
      %1539 = vxpose.xlu0.b32.cont [5/16] %v1523, 128
      %1540 = vxpose.xlu0.b32.cont [6/16] %v1524, 128
      %1541 = vxpose.xlu0.b32.cont [7/16] %v1525, 128
      %1542 = vxpose.xlu0.b32.cont [8/16] %v1526, 128
      %1543 = vxpose.xlu0.b32.cont [9/16] %v1527, 128
      %1544 = vxpose.xlu0.b32.cont [10/16] %v1528, 128
      %1545 = vxpose.xlu0.b32.cont [11/16] %v1529, 128
      %1546 = vxpose.xlu0.b32.cont [12/16] %v1530, 128
      %1547 = vxpose.xlu0.b32.cont [13/16] %v1531, 128
      %1548 = vxpose.xlu0.b32.cont [14/16] %v1532, 128
      %1549 = vxpose.xlu0.b32.cont [15/16] %v1533, 128
      %1550 = vxpose.xlu0.b32.end [16/16] %v1534, 128
      %v1551 = vpop.trf.xlu0
      %v1552 = vpop.trf.xlu0
      %v1553 = vpop.trf.xlu0
      %v1554 = vpop.trf.xlu0
      %v1555 = vpop.trf.xlu0
      %v1556 = vpop.trf.xlu0
      %v1557 = vpop.trf.xlu0
      %v1558 = vpop.trf.xlu0
      %v1559 = vpop.trf.xlu0
      %v1560 = vpop.trf.xlu0
      %v1561 = vpop.trf.xlu0
      %v1562 = vpop.trf.xlu0
      %v1563 = vpop.trf.xlu0
      %v1564 = vpop.trf.xlu0
      %v1565 = vpop.trf.xlu0
      %v1566 = vpop.trf.xlu0
      %1567 = vmatprep.subr.mxu0 0.0
      %v1568 = vand.u32 %v1226, 4294901760
      %1569 = vmatpush1.msra.mxu0 %v1568
      %1570 = vmatprep.subr.mxu0 0.0
      %v1571 = vand.u32 %v1227, 4294901760
      %1572 = vmatpush1.msra.mxu0 %v1571
      %1573 = vmatprep.subr.mxu0 0.0
      %v1574 = vand.u32 %v1228, 4294901760
      %1575 = vmatpush1.msra.mxu0 %v1574
      %1576 = vmatprep.subr.mxu0 0.0
      %v1577 = vand.u32 %v1229, 4294901760
      %1578 = vmatpush1.msra.mxu0 %v1577
      %1579 = vmatprep.subr.mxu0 0.0
      %v1580 = vand.u32 %v1230, 4294901760
      %1581 = vmatpush1.msra.mxu0 %v1580
      %1582 = vmatprep.subr.mxu0 0.0
      %v1583 = vand.u32 %v1231, 4294901760
      %1584 = vmatpush1.msra.mxu0 %v1583
      %1585 = vmatprep.subr.mxu0 0.0
      %v1586 = vand.u32 %v1232, 4294901760
      %1587 = vmatpush1.msra.mxu0 %v1586
      %1588 = vmatprep.subr.mxu0 0.0
      %v1589 = vand.u32 %v1233, 4294901760
      %1590 = vmatpush1.msra.mxu0 %v1589
      %1591 = vmatprep.subr.mxu0 0.0
      %v1592 = vand.u32 %v1234, 4294901760
      %1593 = vmatpush1.msra.mxu0 %v1592
      %1594 = vmatprep.subr.mxu0 0.0
      %v1595 = vand.u32 %v1235, 4294901760
      %1596 = vmatpush1.msra.mxu0 %v1595
      %1597 = vmatprep.subr.mxu0 0.0
      %v1598 = vand.u32 %v1236, 4294901760
      %1599 = vmatpush1.msra.mxu0 %v1598
      %1600 = vmatprep.subr.mxu0 0.0
      %v1601 = vand.u32 %v1237, 4294901760
      %1602 = vmatpush1.msra.mxu0 %v1601
      %1603 = vmatprep.subr.mxu0 0.0
      %v1604 = vand.u32 %v1238, 4294901760
      %1605 = vmatpush1.msra.mxu0 %v1604
      %1606 = vmatprep.subr.mxu0 0.0
      %v1607 = vand.u32 %v1239, 4294901760
      %1608 = vmatpush1.msra.mxu0 %v1607
      %1609 = vmatprep.subr.mxu0 0.0
      %v1610 = vand.u32 %v1240, 4294901760
      %1611 = vmatpush1.msra.mxu0 %v1610
      %1612 = vmatprep.subr.mxu0 0.0
      %v1613 = vand.u32 %v1241, 4294901760
      %1614 = vmatpush1.msra.mxu0 %v1613
      %1615 = vmatprep.subr.mxu0 0.0
      %1616 = vmatpush1.msra.mxu0 0.0
      %1617 = vmatprep.subr.mxu0 0.0
      %1618 = vmatpush1.msra.mxu0 0.0
      %1619 = vmatprep.subr.mxu0 0.0
      %1620 = vmatpush1.msra.mxu0 0.0
      %1621 = vmatprep.subr.mxu0 0.0
      %1622 = vmatpush1.msra.mxu0 0.0
      %1623 = vmatprep.subr.mxu0 0.0
      %1624 = vmatpush1.msra.mxu0 0.0
      %1625 = vmatprep.subr.mxu0 0.0
      %1626 = vmatpush1.msra.mxu0 0.0
      %1627 = vmatprep.subr.mxu0 0.0
      %1628 = vmatpush1.msra.mxu0 0.0
      %1629 = vmatprep.subr.mxu0 0.0
      %1630 = vmatpush1.msra.mxu0 0.0
      %1631 = vmatprep.subr.mxu0 0.0
      %1632 = vmatpush1.msra.mxu0 0.0
      %1633 = vmatprep.subr.mxu0 0.0
      %1634 = vmatpush1.msra.mxu0 0.0
      %1635 = vmatprep.subr.mxu0 0.0
      %1636 = vmatpush1.msra.mxu0 0.0
      %1637 = vmatprep.subr.mxu0 0.0
      %1638 = vmatpush1.msra.mxu0 0.0
      %1639 = vmatprep.subr.mxu0 0.0
      %1640 = vmatpush1.msra.mxu0 0.0
      %1641 = vmatprep.subr.mxu0 0.0
      %1642 = vmatpush1.msra.mxu0 0.0
      %1643 = vmatprep.subr.mxu0 0.0
      %1644 = vmatpush1.msra.mxu0 0.0
      %1645 = vmatprep.subr.mxu0 0.0
      %1646 = vmatpush1.msra.mxu0 0.0
      %1647 = vmatprep.mubr.f32.mxu0 0.0
      %v1648 = vand.u32 %v1551, 4294901760
      %v1649 = vsub.f32 %v1551, %v1648
      %v1650 = vand.u32 %v1649, 4294901760
      %v1651 = vsub.f32 %v1649, %v1650
      %v1652 = vand.u32 %v1651, 4294901760
      %1653 = vmatmul.mubr.f32.gmra.mrb[0].mxu0 %v1652
      %v1654 = vpop.f32.mrb[0].mxu0
      %v1655 = vadd.f32 0.0, %v1654
      %v1656 = vpop.f32.mrb[0].mxu0
      %1657 = vmatprep.mubr.f32.mxu0 0.0
      %v1658 = vand.u32 %v1552, 4294901760
      %v1659 = vsub.f32 %v1552, %v1658
      %v1660 = vand.u32 %v1659, 4294901760
      %v1661 = vsub.f32 %v1659, %v1660
      %v1662 = vand.u32 %v1661, 4294901760
      %1663 = vmatmul.mubr.f32.gmra.mrb[0].mxu0 %v1662
      %v1664 = vpop.f32.mrb[0].mxu0
      %v1665 = vadd.f32 0.0, %v1664
      %v1666 = vpop.f32.mrb[0].mxu0
      %1667 = vmatprep.mubr.f32.mxu0 0.0
      %v1668 = vand.u32 %v1553, 4294901760
      %v1669 = vsub.f32 %v1553, %v1668
      %v1670 = vand.u32 %v1669, 4294901760
      %v1671 = vsub.f32 %v1669, %v1670
      %v1672 = vand.u32 %v1671, 4294901760
      %1673 = vmatmul.mubr.f32.gmra.mrb[0].mxu0 %v1672
      %v1674 = vpop.f32.mrb[0].mxu0
      %v1675 = vadd.f32 0.0, %v1674
      %v1676 = vpop.f32.mrb[0].mxu0
      %1677 = vmatprep.mubr.f32.mxu0 0.0
      %v1678 = vand.u32 %v1554, 4294901760
      %v1679 = vsub.f32 %v1554, %v1678
      %v1680 = vand.u32 %v1679, 4294901760
      %v1681 = vsub.f32 %v1679, %v1680
      %v1682 = vand.u32 %v1681, 4294901760
      %1683 = vmatmul.mubr.f32.gmra.mrb[0].mxu0 %v1682
      %v1684 = vpop.f32.mrb[0].mxu0
      %v1685 = vadd.f32 0.0, %v1684
      %v1686 = vpop.f32.mrb[0].mxu0
      %1687 = vmatprep.mubr.f32.mxu0 0.0
      %v1688 = vand.u32 %v1555, 4294901760
      %v1689 = vsub.f32 %v1555, %v1688
      %v1690 = vand.u32 %v1689, 4294901760
      %v1691 = vsub.f32 %v1689, %v1690
      %v1692 = vand.u32 %v1691, 4294901760
      %1693 = vmatmul.mubr.f32.gmra.mrb[0].mxu0 %v1692
      %v1694 = vpop.f32.mrb[0].mxu0
      %v1695 = vadd.f32 0.0, %v1694
      %v1696 = vpop.f32.mrb[0].mxu0
      %1697 = vmatprep.mubr.f32.mxu0 0.0
      %v1698 = vand.u32 %v1556, 4294901760
      %v1699 = vsub.f32 %v1556, %v1698
      %v1700 = vand.u32 %v1699, 4294901760
      %v1701 = vsub.f32 %v1699, %v1700
      %v1702 = vand.u32 %v1701, 4294901760
      %1703 = vmatmul.mubr.f32.gmra.mrb[0].mxu0 %v1702
      %v1704 = vpop.f32.mrb[0].mxu0
      %v1705 = vadd.f32 0.0, %v1704
      %v1706 = vpop.f32.mrb[0].mxu0
      %1707 = vmatprep.mubr.f32.mxu0 0.0
      %v1708 = vand.u32 %v1557, 4294901760
      %v1709 = vsub.f32 %v1557, %v1708
      %v1710 = vand.u32 %v1709, 4294901760
      %v1711 = vsub.f32 %v1709, %v1710
      %v1712 = vand.u32 %v1711, 4294901760
      %1713 = vmatmul.mubr.f32.gmra.mrb[0].mxu0 %v1712
      %v1714 = vpop.f32.mrb[0].mxu0
      %v1715 = vadd.f32 0.0, %v1714
      %v1716 = vpop.f32.mrb[0].mxu0
      %1717 = vmatprep.mubr.f32.mxu0 0.0
      %v1718 = vand.u32 %v1558, 4294901760
      %v1719 = vsub.f32 %v1558, %v1718
      %v1720 = vand.u32 %v1719, 4294901760
      %v1721 = vsub.f32 %v1719, %v1720
      %v1722 = vand.u32 %v1721, 4294901760
      %1723 = vmatmul.mubr.f32.gmra.mrb[0].mxu0 %v1722
      %v1724 = vpop.f32.mrb[0].mxu0
      %v1725 = vadd.f32 0.0, %v1724
      %v1726 = vpop.f32.mrb[0].mxu0
      %1727 = vmatprep.mubr.f32.mxu0 0.0
      %v1728 = vand.u32 %v1559, 4294901760
      %v1729 = vsub.f32 %v1559, %v1728
      %v1730 = vand.u32 %v1729, 4294901760
      %v1731 = vsub.f32 %v1729, %v1730
      %v1732 = vand.u32 %v1731, 4294901760
      %1733 = vmatmul.mubr.f32.gmra.mrb[0].mxu0 %v1732
      %v1734 = vpop.f32.mrb[0].mxu0
      %v1735 = vadd.f32 0.0, %v1734
      %v1736 = vpop.f32.mrb[0].mxu0
      %1737 = vmatprep.mubr.f32.mxu0 0.0
      %v1738 = vand.u32 %v1560, 4294901760
      %v1739 = vsub.f32 %v1560, %v1738
      %v1740 = vand.u32 %v1739, 4294901760
      %v1741 = vsub.f32 %v1739, %v1740
      %v1742 = vand.u32 %v1741, 4294901760
      %1743 = vmatmul.mubr.f32.gmra.mrb[0].mxu0 %v1742
      %v1744 = vpop.f32.mrb[0].mxu0
      %v1745 = vadd.f32 0.0, %v1744
      %v1746 = vpop.f32.mrb[0].mxu0
      %1747 = vmatprep.mubr.f32.mxu0 0.0
      %v1748 = vand.u32 %v1561, 4294901760
      %v1749 = vsub.f32 %v1561, %v1748
      %v1750 = vand.u32 %v1749, 4294901760
      %v1751 = vsub.f32 %v1749, %v1750
      %v1752 = vand.u32 %v1751, 4294901760
      %1753 = vmatmul.mubr.f32.gmra.mrb[0].mxu0 %v1752
      %v1754 = vpop.f32.mrb[0].mxu0
      %v1755 = vadd.f32 0.0, %v1754
      %v1756 = vpop.f32.mrb[0].mxu0
      %1757 = vmatprep.mubr.f32.mxu0 0.0
      %v1758 = vand.u32 %v1562, 4294901760
      %v1759 = vsub.f32 %v1562, %v1758
      %v1760 = vand.u32 %v1759, 4294901760
      %v1761 = vsub.f32 %v1759, %v1760
      %v1762 = vand.u32 %v1761, 4294901760
      %1763 = vmatmul.mubr.f32.gmra.mrb[0].mxu0 %v1762
      %v1764 = vpop.f32.mrb[0].mxu0
      %v1765 = vadd.f32 0.0, %v1764
      %v1766 = vpop.f32.mrb[0].mxu0
      %1767 = vmatprep.mubr.f32.mxu0 0.0
      %v1768 = vand.u32 %v1563, 4294901760
      %v1769 = vsub.f32 %v1563, %v1768
      %v1770 = vand.u32 %v1769, 4294901760
      %v1771 = vsub.f32 %v1769, %v1770
      %v1772 = vand.u32 %v1771, 4294901760
      %1773 = vmatmul.mubr.f32.gmra.mrb[0].mxu0 %v1772
      %v1774 = vpop.f32.mrb[0].mxu0
      %v1775 = vadd.f32 0.0, %v1774
      %v1776 = vpop.f32.mrb[0].mxu0
      %1777 = vmatprep.mubr.f32.mxu0 0.0
      %v1778 = vand.u32 %v1564, 4294901760
      %v1779 = vsub.f32 %v1564, %v1778
      %v1780 = vand.u32 %v1779, 4294901760
      %v1781 = vsub.f32 %v1779, %v1780
      %v1782 = vand.u32 %v1781, 4294901760
      %1783 = vmatmul.mubr.f32.gmra.mrb[0].mxu0 %v1782
      %v1784 = vpop.f32.mrb[0].mxu0
      %v1785 = vadd.f32 0.0, %v1784
      %v1786 = vpop.f32.mrb[0].mxu0
      %1787 = vmatprep.mubr.f32.mxu0 0.0
      %v1788 = vand.u32 %v1565, 4294901760
      %v1789 = vsub.f32 %v1565, %v1788
      %v1790 = vand.u32 %v1789, 4294901760
      %v1791 = vsub.f32 %v1789, %v1790
      %v1792 = vand.u32 %v1791, 4294901760
      %1793 = vmatmul.mubr.f32.gmra.mrb[0].mxu0 %v1792
      %v1794 = vpop.f32.mrb[0].mxu0
      %v1795 = vadd.f32 0.0, %v1794
      %v1796 = vpop.f32.mrb[0].mxu0
      %1797 = vmatprep.mubr.f32.mxu0 0.0
      %v1798 = vand.u32 %v1566, 4294901760
      %v1799 = vsub.f32 %v1566, %v1798
      %v1800 = vand.u32 %v1799, 4294901760
      %v1801 = vsub.f32 %v1799, %v1800
      %v1802 = vand.u32 %v1801, 4294901760
      %1803 = vmatmul.mubr.f32.gmra.mrb[0].mxu0 %v1802
      %v1804 = vpop.f32.mrb[0].mxu0
      %v1805 = vadd.f32 0.0, %v1804
      %v1806 = vpop.f32.mrb[0].mxu0
      %1807 = vdwg.mxu0
      %1808 = vmatprep.subr.mxu0 0.0
      %v1809 = vand.u32 %v1226, 4294901760
      %v1810 = vsub.f32 %v1226, %v1809
      %v1811 = vand.u32 %v1810, 4294901760
      %v1812 = vsub.f32 %v1810, %v1811
      %v1813 = vand.u32 %v1812, 4294901760
      %1814 = vmatpush1.msra.mxu0 %v1813
      %1815 = vmatprep.subr.mxu0 0.0
      %v1816 = vand.u32 %v1227, 4294901760
      %v1817 = vsub.f32 %v1227, %v1816
      %v1818 = vand.u32 %v1817, 4294901760
      %v1819 = vsub.f32 %v1817, %v1818
      %v1820 = vand.u32 %v1819, 4294901760
      %1821 = vmatpush1.msra.mxu0 %v1820
      %1822 = vmatprep.subr.mxu0 0.0
      %v1823 = vand.u32 %v1228, 4294901760
      %v1824 = vsub.f32 %v1228, %v1823
      %v1825 = vand.u32 %v1824, 4294901760
      %v1826 = vsub.f32 %v1824, %v1825
      %v1827 = vand.u32 %v1826, 4294901760
      %1828 = vmatpush1.msra.mxu0 %v1827
      %1829 = vmatprep.subr.mxu0 0.0
      %v1830 = vand.u32 %v1229, 4294901760
      %v1831 = vsub.f32 %v1229, %v1830
      %v1832 = vand.u32 %v1831, 4294901760
      %v1833 = vsub.f32 %v1831, %v1832
      %v1834 = vand.u32 %v1833, 4294901760
      %1835 = vmatpush1.msra.mxu0 %v1834
      %1836 = vmatprep.subr.mxu0 0.0
      %v1837 = vand.u32 %v1230, 4294901760
      %v1838 = vsub.f32 %v1230, %v1837
      %v1839 = vand.u32 %v1838, 4294901760
      %v1840 = vsub.f32 %v1838, %v1839
      %v1841 = vand.u32 %v1840, 4294901760
      %1842 = vmatpush1.msra.mxu0 %v1841
      %1843 = vmatprep.subr.mxu0 0.0
      %v1844 = vand.u32 %v1231, 4294901760
      %v1845 = vsub.f32 %v1231, %v1844
      %v1846 = vand.u32 %v1845, 4294901760
      %v1847 = vsub.f32 %v1845, %v1846
      %v1848 = vand.u32 %v1847, 4294901760
      %1849 = vmatpush1.msra.mxu0 %v1848
      %1850 = vmatprep.subr.mxu0 0.0
      %v1851 = vand.u32 %v1232, 4294901760
      %v1852 = vsub.f32 %v1232, %v1851
      %v1853 = vand.u32 %v1852, 4294901760
      %v1854 = vsub.f32 %v1852, %v1853
      %v1855 = vand.u32 %v1854, 4294901760
      %1856 = vmatpush1.msra.mxu0 %v1855
      %1857 = vmatprep.subr.mxu0 0.0
      %v1858 = vand.u32 %v1233, 4294901760
      %v1859 = vsub.f32 %v1233, %v1858
      %v1860 = vand.u32 %v1859, 4294901760
      %v1861 = vsub.f32 %v1859, %v1860
      %v1862 = vand.u32 %v1861, 4294901760
      %1863 = vmatpush1.msra.mxu0 %v1862
      %1864 = vmatprep.subr.mxu0 0.0
      %v1865 = vand.u32 %v1234, 4294901760
      %v1866 = vsub.f32 %v1234, %v1865
      %v1867 = vand.u32 %v1866, 4294901760
      %v1868 = vsub.f32 %v1866, %v1867
      %v1869 = vand.u32 %v1868, 4294901760
      %1870 = vmatpush1.msra.mxu0 %v1869
      %1871 = vmatprep.subr.mxu0 0.0
      %v1872 = vand.u32 %v1235, 4294901760
      %v1873 = vsub.f32 %v1235, %v1872
      %v1874 = vand.u32 %v1873, 4294901760
      %v1875 = vsub.f32 %v1873, %v1874
      %v1876 = vand.u32 %v1875, 4294901760
      %1877 = vmatpush1.msra.mxu0 %v1876
      %1878 = vmatprep.subr.mxu0 0.0
      %v1879 = vand.u32 %v1236, 4294901760
      %v1880 = vsub.f32 %v1236, %v1879
      %v1881 = vand.u32 %v1880, 4294901760
      %v1882 = vsub.f32 %v1880, %v1881
      %v1883 = vand.u32 %v1882, 4294901760
      %1884 = vmatpush1.msra.mxu0 %v1883
      %1885 = vmatprep.subr.mxu0 0.0
      %v1886 = vand.u32 %v1237, 4294901760
      %v1887 = vsub.f32 %v1237, %v1886
      %v1888 = vand.u32 %v1887, 4294901760
      %v1889 = vsub.f32 %v1887, %v1888
      %v1890 = vand.u32 %v1889, 4294901760
      %1891 = vmatpush1.msra.mxu0 %v1890
      %1892 = vmatprep.subr.mxu0 0.0
      %v1893 = vand.u32 %v1238, 4294901760
      %v1894 = vsub.f32 %v1238, %v1893
      %v1895 = vand.u32 %v1894, 4294901760
      %v1896 = vsub.f32 %v1894, %v1895
      %v1897 = vand.u32 %v1896, 4294901760
      %1898 = vmatpush1.msra.mxu0 %v1897
      %1899 = vmatprep.subr.mxu0 0.0
      %v1900 = vand.u32 %v1239, 4294901760
      %v1901 = vsub.f32 %v1239, %v1900
      %v1902 = vand.u32 %v1901, 4294901760
      %v1903 = vsub.f32 %v1901, %v1902
      %v1904 = vand.u32 %v1903, 4294901760
      %1905 = vmatpush1.msra.mxu0 %v1904
      %1906 = vmatprep.subr.mxu0 0.0
      %v1907 = vand.u32 %v1240, 4294901760
      %v1908 = vsub.f32 %v1240, %v1907
      %v1909 = vand.u32 %v1908, 4294901760
      %v1910 = vsub.f32 %v1908, %v1909
      %v1911 = vand.u32 %v1910, 4294901760
      %1912 = vmatpush1.msra.mxu0 %v1911
      %1913 = vmatprep.subr.mxu0 0.0
      %v1914 = vand.u32 %v1241, 4294901760
      %v1915 = vsub.f32 %v1241, %v1914
      %v1916 = vand.u32 %v1915, 4294901760
      %v1917 = vsub.f32 %v1915, %v1916
      %v1918 = vand.u32 %v1917, 4294901760
      %1919 = vmatpush1.msra.mxu0 %v1918
      %1920 = vmatprep.subr.mxu0 0.0
      %1921 = vmatpush1.msra.mxu0 0.0
      %1922 = vmatprep.subr.mxu0 0.0
      %1923 = vmatpush1.msra.mxu0 0.0
      %1924 = vmatprep.subr.mxu0 0.0
      %1925 = vmatpush1.msra.mxu0 0.0
      %1926 = vmatprep.subr.mxu0 0.0
      %1927 = vmatpush1.msra.mxu0 0.0
      %1928 = vmatprep.subr.mxu0 0.0
      %1929 = vmatpush1.msra.mxu0 0.0
      %1930 = vmatprep.subr.mxu0 0.0
      %1931 = vmatpush1.msra.mxu0 0.0
      %1932 = vmatprep.subr.mxu0 0.0
      %1933 = vmatpush1.msra.mxu0 0.0
      %1934 = vmatprep.subr.mxu0 0.0
      %1935 = vmatpush1.msra.mxu0 0.0
      %1936 = vmatprep.subr.mxu0 0.0
      %1937 = vmatpush1.msra.mxu0 0.0
      %1938 = vmatprep.subr.mxu0 0.0
      %1939 = vmatpush1.msra.mxu0 0.0
      %1940 = vmatprep.subr.mxu0 0.0
      %1941 = vmatpush1.msra.mxu0 0.0
      %1942 = vmatprep.subr.mxu0 0.0
      %1943 = vmatpush1.msra.mxu0 0.0
      %1944 = vmatprep.subr.mxu0 0.0
      %1945 = vmatpush1.msra.mxu0 0.0
      %1946 = vmatprep.subr.mxu0 0.0
      %1947 = vmatpush1.msra.mxu0 0.0
      %1948 = vmatprep.subr.mxu0 0.0
      %1949 = vmatpush1.msra.mxu0 0.0
      %1950 = vmatprep.subr.mxu0 0.0
      %1951 = vmatpush1.msra.mxu0 0.0
      %1952 = vmatprep.mubr.f32.mxu0 0.0
      %v1953 = vand.u32 %v1551, 4294901760
      %1954 = vmatmul.mubr.f32.gmra.mrb[0].mxu0 %v1953
      %v1955 = vpop.f32.mrb[0].mxu0
      %v1956 = vadd.f32 %v1655, %v1955
      %v1957 = vpop.f32.mrb[0].mxu0
      %1958 = vmatprep.mubr.f32.mxu0 0.0
      %v1959 = vand.u32 %v1552, 4294901760
      %1960 = vmatmul.mubr.f32.gmra.mrb[0].mxu0 %v1959
      %v1961 = vpop.f32.mrb[0].mxu0
      %v1962 = vadd.f32 %v1665, %v1961
      %v1963 = vpop.f32.mrb[0].mxu0
      %1964 = vmatprep.mubr.f32.mxu0 0.0
      %v1965 = vand.u32 %v1553, 4294901760
      %1966 = vmatmul.mubr.f32.gmra.mrb[0].mxu0 %v1965
      %v1967 = vpop.f32.mrb[0].mxu0
      %v1968 = vadd.f32 %v1675, %v1967
      %v1969 = vpop.f32.mrb[0].mxu0
      %1970 = vmatprep.mubr.f32.mxu0 0.0
      %v1971 = vand.u32 %v1554, 4294901760
      %1972 = vmatmul.mubr.f32.gmra.mrb[0].mxu0 %v1971
      %v1973 = vpop.f32.mrb[0].mxu0
      %v1974 = vadd.f32 %v1685, %v1973
      %v1975 = vpop.f32.mrb[0].mxu0
      %1976 = vmatprep.mubr.f32.mxu0 0.0
      %v1977 = vand.u32 %v1555, 4294901760
      %1978 = vmatmul.mubr.f32.gmra.mrb[0].mxu0 %v1977
      %v1979 = vpop.f32.mrb[0].mxu0
      %v1980 = vadd.f32 %v1695, %v1979
      %v1981 = vpop.f32.mrb[0].mxu0
      %1982 = vmatprep.mubr.f32.mxu0 0.0
      %v1983 = vand.u32 %v1556, 4294901760
      %1984 = vmatmul.mubr.f32.gmra.mrb[0].mxu0 %v1983
      %v1985 = vpop.f32.mrb[0].mxu0
      %v1986 = vadd.f32 %v1705, %v1985
      %v1987 = vpop.f32.mrb[0].mxu0
      %1988 = vmatprep.mubr.f32.mxu0 0.0
      %v1989 = vand.u32 %v1557, 4294901760
      %1990 = vmatmul.mubr.f32.gmra.mrb[0].mxu0 %v1989
      %v1991 = vpop.f32.mrb[0].mxu0
      %v1992 = vadd.f32 %v1715, %v1991
      %v1993 = vpop.f32.mrb[0].mxu0
      %1994 = vmatprep.mubr.f32.mxu0 0.0
      %v1995 = vand.u32 %v1558, 4294901760
      %1996 = vmatmul.mubr.f32.gmra.mrb[0].mxu0 %v1995
      %v1997 = vpop.f32.mrb[0].mxu0
      %v1998 = vadd.f32 %v1725, %v1997
      %v1999 = vpop.f32.mrb[0].mxu0
      %2000 = vmatprep.mubr.f32.mxu0 0.0
      %v2001 = vand.u32 %v1559, 4294901760
      %2002 = vmatmul.mubr.f32.gmra.mrb[0].mxu0 %v2001
      %v2003 = vpop.f32.mrb[0].mxu0
      %v2004 = vadd.f32 %v1735, %v2003
      %v2005 = vpop.f32.mrb[0].mxu0
      %2006 = vmatprep.mubr.f32.mxu0 0.0
      %v2007 = vand.u32 %v1560, 4294901760
      %2008 = vmatmul.mubr.f32.gmra.mrb[0].mxu0 %v2007
      %v2009 = vpop.f32.mrb[0].mxu0
      %v2010 = vadd.f32 %v1745, %v2009
      %v2011 = vpop.f32.mrb[0].mxu0
      %2012 = vmatprep.mubr.f32.mxu0 0.0
      %v2013 = vand.u32 %v1561, 4294901760
      %2014 = vmatmul.mubr.f32.gmra.mrb[0].mxu0 %v2013
      %v2015 = vpop.f32.mrb[0].mxu0
      %v2016 = vadd.f32 %v1755, %v2015
      %v2017 = vpop.f32.mrb[0].mxu0
      %2018 = vmatprep.mubr.f32.mxu0 0.0
      %v2019 = vand.u32 %v1562, 4294901760
      %2020 = vmatmul.mubr.f32.gmra.mrb[0].mxu0 %v2019
      %v2021 = vpop.f32.mrb[0].mxu0
      %v2022 = vadd.f32 %v1765, %v2021
      %v2023 = vpop.f32.mrb[0].mxu0
      %2024 = vmatprep.mubr.f32.mxu0 0.0
      %v2025 = vand.u32 %v1563, 4294901760
      %2026 = vmatmul.mubr.f32.gmra.mrb[0].mxu0 %v2025
      %v2027 = vpop.f32.mrb[0].mxu0
      %v2028 = vadd.f32 %v1775, %v2027
      %v2029 = vpop.f32.mrb[0].mxu0
      %2030 = vmatprep.mubr.f32.mxu0 0.0
      %v2031 = vand.u32 %v1564, 4294901760
      %2032 = vmatmul.mubr.f32.gmra.mrb[0].mxu0 %v2031
      %v2033 = vpop.f32.mrb[0].mxu0
      %v2034 = vadd.f32 %v1785, %v2033
      %v2035 = vpop.f32.mrb[0].mxu0
      %2036 = vmatprep.mubr.f32.mxu0 0.0
      %v2037 = vand.u32 %v1565, 4294901760
      %2038 = vmatmul.mubr.f32.gmra.mrb[0].mxu0 %v2037
      %v2039 = vpop.f32.mrb[0].mxu0
      %v2040 = vadd.f32 %v1795, %v2039
      %v2041 = vpop.f32.mrb[0].mxu0
      %2042 = vmatprep.mubr.f32.mxu0 0.0
      %v2043 = vand.u32 %v1566, 4294901760
      %2044 = vmatmul.mubr.f32.gmra.mrb[0].mxu0 %v2043
      %v2045 = vpop.f32.mrb[0].mxu0
      %v2046 = vadd.f32 %v1805, %v2045
      %v2047 = vpop.f32.mrb[0].mxu0
      %2048 = vdwg.mxu0
      %2049 = vmatprep.subr.mxu0 0.0
      %v2050 = vand.u32 %v1226, 4294901760
      %v2051 = vsub.f32 %v1226, %v2050
      %2052 = vmatpush1.msra.mxu0 %v2051
      %2053 = vmatprep.subr.mxu0 0.0
      %v2054 = vand.u32 %v1227, 4294901760
      %v2055 = vsub.f32 %v1227, %v2054
      %2056 = vmatpush1.msra.mxu0 %v2055
      %2057 = vmatprep.subr.mxu0 0.0
      %v2058 = vand.u32 %v1228, 4294901760
      %v2059 = vsub.f32 %v1228, %v2058
      %2060 = vmatpush1.msra.mxu0 %v2059
      %2061 = vmatprep.subr.mxu0 0.0
      %v2062 = vand.u32 %v1229, 4294901760
      %v2063 = vsub.f32 %v1229, %v2062
      %2064 = vmatpush1.msra.mxu0 %v2063
      %2065 = vmatprep.subr.mxu0 0.0
      %v2066 = vand.u32 %v1230, 4294901760
      %v2067 = vsub.f32 %v1230, %v2066
      %2068 = vmatpush1.msra.mxu0 %v2067
      %2069 = vmatprep.subr.mxu0 0.0
      %v2070 = vand.u32 %v1231, 4294901760
      %v2071 = vsub.f32 %v1231, %v2070
      %2072 = vmatpush1.msra.mxu0 %v2071
      %2073 = vmatprep.subr.mxu0 0.0
      %v2074 = vand.u32 %v1232, 4294901760
      %v2075 = vsub.f32 %v1232, %v2074
      %2076 = vmatpush1.msra.mxu0 %v2075
      %2077 = vmatprep.subr.mxu0 0.0
      %v2078 = vand.u32 %v1233, 4294901760
      %v2079 = vsub.f32 %v1233, %v2078
      %2080 = vmatpush1.msra.mxu0 %v2079
      %2081 = vmatprep.subr.mxu0 0.0
      %v2082 = vand.u32 %v1234, 4294901760
      %v2083 = vsub.f32 %v1234, %v2082
      %2084 = vmatpush1.msra.mxu0 %v2083
      %2085 = vmatprep.subr.mxu0 0.0
      %v2086 = vand.u32 %v1235, 4294901760
      %v2087 = vsub.f32 %v1235, %v2086
      %2088 = vmatpush1.msra.mxu0 %v2087
      %2089 = vmatprep.subr.mxu0 0.0
      %v2090 = vand.u32 %v1236, 4294901760
      %v2091 = vsub.f32 %v1236, %v2090
      %2092 = vmatpush1.msra.mxu0 %v2091
      %2093 = vmatprep.subr.mxu0 0.0
      %v2094 = vand.u32 %v1237, 4294901760
      %v2095 = vsub.f32 %v1237, %v2094
      %2096 = vmatpush1.msra.mxu0 %v2095
      %2097 = vmatprep.subr.mxu0 0.0
      %v2098 = vand.u32 %v1238, 4294901760
      %v2099 = vsub.f32 %v1238, %v2098
      %2100 = vmatpush1.msra.mxu0 %v2099
      %2101 = vmatprep.subr.mxu0 0.0
      %v2102 = vand.u32 %v1239, 4294901760
      %v2103 = vsub.f32 %v1239, %v2102
      %2104 = vmatpush1.msra.mxu0 %v2103
      %2105 = vmatprep.subr.mxu0 0.0
      %v2106 = vand.u32 %v1240, 4294901760
      %v2107 = vsub.f32 %v1240, %v2106
      %2108 = vmatpush1.msra.mxu0 %v2107
      %2109 = vmatprep.subr.mxu0 0.0
      %v2110 = vand.u32 %v1241, 4294901760
      %v2111 = vsub.f32 %v1241, %v2110
      %2112 = vmatpush1.msra.mxu0 %v2111
      %2113 = vmatprep.subr.mxu0 0.0
      %2114 = vmatpush1.msra.mxu0 0.0
      %2115 = vmatprep.subr.mxu0 0.0
      %2116 = vmatpush1.msra.mxu0 0.0
      %2117 = vmatprep.subr.mxu0 0.0
      %2118 = vmatpush1.msra.mxu0 0.0
      %2119 = vmatprep.subr.mxu0 0.0
      %2120 = vmatpush1.msra.mxu0 0.0
      %2121 = vmatprep.subr.mxu0 0.0
      %2122 = vmatpush1.msra.mxu0 0.0
      %2123 = vmatprep.subr.mxu0 0.0
      %2124 = vmatpush1.msra.mxu0 0.0
      %2125 = vmatprep.subr.mxu0 0.0
      %2126 = vmatpush1.msra.mxu0 0.0
      %2127 = vmatprep.subr.mxu0 0.0
      %2128 = vmatpush1.msra.mxu0 0.0
      %2129 = vmatprep.subr.mxu0 0.0
      %2130 = vmatpush1.msra.mxu0 0.0
      %2131 = vmatprep.subr.mxu0 0.0
      %2132 = vmatpush1.msra.mxu0 0.0
      %2133 = vmatprep.subr.mxu0 0.0
      %2134 = vmatpush1.msra.mxu0 0.0
      %2135 = vmatprep.subr.mxu0 0.0
      %2136 = vmatpush1.msra.mxu0 0.0
      %2137 = vmatprep.subr.mxu0 0.0
      %2138 = vmatpush1.msra.mxu0 0.0
      %2139 = vmatprep.subr.mxu0 0.0
      %2140 = vmatpush1.msra.mxu0 0.0
      %2141 = vmatprep.subr.mxu0 0.0
      %2142 = vmatpush1.msra.mxu0 0.0
      %2143 = vmatprep.subr.mxu0 0.0
      %2144 = vmatpush1.msra.mxu0 0.0
      %2145 = vmatprep.mubr.f32.mxu0 0.0
      %v2146 = vand.u32 %v1551, 4294901760
      %v2147 = vsub.f32 %v1551, %v2146
      %2148 = vmatmul.mubr.f32.gmra.mrb[0].mxu0 %v2147
      %v2149 = vpop.f32.mrb[0].mxu0
      %v2150 = vadd.f32 %v1956, %v2149
      %v2151 = vpop.f32.mrb[0].mxu0
      %2152 = vmatprep.mubr.f32.mxu0 0.0
      %v2153 = vand.u32 %v1552, 4294901760
      %v2154 = vsub.f32 %v1552, %v2153
      %2155 = vmatmul.mubr.f32.gmra.mrb[0].mxu0 %v2154
      %v2156 = vpop.f32.mrb[0].mxu0
      %v2157 = vadd.f32 %v1962, %v2156
      %v2158 = vpop.f32.mrb[0].mxu0
      %2159 = vmatprep.mubr.f32.mxu0 0.0
      %v2160 = vand.u32 %v1553, 4294901760
      %v2161 = vsub.f32 %v1553, %v2160
      %2162 = vmatmul.mubr.f32.gmra.mrb[0].mxu0 %v2161
      %v2163 = vpop.f32.mrb[0].mxu0
      %v2164 = vadd.f32 %v1968, %v2163
      %v2165 = vpop.f32.mrb[0].mxu0
      %2166 = vmatprep.mubr.f32.mxu0 0.0
      %v2167 = vand.u32 %v1554, 4294901760
      %v2168 = vsub.f32 %v1554, %v2167
      %2169 = vmatmul.mubr.f32.gmra.mrb[0].mxu0 %v2168
      %v2170 = vpop.f32.mrb[0].mxu0
      %v2171 = vadd.f32 %v1974, %v2170
      %v2172 = vpop.f32.mrb[0].mxu0
      %2173 = vmatprep.mubr.f32.mxu0 0.0
      %v2174 = vand.u32 %v1555, 4294901760
      %v2175 = vsub.f32 %v1555, %v2174
      %2176 = vmatmul.mubr.f32.gmra.mrb[0].mxu0 %v2175
      %v2177 = vpop.f32.mrb[0].mxu0
      %v2178 = vadd.f32 %v1980, %v2177
      %v2179 = vpop.f32.mrb[0].mxu0
      %2180 = vmatprep.mubr.f32.mxu0 0.0
      %v2181 = vand.u32 %v1556, 4294901760
      %v2182 = vsub.f32 %v1556, %v2181
      %2183 = vmatmul.mubr.f32.gmra.mrb[0].mxu0 %v2182
      %v2184 = vpop.f32.mrb[0].mxu0
      %v2185 = vadd.f32 %v1986, %v2184
      %v2186 = vpop.f32.mrb[0].mxu0
      %2187 = vmatprep.mubr.f32.mxu0 0.0
      %v2188 = vand.u32 %v1557, 4294901760
      %v2189 = vsub.f32 %v1557, %v2188
      %2190 = vmatmul.mubr.f32.gmra.mrb[0].mxu0 %v2189
      %v2191 = vpop.f32.mrb[0].mxu0
      %v2192 = vadd.f32 %v1992, %v2191
      %v2193 = vpop.f32.mrb[0].mxu0
      %2194 = vmatprep.mubr.f32.mxu0 0.0
      %v2195 = vand.u32 %v1558, 4294901760
      %v2196 = vsub.f32 %v1558, %v2195
      %2197 = vmatmul.mubr.f32.gmra.mrb[0].mxu0 %v2196
      %v2198 = vpop.f32.mrb[0].mxu0
      %v2199 = vadd.f32 %v1998, %v2198
      %v2200 = vpop.f32.mrb[0].mxu0
      %2201 = vmatprep.mubr.f32.mxu0 0.0
      %v2202 = vand.u32 %v1559, 4294901760
      %v2203 = vsub.f32 %v1559, %v2202
      %2204 = vmatmul.mubr.f32.gmra.mrb[0].mxu0 %v2203
      %v2205 = vpop.f32.mrb[0].mxu0
      %v2206 = vadd.f32 %v2004, %v2205
      %v2207 = vpop.f32.mrb[0].mxu0
      %2208 = vmatprep.mubr.f32.mxu0 0.0
      %v2209 = vand.u32 %v1560, 4294901760
      %v2210 = vsub.f32 %v1560, %v2209
      %2211 = vmatmul.mubr.f32.gmra.mrb[0].mxu0 %v2210
      %v2212 = vpop.f32.mrb[0].mxu0
      %v2213 = vadd.f32 %v2010, %v2212
      %v2214 = vpop.f32.mrb[0].mxu0
      %2215 = vmatprep.mubr.f32.mxu0 0.0
      %v2216 = vand.u32 %v1561, 4294901760
      %v2217 = vsub.f32 %v1561, %v2216
      %2218 = vmatmul.mubr.f32.gmra.mrb[0].mxu0 %v2217
      %v2219 = vpop.f32.mrb[0].mxu0
      %v2220 = vadd.f32 %v2016, %v2219
      %v2221 = vpop.f32.mrb[0].mxu0
      %2222 = vmatprep.mubr.f32.mxu0 0.0
      %v2223 = vand.u32 %v1562, 4294901760
      %v2224 = vsub.f32 %v1562, %v2223
      %2225 = vmatmul.mubr.f32.gmra.mrb[0].mxu0 %v2224
      %v2226 = vpop.f32.mrb[0].mxu0
      %v2227 = vadd.f32 %v2022, %v2226
      %v2228 = vpop.f32.mrb[0].mxu0
      %2229 = vmatprep.mubr.f32.mxu0 0.0
      %v2230 = vand.u32 %v1563, 4294901760
      %v2231 = vsub.f32 %v1563, %v2230
      %2232 = vmatmul.mubr.f32.gmra.mrb[0].mxu0 %v2231
      %v2233 = vpop.f32.mrb[0].mxu0
      %v2234 = vadd.f32 %v2028, %v2233
      %v2235 = vpop.f32.mrb[0].mxu0
      %2236 = vmatprep.mubr.f32.mxu0 0.0
      %v2237 = vand.u32 %v1564, 4294901760
      %v2238 = vsub.f32 %v1564, %v2237
      %2239 = vmatmul.mubr.f32.gmra.mrb[0].mxu0 %v2238
      %v2240 = vpop.f32.mrb[0].mxu0
      %v2241 = vadd.f32 %v2034, %v2240
      %v2242 = vpop.f32.mrb[0].mxu0
      %2243 = vmatprep.mubr.f32.mxu0 0.0
      %v2244 = vand.u32 %v1565, 4294901760
      %v2245 = vsub.f32 %v1565, %v2244
      %2246 = vmatmul.mubr.f32.gmra.mrb[0].mxu0 %v2245
      %v2247 = vpop.f32.mrb[0].mxu0
      %v2248 = vadd.f32 %v2040, %v2247
      %v2249 = vpop.f32.mrb[0].mxu0
      %2250 = vmatprep.mubr.f32.mxu0 0.0
      %v2251 = vand.u32 %v1566, 4294901760
      %v2252 = vsub.f32 %v1566, %v2251
      %2253 = vmatmul.mubr.f32.gmra.mrb[0].mxu0 %v2252
      %v2254 = vpop.f32.mrb[0].mxu0
      %v2255 = vadd.f32 %v2046, %v2254
      %v2256 = vpop.f32.mrb[0].mxu0
      %2257 = vdwg.mxu0
      %2258 = vmatprep.subr.mxu0 0.0
      %v2259 = vand.u32 %v1226, 4294901760
      %2260 = vmatpush1.msra.mxu0 %v2259
      %2261 = vmatprep.subr.mxu0 0.0
      %v2262 = vand.u32 %v1227, 4294901760
      %2263 = vmatpush1.msra.mxu0 %v2262
      %2264 = vmatprep.subr.mxu0 0.0
      %v2265 = vand.u32 %v1228, 4294901760
      %2266 = vmatpush1.msra.mxu0 %v2265
      %2267 = vmatprep.subr.mxu0 0.0
      %v2268 = vand.u32 %v1229, 4294901760
      %2269 = vmatpush1.msra.mxu0 %v2268
      %2270 = vmatprep.subr.mxu0 0.0
      %v2271 = vand.u32 %v1230, 4294901760
      %2272 = vmatpush1.msra.mxu0 %v2271
      %2273 = vmatprep.subr.mxu0 0.0
      %v2274 = vand.u32 %v1231, 4294901760
      %2275 = vmatpush1.msra.mxu0 %v2274
      %2276 = vmatprep.subr.mxu0 0.0
      %v2277 = vand.u32 %v1232, 4294901760
      %2278 = vmatpush1.msra.mxu0 %v2277
      %2279 = vmatprep.subr.mxu0 0.0
      %v2280 = vand.u32 %v1233, 4294901760
      %2281 = vmatpush1.msra.mxu0 %v2280
      %2282 = vmatprep.subr.mxu0 0.0
      %v2283 = vand.u32 %v1234, 4294901760
      %2284 = vmatpush1.msra.mxu0 %v2283
      %2285 = vmatprep.subr.mxu0 0.0
      %v2286 = vand.u32 %v1235, 4294901760
      %2287 = vmatpush1.msra.mxu0 %v2286
      %2288 = vmatprep.subr.mxu0 0.0
      %v2289 = vand.u32 %v1236, 4294901760
      %2290 = vmatpush1.msra.mxu0 %v2289
      %2291 = vmatprep.subr.mxu0 0.0
      %v2292 = vand.u32 %v1237, 4294901760
      %2293 = vmatpush1.msra.mxu0 %v2292
      %2294 = vmatprep.subr.mxu0 0.0
      %v2295 = vand.u32 %v1238, 4294901760
      %2296 = vmatpush1.msra.mxu0 %v2295
      %2297 = vmatprep.subr.mxu0 0.0
      %v2298 = vand.u32 %v1239, 4294901760
      %2299 = vmatpush1.msra.mxu0 %v2298
      %2300 = vmatprep.subr.mxu0 0.0
      %v2301 = vand.u32 %v1240, 4294901760
      %2302 = vmatpush1.msra.mxu0 %v2301
      %2303 = vmatprep.subr.mxu0 0.0
      %v2304 = vand.u32 %v1241, 4294901760
      %2305 = vmatpush1.msra.mxu0 %v2304
      %2306 = vmatprep.subr.mxu0 0.0
      %2307 = vmatpush1.msra.mxu0 0.0
      %2308 = vmatprep.subr.mxu0 0.0
      %2309 = vmatpush1.msra.mxu0 0.0
      %2310 = vmatprep.subr.mxu0 0.0
      %2311 = vmatpush1.msra.mxu0 0.0
      %2312 = vmatprep.subr.mxu0 0.0
      %2313 = vmatpush1.msra.mxu0 0.0
      %2314 = vmatprep.subr.mxu0 0.0
      %2315 = vmatpush1.msra.mxu0 0.0
      %2316 = vmatprep.subr.mxu0 0.0
      %2317 = vmatpush1.msra.mxu0 0.0
      %2318 = vmatprep.subr.mxu0 0.0
      %2319 = vmatpush1.msra.mxu0 0.0
      %2320 = vmatprep.subr.mxu0 0.0
      %2321 = vmatpush1.msra.mxu0 0.0
      %2322 = vmatprep.subr.mxu0 0.0
      %2323 = vmatpush1.msra.mxu0 0.0
      %2324 = vmatprep.subr.mxu0 0.0
      %2325 = vmatpush1.msra.mxu0 0.0
      %2326 = vmatprep.subr.mxu0 0.0
      %2327 = vmatpush1.msra.mxu0 0.0
      %2328 = vmatprep.subr.mxu0 0.0
      %2329 = vmatpush1.msra.mxu0 0.0
      %2330 = vmatprep.subr.mxu0 0.0
      %2331 = vmatpush1.msra.mxu0 0.0
      %2332 = vmatprep.subr.mxu0 0.0
      %2333 = vmatpush1.msra.mxu0 0.0
      %2334 = vmatprep.subr.mxu0 0.0
      %2335 = vmatpush1.msra.mxu0 0.0
      %2336 = vmatprep.subr.mxu0 0.0
      %2337 = vmatpush1.msra.mxu0 0.0
      %2338 = vmatprep.mubr.f32.mxu0 0.0
      %v2339 = vand.u32 %v1551, 4294901760
      %v2340 = vsub.f32 %v1551, %v2339
      %v2341 = vand.u32 %v2340, 4294901760
      %2342 = vmatmul.mubr.f32.gmra.mrb[0].mxu0 %v2341
      %v2343 = vpop.f32.mrb[0].mxu0
      %v2344 = vadd.f32 %v2150, %v2343
      %v2345 = vpop.f32.mrb[0].mxu0
      %2346 = vmatprep.mubr.f32.mxu0 0.0
      %v2347 = vand.u32 %v1552, 4294901760
      %v2348 = vsub.f32 %v1552, %v2347
      %v2349 = vand.u32 %v2348, 4294901760
      %2350 = vmatmul.mubr.f32.gmra.mrb[0].mxu0 %v2349
      %v2351 = vpop.f32.mrb[0].mxu0
      %v2352 = vadd.f32 %v2157, %v2351
      %v2353 = vpop.f32.mrb[0].mxu0
      %2354 = vmatprep.mubr.f32.mxu0 0.0
      %v2355 = vand.u32 %v1553, 4294901760
      %v2356 = vsub.f32 %v1553, %v2355
      %v2357 = vand.u32 %v2356, 4294901760
      %2358 = vmatmul.mubr.f32.gmra.mrb[0].mxu0 %v2357
      %v2359 = vpop.f32.mrb[0].mxu0
      %v2360 = vadd.f32 %v2164, %v2359
      %v2361 = vpop.f32.mrb[0].mxu0
      %2362 = vmatprep.mubr.f32.mxu0 0.0
      %v2363 = vand.u32 %v1554, 4294901760
      %v2364 = vsub.f32 %v1554, %v2363
      %v2365 = vand.u32 %v2364, 4294901760
      %2366 = vmatmul.mubr.f32.gmra.mrb[0].mxu0 %v2365
      %v2367 = vpop.f32.mrb[0].mxu0
      %v2368 = vadd.f32 %v2171, %v2367
      %v2369 = vpop.f32.mrb[0].mxu0
      %2370 = vmatprep.mubr.f32.mxu0 0.0
      %v2371 = vand.u32 %v1555, 4294901760
      %v2372 = vsub.f32 %v1555, %v2371
      %v2373 = vand.u32 %v2372, 4294901760
      %2374 = vmatmul.mubr.f32.gmra.mrb[0].mxu0 %v2373
      %v2375 = vpop.f32.mrb[0].mxu0
      %v2376 = vadd.f32 %v2178, %v2375
      %v2377 = vpop.f32.mrb[0].mxu0
      %2378 = vmatprep.mubr.f32.mxu0 0.0
      %v2379 = vand.u32 %v1556, 4294901760
      %v2380 = vsub.f32 %v1556, %v2379
      %v2381 = vand.u32 %v2380, 4294901760
      %2382 = vmatmul.mubr.f32.gmra.mrb[0].mxu0 %v2381
      %v2383 = vpop.f32.mrb[0].mxu0
      %v2384 = vadd.f32 %v2185, %v2383
      %v2385 = vpop.f32.mrb[0].mxu0
      %2386 = vmatprep.mubr.f32.mxu0 0.0
      %v2387 = vand.u32 %v1557, 4294901760
      %v2388 = vsub.f32 %v1557, %v2387
      %v2389 = vand.u32 %v2388, 4294901760
      %2390 = vmatmul.mubr.f32.gmra.mrb[0].mxu0 %v2389
      %v2391 = vpop.f32.mrb[0].mxu0
      %v2392 = vadd.f32 %v2192, %v2391
      %v2393 = vpop.f32.mrb[0].mxu0
      %2394 = vmatprep.mubr.f32.mxu0 0.0
      %v2395 = vand.u32 %v1558, 4294901760
      %v2396 = vsub.f32 %v1558, %v2395
      %v2397 = vand.u32 %v2396, 4294901760
      %2398 = vmatmul.mubr.f32.gmra.mrb[0].mxu0 %v2397
      %v2399 = vpop.f32.mrb[0].mxu0
      %v2400 = vadd.f32 %v2199, %v2399
      %v2401 = vpop.f32.mrb[0].mxu0
      %2402 = vmatprep.mubr.f32.mxu0 0.0
      %v2403 = vand.u32 %v1559, 4294901760
      %v2404 = vsub.f32 %v1559, %v2403
      %v2405 = vand.u32 %v2404, 4294901760
      %2406 = vmatmul.mubr.f32.gmra.mrb[0].mxu0 %v2405
      %v2407 = vpop.f32.mrb[0].mxu0
      %v2408 = vadd.f32 %v2206, %v2407
      %v2409 = vpop.f32.mrb[0].mxu0
      %2410 = vmatprep.mubr.f32.mxu0 0.0
      %v2411 = vand.u32 %v1560, 4294901760
      %v2412 = vsub.f32 %v1560, %v2411
      %v2413 = vand.u32 %v2412, 4294901760
      %2414 = vmatmul.mubr.f32.gmra.mrb[0].mxu0 %v2413
      %v2415 = vpop.f32.mrb[0].mxu0
      %v2416 = vadd.f32 %v2213, %v2415
      %v2417 = vpop.f32.mrb[0].mxu0
      %2418 = vmatprep.mubr.f32.mxu0 0.0
      %v2419 = vand.u32 %v1561, 4294901760
      %v2420 = vsub.f32 %v1561, %v2419
      %v2421 = vand.u32 %v2420, 4294901760
      %2422 = vmatmul.mubr.f32.gmra.mrb[0].mxu0 %v2421
      %v2423 = vpop.f32.mrb[0].mxu0
      %v2424 = vadd.f32 %v2220, %v2423
      %v2425 = vpop.f32.mrb[0].mxu0
      %2426 = vmatprep.mubr.f32.mxu0 0.0
      %v2427 = vand.u32 %v1562, 4294901760
      %v2428 = vsub.f32 %v1562, %v2427
      %v2429 = vand.u32 %v2428, 4294901760
      %2430 = vmatmul.mubr.f32.gmra.mrb[0].mxu0 %v2429
      %v2431 = vpop.f32.mrb[0].mxu0
      %v2432 = vadd.f32 %v2227, %v2431
      %v2433 = vpop.f32.mrb[0].mxu0
      %2434 = vmatprep.mubr.f32.mxu0 0.0
      %v2435 = vand.u32 %v1563, 4294901760
      %v2436 = vsub.f32 %v1563, %v2435
      %v2437 = vand.u32 %v2436, 4294901760
      %2438 = vmatmul.mubr.f32.gmra.mrb[0].mxu0 %v2437
      %v2439 = vpop.f32.mrb[0].mxu0
      %v2440 = vadd.f32 %v2234, %v2439
      %v2441 = vpop.f32.mrb[0].mxu0
      %2442 = vmatprep.mubr.f32.mxu0 0.0
      %v2443 = vand.u32 %v1564, 4294901760
      %v2444 = vsub.f32 %v1564, %v2443
      %v2445 = vand.u32 %v2444, 4294901760
      %2446 = vmatmul.mubr.f32.gmra.mrb[0].mxu0 %v2445
      %v2447 = vpop.f32.mrb[0].mxu0
      %v2448 = vadd.f32 %v2241, %v2447
      %v2449 = vpop.f32.mrb[0].mxu0
      %2450 = vmatprep.mubr.f32.mxu0 0.0
      %v2451 = vand.u32 %v1565, 4294901760
      %v2452 = vsub.f32 %v1565, %v2451
      %v2453 = vand.u32 %v2452, 4294901760
      %2454 = vmatmul.mubr.f32.gmra.mrb[0].mxu0 %v2453
      %v2455 = vpop.f32.mrb[0].mxu0
      %v2456 = vadd.f32 %v2248, %v2455
      %v2457 = vpop.f32.mrb[0].mxu0
      %2458 = vmatprep.mubr.f32.mxu0 0.0
      %v2459 = vand.u32 %v1566, 4294901760
      %v2460 = vsub.f32 %v1566, %v2459
      %v2461 = vand.u32 %v2460, 4294901760
      %2462 = vmatmul.mubr.f32.gmra.mrb[0].mxu0 %v2461
      %v2463 = vpop.f32.mrb[0].mxu0
      %v2464 = vadd.f32 %v2255, %v2463
      %v2465 = vpop.f32.mrb[0].mxu0
      %2466 = vdwg.mxu0
      %2467 = vmatprep.subr.mxu0 0.0
      %v2468 = vand.u32 %v1226, 4294901760
      %v2469 = vsub.f32 %v1226, %v2468
      %v2470 = vand.u32 %v2469, 4294901760
      %2471 = vmatpush1.msra.mxu0 %v2470
      %2472 = vmatprep.subr.mxu0 0.0
      %v2473 = vand.u32 %v1227, 4294901760
      %v2474 = vsub.f32 %v1227, %v2473
      %v2475 = vand.u32 %v2474, 4294901760
      %2476 = vmatpush1.msra.mxu0 %v2475
      %2477 = vmatprep.subr.mxu0 0.0
      %v2478 = vand.u32 %v1228, 4294901760
      %v2479 = vsub.f32 %v1228, %v2478
      %v2480 = vand.u32 %v2479, 4294901760
      %2481 = vmatpush1.msra.mxu0 %v2480
      %2482 = vmatprep.subr.mxu0 0.0
      %v2483 = vand.u32 %v1229, 4294901760
      %v2484 = vsub.f32 %v1229, %v2483
      %v2485 = vand.u32 %v2484, 4294901760
      %2486 = vmatpush1.msra.mxu0 %v2485
      %2487 = vmatprep.subr.mxu0 0.0
      %v2488 = vand.u32 %v1230, 4294901760
      %v2489 = vsub.f32 %v1230, %v2488
      %v2490 = vand.u32 %v2489, 4294901760
      %2491 = vmatpush1.msra.mxu0 %v2490
      %2492 = vmatprep.subr.mxu0 0.0
      %v2493 = vand.u32 %v1231, 4294901760
      %v2494 = vsub.f32 %v1231, %v2493
      %v2495 = vand.u32 %v2494, 4294901760
      %2496 = vmatpush1.msra.mxu0 %v2495
      %2497 = vmatprep.subr.mxu0 0.0
      %v2498 = vand.u32 %v1232, 4294901760
      %v2499 = vsub.f32 %v1232, %v2498
      %v2500 = vand.u32 %v2499, 4294901760
      %2501 = vmatpush1.msra.mxu0 %v2500
      %2502 = vmatprep.subr.mxu0 0.0
      %v2503 = vand.u32 %v1233, 4294901760
      %v2504 = vsub.f32 %v1233, %v2503
      %v2505 = vand.u32 %v2504, 4294901760
      %2506 = vmatpush1.msra.mxu0 %v2505
      %2507 = vmatprep.subr.mxu0 0.0
      %v2508 = vand.u32 %v1234, 4294901760
      %v2509 = vsub.f32 %v1234, %v2508
      %v2510 = vand.u32 %v2509, 4294901760
      %2511 = vmatpush1.msra.mxu0 %v2510
      %2512 = vmatprep.subr.mxu0 0.0
      %v2513 = vand.u32 %v1235, 4294901760
      %v2514 = vsub.f32 %v1235, %v2513
      %v2515 = vand.u32 %v2514, 4294901760
      %2516 = vmatpush1.msra.mxu0 %v2515
      %2517 = vmatprep.subr.mxu0 0.0
      %v2518 = vand.u32 %v1236, 4294901760
      %v2519 = vsub.f32 %v1236, %v2518
      %v2520 = vand.u32 %v2519, 4294901760
      %2521 = vmatpush1.msra.mxu0 %v2520
      %2522 = vmatprep.subr.mxu0 0.0
      %v2523 = vand.u32 %v1237, 4294901760
      %v2524 = vsub.f32 %v1237, %v2523
      %v2525 = vand.u32 %v2524, 4294901760
      %2526 = vmatpush1.msra.mxu0 %v2525
      %2527 = vmatprep.subr.mxu0 0.0
      %v2528 = vand.u32 %v1238, 4294901760
      %v2529 = vsub.f32 %v1238, %v2528
      %v2530 = vand.u32 %v2529, 4294901760
      %2531 = vmatpush1.msra.mxu0 %v2530
      %2532 = vmatprep.subr.mxu0 0.0
      %v2533 = vand.u32 %v1239, 4294901760
      %v2534 = vsub.f32 %v1239, %v2533
      %v2535 = vand.u32 %v2534, 4294901760
      %2536 = vmatpush1.msra.mxu0 %v2535
      %2537 = vmatprep.subr.mxu0 0.0
      %v2538 = vand.u32 %v1240, 4294901760
      %v2539 = vsub.f32 %v1240, %v2538
      %v2540 = vand.u32 %v2539, 4294901760
      %2541 = vmatpush1.msra.mxu0 %v2540
      %2542 = vmatprep.subr.mxu0 0.0
      %v2543 = vand.u32 %v1241, 4294901760
      %v2544 = vsub.f32 %v1241, %v2543
      %v2545 = vand.u32 %v2544, 4294901760
      %2546 = vmatpush1.msra.mxu0 %v2545
      %2547 = vmatprep.subr.mxu0 0.0
      %2548 = vmatpush1.msra.mxu0 0.0
      %2549 = vmatprep.subr.mxu0 0.0
      %2550 = vmatpush1.msra.mxu0 0.0
      %2551 = vmatprep.subr.mxu0 0.0
      %2552 = vmatpush1.msra.mxu0 0.0
      %2553 = vmatprep.subr.mxu0 0.0
      %2554 = vmatpush1.msra.mxu0 0.0
      %2555 = vmatprep.subr.mxu0 0.0
      %2556 = vmatpush1.msra.mxu0 0.0
      %2557 = vmatprep.subr.mxu0 0.0
      %2558 = vmatpush1.msra.mxu0 0.0
      %2559 = vmatprep.subr.mxu0 0.0
      %2560 = vmatpush1.msra.mxu0 0.0
      %2561 = vmatprep.subr.mxu0 0.0
      %2562 = vmatpush1.msra.mxu0 0.0
      %2563 = vmatprep.subr.mxu0 0.0
      %2564 = vmatpush1.msra.mxu0 0.0
      %2565 = vmatprep.subr.mxu0 0.0
      %2566 = vmatpush1.msra.mxu0 0.0
      %2567 = vmatprep.subr.mxu0 0.0
      %2568 = vmatpush1.msra.mxu0 0.0
      %2569 = vmatprep.subr.mxu0 0.0
      %2570 = vmatpush1.msra.mxu0 0.0
      %2571 = vmatprep.subr.mxu0 0.0
      %2572 = vmatpush1.msra.mxu0 0.0
      %2573 = vmatprep.subr.mxu0 0.0
      %2574 = vmatpush1.msra.mxu0 0.0
      %2575 = vmatprep.subr.mxu0 0.0
      %2576 = vmatpush1.msra.mxu0 0.0
      %2577 = vmatprep.subr.mxu0 0.0
      %2578 = vmatpush1.msra.mxu0 0.0
      %2579 = vmatprep.mubr.f32.mxu0 0.0
      %v2580 = vand.u32 %v1551, 4294901760
      %2581 = vmatmul.mubr.f32.gmra.mrb[0].mxu0 %v2580
      %v2582 = vpop.f32.mrb[0].mxu0
      %v2583 = vadd.f32 %v2344, %v2582
      %v2584 = vpop.f32.mrb[0].mxu0
      %2585 = vmatprep.mubr.f32.mxu0 0.0
      %v2586 = vand.u32 %v1552, 4294901760
      %2587 = vmatmul.mubr.f32.gmra.mrb[0].mxu0 %v2586
      %v2588 = vpop.f32.mrb[0].mxu0
      %v2589 = vadd.f32 %v2352, %v2588
      %v2590 = vpop.f32.mrb[0].mxu0
      %2591 = vmatprep.mubr.f32.mxu0 0.0
      %v2592 = vand.u32 %v1553, 4294901760
      %2593 = vmatmul.mubr.f32.gmra.mrb[0].mxu0 %v2592
      %v2594 = vpop.f32.mrb[0].mxu0
      %v2595 = vadd.f32 %v2360, %v2594
      %v2596 = vpop.f32.mrb[0].mxu0
      %2597 = vmatprep.mubr.f32.mxu0 0.0
      %v2598 = vand.u32 %v1554, 4294901760
      %2599 = vmatmul.mubr.f32.gmra.mrb[0].mxu0 %v2598
      %v2600 = vpop.f32.mrb[0].mxu0
      %v2601 = vadd.f32 %v2368, %v2600
      %v2602 = vpop.f32.mrb[0].mxu0
      %2603 = vmatprep.mubr.f32.mxu0 0.0
      %v2604 = vand.u32 %v1555, 4294901760
      %2605 = vmatmul.mubr.f32.gmra.mrb[0].mxu0 %v2604
      %v2606 = vpop.f32.mrb[0].mxu0
      %v2607 = vadd.f32 %v2376, %v2606
      %v2608 = vpop.f32.mrb[0].mxu0
      %2609 = vmatprep.mubr.f32.mxu0 0.0
      %v2610 = vand.u32 %v1556, 4294901760
      %2611 = vmatmul.mubr.f32.gmra.mrb[0].mxu0 %v2610
      %v2612 = vpop.f32.mrb[0].mxu0
      %v2613 = vadd.f32 %v2384, %v2612
      %v2614 = vpop.f32.mrb[0].mxu0
      %2615 = vmatprep.mubr.f32.mxu0 0.0
      %v2616 = vand.u32 %v1557, 4294901760
      %2617 = vmatmul.mubr.f32.gmra.mrb[0].mxu0 %v2616
      %v2618 = vpop.f32.mrb[0].mxu0
      %v2619 = vadd.f32 %v2392, %v2618
      %v2620 = vpop.f32.mrb[0].mxu0
      %2621 = vmatprep.mubr.f32.mxu0 0.0
      %v2622 = vand.u32 %v1558, 4294901760
      %2623 = vmatmul.mubr.f32.gmra.mrb[0].mxu0 %v2622
      %v2624 = vpop.f32.mrb[0].mxu0
      %v2625 = vadd.f32 %v2400, %v2624
      %v2626 = vpop.f32.mrb[0].mxu0
      %2627 = vmatprep.mubr.f32.mxu0 0.0
      %v2628 = vand.u32 %v1559, 4294901760
      %2629 = vmatmul.mubr.f32.gmra.mrb[0].mxu0 %v2628
      %v2630 = vpop.f32.mrb[0].mxu0
      %v2631 = vadd.f32 %v2408, %v2630
      %v2632 = vpop.f32.mrb[0].mxu0
      %2633 = vmatprep.mubr.f32.mxu0 0.0
      %v2634 = vand.u32 %v1560, 4294901760
      %2635 = vmatmul.mubr.f32.gmra.mrb[0].mxu0 %v2634
      %v2636 = vpop.f32.mrb[0].mxu0
      %v2637 = vadd.f32 %v2416, %v2636
      %v2638 = vpop.f32.mrb[0].mxu0
      %2639 = vmatprep.mubr.f32.mxu0 0.0
      %v2640 = vand.u32 %v1561, 4294901760
      %2641 = vmatmul.mubr.f32.gmra.mrb[0].mxu0 %v2640
      %v2642 = vpop.f32.mrb[0].mxu0
      %v2643 = vadd.f32 %v2424, %v2642
      %v2644 = vpop.f32.mrb[0].mxu0
      %2645 = vmatprep.mubr.f32.mxu0 0.0
      %v2646 = vand.u32 %v1562, 4294901760
      %2647 = vmatmul.mubr.f32.gmra.mrb[0].mxu0 %v2646
      %v2648 = vpop.f32.mrb[0].mxu0
      %v2649 = vadd.f32 %v2432, %v2648
      %v2650 = vpop.f32.mrb[0].mxu0
      %2651 = vmatprep.mubr.f32.mxu0 0.0
      %v2652 = vand.u32 %v1563, 4294901760
      %2653 = vmatmul.mubr.f32.gmra.mrb[0].mxu0 %v2652
      %v2654 = vpop.f32.mrb[0].mxu0
      %v2655 = vadd.f32 %v2440, %v2654
      %v2656 = vpop.f32.mrb[0].mxu0
      %2657 = vmatprep.mubr.f32.mxu0 0.0
      %v2658 = vand.u32 %v1564, 4294901760
      %2659 = vmatmul.mubr.f32.gmra.mrb[0].mxu0 %v2658
      %v2660 = vpop.f32.mrb[0].mxu0
      %v2661 = vadd.f32 %v2448, %v2660
      %v2662 = vpop.f32.mrb[0].mxu0
      %2663 = vmatprep.mubr.f32.mxu0 0.0
      %v2664 = vand.u32 %v1565, 4294901760
      %2665 = vmatmul.mubr.f32.gmra.mrb[0].mxu0 %v2664
      %v2666 = vpop.f32.mrb[0].mxu0
      %v2667 = vadd.f32 %v2456, %v2666
      %v2668 = vpop.f32.mrb[0].mxu0
      %2669 = vmatprep.mubr.f32.mxu0 0.0
      %v2670 = vand.u32 %v1566, 4294901760
      %2671 = vmatmul.mubr.f32.gmra.mrb[0].mxu0 %v2670
      %v2672 = vpop.f32.mrb[0].mxu0
      %v2673 = vadd.f32 %v2464, %v2672
      %v2674 = vpop.f32.mrb[0].mxu0
      %2675 = vdwg.mxu0
      %2676 = vmatprep.subr.mxu0 0.0
      %v2677 = vand.u32 %v1226, 4294901760
      %2678 = vmatpush1.msra.mxu0 %v2677
      %2679 = vmatprep.subr.mxu0 0.0
      %v2680 = vand.u32 %v1227, 4294901760
      %2681 = vmatpush1.msra.mxu0 %v2680
      %2682 = vmatprep.subr.mxu0 0.0
      %v2683 = vand.u32 %v1228, 4294901760
      %2684 = vmatpush1.msra.mxu0 %v2683
      %2685 = vmatprep.subr.mxu0 0.0
      %v2686 = vand.u32 %v1229, 4294901760
      %2687 = vmatpush1.msra.mxu0 %v2686
      %2688 = vmatprep.subr.mxu0 0.0
      %v2689 = vand.u32 %v1230, 4294901760
      %2690 = vmatpush1.msra.mxu0 %v2689
      %2691 = vmatprep.subr.mxu0 0.0
      %v2692 = vand.u32 %v1231, 4294901760
      %2693 = vmatpush1.msra.mxu0 %v2692
      %2694 = vmatprep.subr.mxu0 0.0
      %v2695 = vand.u32 %v1232, 4294901760
      %2696 = vmatpush1.msra.mxu0 %v2695
      %2697 = vmatprep.subr.mxu0 0.0
      %v2698 = vand.u32 %v1233, 4294901760
      %2699 = vmatpush1.msra.mxu0 %v2698
      %2700 = vmatprep.subr.mxu0 0.0
      %v2701 = vand.u32 %v1234, 4294901760
      %2702 = vmatpush1.msra.mxu0 %v2701
      %2703 = vmatprep.subr.mxu0 0.0
      %v2704 = vand.u32 %v1235, 4294901760
      %2705 = vmatpush1.msra.mxu0 %v2704
      %2706 = vmatprep.subr.mxu0 0.0
      %v2707 = vand.u32 %v1236, 4294901760
      %2708 = vmatpush1.msra.mxu0 %v2707
      %2709 = vmatprep.subr.mxu0 0.0
      %v2710 = vand.u32 %v1237, 4294901760
      %2711 = vmatpush1.msra.mxu0 %v2710
      %2712 = vmatprep.subr.mxu0 0.0
      %v2713 = vand.u32 %v1238, 4294901760
      %2714 = vmatpush1.msra.mxu0 %v2713
      %2715 = vmatprep.subr.mxu0 0.0
      %v2716 = vand.u32 %v1239, 4294901760
      %2717 = vmatpush1.msra.mxu0 %v2716
      %2718 = vmatprep.subr.mxu0 0.0
      %v2719 = vand.u32 %v1240, 4294901760
      %2720 = vmatpush1.msra.mxu0 %v2719
      %2721 = vmatprep.subr.mxu0 0.0
      %v2722 = vand.u32 %v1241, 4294901760
      %2723 = vmatpush1.msra.mxu0 %v2722
      %2724 = vmatprep.subr.mxu0 0.0
      %2725 = vmatpush1.msra.mxu0 0.0
      %2726 = vmatprep.subr.mxu0 0.0
      %2727 = vmatpush1.msra.mxu0 0.0
      %2728 = vmatprep.subr.mxu0 0.0
      %2729 = vmatpush1.msra.mxu0 0.0
      %2730 = vmatprep.subr.mxu0 0.0
      %2731 = vmatpush1.msra.mxu0 0.0
      %2732 = vmatprep.subr.mxu0 0.0
      %2733 = vmatpush1.msra.mxu0 0.0
      %2734 = vmatprep.subr.mxu0 0.0
      %2735 = vmatpush1.msra.mxu0 0.0
      %2736 = vmatprep.subr.mxu0 0.0
      %2737 = vmatpush1.msra.mxu0 0.0
      %2738 = vmatprep.subr.mxu0 0.0
      %2739 = vmatpush1.msra.mxu0 0.0
      %2740 = vmatprep.subr.mxu0 0.0
      %2741 = vmatpush1.msra.mxu0 0.0
      %2742 = vmatprep.subr.mxu0 0.0
      %2743 = vmatpush1.msra.mxu0 0.0
      %2744 = vmatprep.subr.mxu0 0.0
      %2745 = vmatpush1.msra.mxu0 0.0
      %2746 = vmatprep.subr.mxu0 0.0
      %2747 = vmatpush1.msra.mxu0 0.0
      %2748 = vmatprep.subr.mxu0 0.0
      %2749 = vmatpush1.msra.mxu0 0.0
      %2750 = vmatprep.subr.mxu0 0.0
      %2751 = vmatpush1.msra.mxu0 0.0
      %2752 = vmatprep.subr.mxu0 0.0
      %2753 = vmatpush1.msra.mxu0 0.0
      %2754 = vmatprep.subr.mxu0 0.0
      %2755 = vmatpush1.msra.mxu0 0.0
      %2756 = vmatprep.mubr.f32.mxu0 0.0
      %v2757 = vand.u32 %v1551, 4294901760
      %2758 = vmatmul.mubr.f32.gmra.mrb[0].mxu0 %v2757
      %v2759 = vpop.f32.mrb[0].mxu0
      %v2760 = vadd.f32 %v2583, %v2759
      %v2761 = vpop.f32.mrb[0].mxu0
      %2762 = vmatprep.mubr.f32.mxu0 0.0
      %v2763 = vand.u32 %v1552, 4294901760
      %2764 = vmatmul.mubr.f32.gmra.mrb[0].mxu0 %v2763
      %v2765 = vpop.f32.mrb[0].mxu0
      %v2766 = vadd.f32 %v2589, %v2765
      %v2767 = vpop.f32.mrb[0].mxu0
      %2768 = vmatprep.mubr.f32.mxu0 0.0
      %v2769 = vand.u32 %v1553, 4294901760
      %2770 = vmatmul.mubr.f32.gmra.mrb[0].mxu0 %v2769
      %v2771 = vpop.f32.mrb[0].mxu0
      %v2772 = vadd.f32 %v2595, %v2771
      %v2773 = vpop.f32.mrb[0].mxu0
      %2774 = vmatprep.mubr.f32.mxu0 0.0
      %v2775 = vand.u32 %v1554, 4294901760
      %2776 = vmatmul.mubr.f32.gmra.mrb[0].mxu0 %v2775
      %v2777 = vpop.f32.mrb[0].mxu0
      %v2778 = vadd.f32 %v2601, %v2777
      %v2779 = vpop.f32.mrb[0].mxu0
      %2780 = vmatprep.mubr.f32.mxu0 0.0
      %v2781 = vand.u32 %v1555, 4294901760
      %2782 = vmatmul.mubr.f32.gmra.mrb[0].mxu0 %v2781
      %v2783 = vpop.f32.mrb[0].mxu0
      %v2784 = vadd.f32 %v2607, %v2783
      %v2785 = vpop.f32.mrb[0].mxu0
      %2786 = vmatprep.mubr.f32.mxu0 0.0
      %v2787 = vand.u32 %v1556, 4294901760
      %2788 = vmatmul.mubr.f32.gmra.mrb[0].mxu0 %v2787
      %v2789 = vpop.f32.mrb[0].mxu0
      %v2790 = vadd.f32 %v2613, %v2789
      %v2791 = vpop.f32.mrb[0].mxu0
      %2792 = vmatprep.mubr.f32.mxu0 0.0
      %v2793 = vand.u32 %v1557, 4294901760
      %2794 = vmatmul.mubr.f32.gmra.mrb[0].mxu0 %v2793
      %v2795 = vpop.f32.mrb[0].mxu0
      %v2796 = vadd.f32 %v2619, %v2795
      %v2797 = vpop.f32.mrb[0].mxu0
      %2798 = vmatprep.mubr.f32.mxu0 0.0
      %v2799 = vand.u32 %v1558, 4294901760
      %2800 = vmatmul.mubr.f32.gmra.mrb[0].mxu0 %v2799
      %v2801 = vpop.f32.mrb[0].mxu0
      %v2802 = vadd.f32 %v2625, %v2801
      %v2803 = vpop.f32.mrb[0].mxu0
      %2804 = vmatprep.mubr.f32.mxu0 0.0
      %v2805 = vand.u32 %v1559, 4294901760
      %2806 = vmatmul.mubr.f32.gmra.mrb[0].mxu0 %v2805
      %v2807 = vpop.f32.mrb[0].mxu0
      %v2808 = vadd.f32 %v2631, %v2807
      %v2809 = vpop.f32.mrb[0].mxu0
      %2810 = vmatprep.mubr.f32.mxu0 0.0
      %v2811 = vand.u32 %v1560, 4294901760
      %2812 = vmatmul.mubr.f32.gmra.mrb[0].mxu0 %v2811
      %v2813 = vpop.f32.mrb[0].mxu0
      %v2814 = vadd.f32 %v2637, %v2813
      %v2815 = vpop.f32.mrb[0].mxu0
      %2816 = vmatprep.mubr.f32.mxu0 0.0
      %v2817 = vand.u32 %v1561, 4294901760
      %2818 = vmatmul.mubr.f32.gmra.mrb[0].mxu0 %v2817
      %v2819 = vpop.f32.mrb[0].mxu0
      %v2820 = vadd.f32 %v2643, %v2819
      %v2821 = vpop.f32.mrb[0].mxu0
      %2822 = vmatprep.mubr.f32.mxu0 0.0
      %v2823 = vand.u32 %v1562, 4294901760
      %2824 = vmatmul.mubr.f32.gmra.mrb[0].mxu0 %v2823
      %v2825 = vpop.f32.mrb[0].mxu0
      %v2826 = vadd.f32 %v2649, %v2825
      %v2827 = vpop.f32.mrb[0].mxu0
      %2828 = vmatprep.mubr.f32.mxu0 0.0
      %v2829 = vand.u32 %v1563, 4294901760
      %2830 = vmatmul.mubr.f32.gmra.mrb[0].mxu0 %v2829
      %v2831 = vpop.f32.mrb[0].mxu0
      %v2832 = vadd.f32 %v2655, %v2831
      %v2833 = vpop.f32.mrb[0].mxu0
      %2834 = vmatprep.mubr.f32.mxu0 0.0
      %v2835 = vand.u32 %v1564, 4294901760
      %2836 = vmatmul.mubr.f32.gmra.mrb[0].mxu0 %v2835
      %v2837 = vpop.f32.mrb[0].mxu0
      %v2838 = vadd.f32 %v2661, %v2837
      %v2839 = vpop.f32.mrb[0].mxu0
      %2840 = vmatprep.mubr.f32.mxu0 0.0
      %v2841 = vand.u32 %v1565, 4294901760
      %2842 = vmatmul.mubr.f32.gmra.mrb[0].mxu0 %v2841
      %v2843 = vpop.f32.mrb[0].mxu0
      %v2844 = vadd.f32 %v2667, %v2843
      %v2845 = vpop.f32.mrb[0].mxu0
      %2846 = vmatprep.mubr.f32.mxu0 0.0
      %v2847 = vand.u32 %v1566, 4294901760
      %2848 = vmatmul.mubr.f32.gmra.mrb[0].mxu0 %v2847
      %v2849 = vpop.f32.mrb[0].mxu0
      %v2850 = vadd.f32 %v2673, %v2849
      %v2851 = vpop.f32.mrb[0].mxu0
      %2852 = vdwg.mxu0
      %v2853 = vmul.f32 %v2760, 0.0078125
      %v2854 = vmul.f32 %v2766, 0.0078125
      %v2855 = vmul.f32 %v2772, 0.0078125
      %v2856 = vmul.f32 %v2778, 0.0078125
      %v2857 = vmul.f32 %v2784, 0.0078125
      %v2858 = vmul.f32 %v2790, 0.0078125
      %v2859 = vmul.f32 %v2796, 0.0078125
      %v2860 = vmul.f32 %v2802, 0.0078125
      %v2861 = vmul.f32 %v2808, 0.0078125
      %v2862 = vmul.f32 %v2814, 0.0078125
      %v2863 = vmul.f32 %v2820, 0.0078125
      %v2864 = vmul.f32 %v2826, 0.0078125
      %v2865 = vmul.f32 %v2832, 0.0078125
      %v2866 = vmul.f32 %v2838, 0.0078125
      %v2867 = vmul.f32 %v2844, 0.0078125
      %v2868 = vmul.f32 %v2850, 0.0078125
      %v2869 = vmul.f32 %v1519, %v1519
      %v2870 = vmul.f32 %v1520, %v1520
      %v2871 = vmul.f32 %v1521, %v1521
      %v2872 = vmul.f32 %v1522, %v1522
      %v2873 = vmul.f32 %v1523, %v1523
      %v2874 = vmul.f32 %v1524, %v1524
      %v2875 = vmul.f32 %v1525, %v1525
      %v2876 = vmul.f32 %v1526, %v1526
      %v2877 = vmul.f32 %v1527, %v1527
      %v2878 = vmul.f32 %v1528, %v1528
      %v2879 = vmul.f32 %v1529, %v1529
      %v2880 = vmul.f32 %v1530, %v1530
      %v2881 = vmul.f32 %v1531, %v1531
      %v2882 = vmul.f32 %v1532, %v1532
      %v2883 = vmul.f32 %v1533, %v1533
      %v2884 = vmul.f32 %v1534, %v1534
      %v2885 = vmul.f32 %v1226, %v1226
      %v2886 = vmul.f32 %v1227, %v1227
      %v2887 = vmul.f32 %v1228, %v1228
      %v2888 = vmul.f32 %v1229, %v1229
      %v2889 = vmul.f32 %v1230, %v1230
      %v2890 = vmul.f32 %v1231, %v1231
      %v2891 = vmul.f32 %v1232, %v1232
      %v2892 = vmul.f32 %v1233, %v1233
      %v2893 = vmul.f32 %v1234, %v1234
      %v2894 = vmul.f32 %v1235, %v1235
      %v2895 = vmul.f32 %v1236, %v1236
      %v2896 = vmul.f32 %v1237, %v1237
      %v2897 = vmul.f32 %v1238, %v1238
      %v2898 = vmul.f32 %v1239, %v1239
      %v2899 = vmul.f32 %v1240, %v1240
      %v2900 = vmul.f32 %v1241, %v1241
      %2901 = vxpose.xlu0.b32.start [1/16] %v2869, 128
      %2902 = vxpose.xlu0.b32.cont [2/16] %v2870, 128
      %2903 = vxpose.xlu0.b32.cont [3/16] %v2871, 128
      %2904 = vxpose.xlu0.b32.cont [4/16] %v2872, 128
      %2905 = vxpose.xlu0.b32.cont [5/16] %v2873, 128
      %2906 = vxpose.xlu0.b32.cont [6/16] %v2874, 128
      %2907 = vxpose.xlu0.b32.cont [7/16] %v2875, 128
      %2908 = vxpose.xlu0.b32.cont [8/16] %v2876, 128
      %2909 = vxpose.xlu0.b32.cont [9/16] %v2877, 128
      %2910 = vxpose.xlu0.b32.cont [10/16] %v2878, 128
      %2911 = vxpose.xlu0.b32.cont [11/16] %v2879, 128
      %2912 = vxpose.xlu0.b32.cont [12/16] %v2880, 128
      %2913 = vxpose.xlu0.b32.cont [13/16] %v2881, 128
      %2914 = vxpose.xlu0.b32.cont [14/16] %v2882, 128
      %2915 = vxpose.xlu0.b32.cont [15/16] %v2883, 128
      %2916 = vxpose.xlu0.b32.end [16/16] %v2884, 128
      %v2917 = vpop.trf.xlu0
      %v2918 = vpop.trf.xlu0
      %v2919 = vpop.trf.xlu0
      %v2920 = vpop.trf.xlu0
      %v2921 = vpop.trf.xlu0
      %v2922 = vpop.trf.xlu0
      %v2923 = vpop.trf.xlu0
      %v2924 = vpop.trf.xlu0
      %v2925 = vpop.trf.xlu0
      %v2926 = vpop.trf.xlu0
      %v2927 = vpop.trf.xlu0
      %v2928 = vpop.trf.xlu0
      %v2929 = vpop.trf.xlu0
      %v2930 = vpop.trf.xlu0
      %v2931 = vpop.trf.xlu0
      %v2932 = vpop.trf.xlu0
      %2933 = vmatprep.subr.mxu0 0.0
      %v2934 = vand.u32 %v2885, 4294901760
      %2935 = vmatpush1.msra.mxu0 %v2934
      %2936 = vmatprep.subr.mxu0 0.0
      %v2937 = vand.u32 %v2886, 4294901760
      %2938 = vmatpush1.msra.mxu0 %v2937
      %2939 = vmatprep.subr.mxu0 0.0
      %v2940 = vand.u32 %v2887, 4294901760
      %2941 = vmatpush1.msra.mxu0 %v2940
      %2942 = vmatprep.subr.mxu0 0.0
      %v2943 = vand.u32 %v2888, 4294901760
      %2944 = vmatpush1.msra.mxu0 %v2943
      %2945 = vmatprep.subr.mxu0 0.0
      %v2946 = vand.u32 %v2889, 4294901760
      %2947 = vmatpush1.msra.mxu0 %v2946
      %2948 = vmatprep.subr.mxu0 0.0
      %v2949 = vand.u32 %v2890, 4294901760
      %2950 = vmatpush1.msra.mxu0 %v2949
      %2951 = vmatprep.subr.mxu0 0.0
      %v2952 = vand.u32 %v2891, 4294901760
      %2953 = vmatpush1.msra.mxu0 %v2952
      %2954 = vmatprep.subr.mxu0 0.0
      %v2955 = vand.u32 %v2892, 4294901760
      %2956 = vmatpush1.msra.mxu0 %v2955
      %2957 = vmatprep.subr.mxu0 0.0
      %v2958 = vand.u32 %v2893, 4294901760
      %2959 = vmatpush1.msra.mxu0 %v2958
      %2960 = vmatprep.subr.mxu0 0.0
      %v2961 = vand.u32 %v2894, 4294901760
      %2962 = vmatpush1.msra.mxu0 %v2961
      %2963 = vmatprep.subr.mxu0 0.0
      %v2964 = vand.u32 %v2895, 4294901760
      %2965 = vmatpush1.msra.mxu0 %v2964
      %2966 = vmatprep.subr.mxu0 0.0
      %v2967 = vand.u32 %v2896, 4294901760
      %2968 = vmatpush1.msra.mxu0 %v2967
      %2969 = vmatprep.subr.mxu0 0.0
      %v2970 = vand.u32 %v2897, 4294901760
      %2971 = vmatpush1.msra.mxu0 %v2970
      %2972 = vmatprep.subr.mxu0 0.0
      %v2973 = vand.u32 %v2898, 4294901760
      %2974 = vmatpush1.msra.mxu0 %v2973
      %2975 = vmatprep.subr.mxu0 0.0
      %v2976 = vand.u32 %v2899, 4294901760
      %2977 = vmatpush1.msra.mxu0 %v2976
      %2978 = vmatprep.subr.mxu0 0.0
      %v2979 = vand.u32 %v2900, 4294901760
      %2980 = vmatpush1.msra.mxu0 %v2979
      %2981 = vmatprep.subr.mxu0 0.0
      %2982 = vmatpush1.msra.mxu0 0.0
      %2983 = vmatprep.subr.mxu0 0.0
      %2984 = vmatpush1.msra.mxu0 0.0
      %2985 = vmatprep.subr.mxu0 0.0
      %2986 = vmatpush1.msra.mxu0 0.0
      %2987 = vmatprep.subr.mxu0 0.0
      %2988 = vmatpush1.msra.mxu0 0.0
      %2989 = vmatprep.subr.mxu0 0.0
      %2990 = vmatpush1.msra.mxu0 0.0
      %2991 = vmatprep.subr.mxu0 0.0
      %2992 = vmatpush1.msra.mxu0 0.0
      %2993 = vmatprep.subr.mxu0 0.0
      %2994 = vmatpush1.msra.mxu0 0.0
      %2995 = vmatprep.subr.mxu0 0.0
      %2996 = vmatpush1.msra.mxu0 0.0
      %2997 = vmatprep.subr.mxu0 0.0
      %2998 = vmatpush1.msra.mxu0 0.0
      %2999 = vmatprep.subr.mxu0 0.0
      %3000 = vmatpush1.msra.mxu0 0.0
      %3001 = vmatprep.subr.mxu0 0.0
      %3002 = vmatpush1.msra.mxu0 0.0
      %3003 = vmatprep.subr.mxu0 0.0
      %3004 = vmatpush1.msra.mxu0 0.0
      %3005 = vmatprep.subr.mxu0 0.0
      %3006 = vmatpush1.msra.mxu0 0.0
      %3007 = vmatprep.subr.mxu0 0.0
      %3008 = vmatpush1.msra.mxu0 0.0
      %3009 = vmatprep.subr.mxu0 0.0
      %3010 = vmatpush1.msra.mxu0 0.0
      %3011 = vmatprep.subr.mxu0 0.0
      %3012 = vmatpush1.msra.mxu0 0.0
      %3013 = vmatprep.mubr.f32.mxu0 0.0
      %v3014 = vand.u32 %v2917, 4294901760
      %v3015 = vsub.f32 %v2917, %v3014
      %v3016 = vand.u32 %v3015, 4294901760
      %v3017 = vsub.f32 %v3015, %v3016
      %v3018 = vand.u32 %v3017, 4294901760
      %3019 = vmatmul.mubr.f32.gmra.mrb[0].mxu0 %v3018
      %v3020 = vpop.f32.mrb[0].mxu0
      %v3021 = vadd.f32 0.0, %v3020
      %v3022 = vpop.f32.mrb[0].mxu0
      %3023 = vmatprep.mubr.f32.mxu0 0.0
      %v3024 = vand.u32 %v2918, 4294901760
      %v3025 = vsub.f32 %v2918, %v3024
      %v3026 = vand.u32 %v3025, 4294901760
      %v3027 = vsub.f32 %v3025, %v3026
      %v3028 = vand.u32 %v3027, 4294901760
      %3029 = vmatmul.mubr.f32.gmra.mrb[0].mxu0 %v3028
      %v3030 = vpop.f32.mrb[0].mxu0
      %v3031 = vadd.f32 0.0, %v3030
      %v3032 = vpop.f32.mrb[0].mxu0
      %3033 = vmatprep.mubr.f32.mxu0 0.0
      %v3034 = vand.u32 %v2919, 4294901760
      %v3035 = vsub.f32 %v2919, %v3034
      %v3036 = vand.u32 %v3035, 4294901760
      %v3037 = vsub.f32 %v3035, %v3036
      %v3038 = vand.u32 %v3037, 4294901760
      %3039 = vmatmul.mubr.f32.gmra.mrb[0].mxu0 %v3038
      %v3040 = vpop.f32.mrb[0].mxu0
      %v3041 = vadd.f32 0.0, %v3040
      %v3042 = vpop.f32.mrb[0].mxu0
      %3043 = vmatprep.mubr.f32.mxu0 0.0
      %v3044 = vand.u32 %v2920, 4294901760
      %v3045 = vsub.f32 %v2920, %v3044
      %v3046 = vand.u32 %v3045, 4294901760
      %v3047 = vsub.f32 %v3045, %v3046
      %v3048 = vand.u32 %v3047, 4294901760
      %3049 = vmatmul.mubr.f32.gmra.mrb[0].mxu0 %v3048
      %v3050 = vpop.f32.mrb[0].mxu0
      %v3051 = vadd.f32 0.0, %v3050
      %v3052 = vpop.f32.mrb[0].mxu0
      %3053 = vmatprep.mubr.f32.mxu0 0.0
      %v3054 = vand.u32 %v2921, 4294901760
      %v3055 = vsub.f32 %v2921, %v3054
      %v3056 = vand.u32 %v3055, 4294901760
      %v3057 = vsub.f32 %v3055, %v3056
      %v3058 = vand.u32 %v3057, 4294901760
      %3059 = vmatmul.mubr.f32.gmra.mrb[0].mxu0 %v3058
      %v3060 = vpop.f32.mrb[0].mxu0
      %v3061 = vadd.f32 0.0, %v3060
      %v3062 = vpop.f32.mrb[0].mxu0
      %3063 = vmatprep.mubr.f32.mxu0 0.0
      %v3064 = vand.u32 %v2922, 4294901760
      %v3065 = vsub.f32 %v2922, %v3064
      %v3066 = vand.u32 %v3065, 4294901760
      %v3067 = vsub.f32 %v3065, %v3066
      %v3068 = vand.u32 %v3067, 4294901760
      %3069 = vmatmul.mubr.f32.gmra.mrb[0].mxu0 %v3068
      %v3070 = vpop.f32.mrb[0].mxu0
      %v3071 = vadd.f32 0.0, %v3070
      %v3072 = vpop.f32.mrb[0].mxu0
      %3073 = vmatprep.mubr.f32.mxu0 0.0
      %v3074 = vand.u32 %v2923, 4294901760
      %v3075 = vsub.f32 %v2923, %v3074
      %v3076 = vand.u32 %v3075, 4294901760
      %v3077 = vsub.f32 %v3075, %v3076
      %v3078 = vand.u32 %v3077, 4294901760
      %3079 = vmatmul.mubr.f32.gmra.mrb[0].mxu0 %v3078
      %v3080 = vpop.f32.mrb[0].mxu0
      %v3081 = vadd.f32 0.0, %v3080
      %v3082 = vpop.f32.mrb[0].mxu0
      %3083 = vmatprep.mubr.f32.mxu0 0.0
      %v3084 = vand.u32 %v2924, 4294901760
      %v3085 = vsub.f32 %v2924, %v3084
      %v3086 = vand.u32 %v3085, 4294901760
      %v3087 = vsub.f32 %v3085, %v3086
      %v3088 = vand.u32 %v3087, 4294901760
      %3089 = vmatmul.mubr.f32.gmra.mrb[0].mxu0 %v3088
      %v3090 = vpop.f32.mrb[0].mxu0
      %v3091 = vadd.f32 0.0, %v3090
      %v3092 = vpop.f32.mrb[0].mxu0
      %3093 = vmatprep.mubr.f32.mxu0 0.0
      %v3094 = vand.u32 %v2925, 4294901760
      %v3095 = vsub.f32 %v2925, %v3094
      %v3096 = vand.u32 %v3095, 4294901760
      %v3097 = vsub.f32 %v3095, %v3096
      %v3098 = vand.u32 %v3097, 4294901760
      %3099 = vmatmul.mubr.f32.gmra.mrb[0].mxu0 %v3098
      %v3100 = vpop.f32.mrb[0].mxu0
      %v3101 = vadd.f32 0.0, %v3100
      %v3102 = vpop.f32.mrb[0].mxu0
      %3103 = vmatprep.mubr.f32.mxu0 0.0
      %v3104 = vand.u32 %v2926, 4294901760
      %v3105 = vsub.f32 %v2926, %v3104
      %v3106 = vand.u32 %v3105, 4294901760
      %v3107 = vsub.f32 %v3105, %v3106
      %v3108 = vand.u32 %v3107, 4294901760
      %3109 = vmatmul.mubr.f32.gmra.mrb[0].mxu0 %v3108
      %v3110 = vpop.f32.mrb[0].mxu0
      %v3111 = vadd.f32 0.0, %v3110
      %v3112 = vpop.f32.mrb[0].mxu0
      %3113 = vmatprep.mubr.f32.mxu0 0.0
      %v3114 = vand.u32 %v2927, 4294901760
      %v3115 = vsub.f32 %v2927, %v3114
      %v3116 = vand.u32 %v3115, 4294901760
      %v3117 = vsub.f32 %v3115, %v3116
      %v3118 = vand.u32 %v3117, 4294901760
      %3119 = vmatmul.mubr.f32.gmra.mrb[0].mxu0 %v3118
      %v3120 = vpop.f32.mrb[0].mxu0
      %v3121 = vadd.f32 0.0, %v3120
      %v3122 = vpop.f32.mrb[0].mxu0
      %3123 = vmatprep.mubr.f32.mxu0 0.0
      %v3124 = vand.u32 %v2928, 4294901760
      %v3125 = vsub.f32 %v2928, %v3124
      %v3126 = vand.u32 %v3125, 4294901760
      %v3127 = vsub.f32 %v3125, %v3126
      %v3128 = vand.u32 %v3127, 4294901760
      %3129 = vmatmul.mubr.f32.gmra.mrb[0].mxu0 %v3128
      %v3130 = vpop.f32.mrb[0].mxu0
      %v3131 = vadd.f32 0.0, %v3130
      %v3132 = vpop.f32.mrb[0].mxu0
      %3133 = vmatprep.mubr.f32.mxu0 0.0
      %v3134 = vand.u32 %v2929, 4294901760
      %v3135 = vsub.f32 %v2929, %v3134
      %v3136 = vand.u32 %v3135, 4294901760
      %v3137 = vsub.f32 %v3135, %v3136
      %v3138 = vand.u32 %v3137, 4294901760
      %3139 = vmatmul.mubr.f32.gmra.mrb[0].mxu0 %v3138
      %v3140 = vpop.f32.mrb[0].mxu0
      %v3141 = vadd.f32 0.0, %v3140
      %v3142 = vpop.f32.mrb[0].mxu0
      %3143 = vmatprep.mubr.f32.mxu0 0.0
      %v3144 = vand.u32 %v2930, 4294901760
      %v3145 = vsub.f32 %v2930, %v3144
      %v3146 = vand.u32 %v3145, 4294901760
      %v3147 = vsub.f32 %v3145, %v3146
      %v3148 = vand.u32 %v3147, 4294901760
      %3149 = vmatmul.mubr.f32.gmra.mrb[0].mxu0 %v3148
      %v3150 = vpop.f32.mrb[0].mxu0
      %v3151 = vadd.f32 0.0, %v3150
      %v3152 = vpop.f32.mrb[0].mxu0
      %3153 = vmatprep.mubr.f32.mxu0 0.0
      %v3154 = vand.u32 %v2931, 4294901760
      %v3155 = vsub.f32 %v2931, %v3154
      %v3156 = vand.u32 %v3155, 4294901760
      %v3157 = vsub.f32 %v3155, %v3156
      %v3158 = vand.u32 %v3157, 4294901760
      %3159 = vmatmul.mubr.f32.gmra.mrb[0].mxu0 %v3158
      %v3160 = vpop.f32.mrb[0].mxu0
      %v3161 = vadd.f32 0.0, %v3160
      %v3162 = vpop.f32.mrb[0].mxu0
      %3163 = vmatprep.mubr.f32.mxu0 0.0
      %v3164 = vand.u32 %v2932, 4294901760
      %v3165 = vsub.f32 %v2932, %v3164
      %v3166 = vand.u32 %v3165, 4294901760
      %v3167 = vsub.f32 %v3165, %v3166
      %v3168 = vand.u32 %v3167, 4294901760
      %3169 = vmatmul.mubr.f32.gmra.mrb[0].mxu0 %v3168
      %v3170 = vpop.f32.mrb[0].mxu0
      %v3171 = vadd.f32 0.0, %v3170
      %v3172 = vpop.f32.mrb[0].mxu0
      %3173 = vdwg.mxu0
      %3174 = vmatprep.subr.mxu0 0.0
      %v3175 = vand.u32 %v2885, 4294901760
      %v3176 = vsub.f32 %v2885, %v3175
      %v3177 = vand.u32 %v3176, 4294901760
      %v3178 = vsub.f32 %v3176, %v3177
      %v3179 = vand.u32 %v3178, 4294901760
      %3180 = vmatpush1.msra.mxu0 %v3179
      %3181 = vmatprep.subr.mxu0 0.0
      %v3182 = vand.u32 %v2886, 4294901760
      %v3183 = vsub.f32 %v2886, %v3182
      %v3184 = vand.u32 %v3183, 4294901760
      %v3185 = vsub.f32 %v3183, %v3184
      %v3186 = vand.u32 %v3185, 4294901760
      %3187 = vmatpush1.msra.mxu0 %v3186
      %3188 = vmatprep.subr.mxu0 0.0
      %v3189 = vand.u32 %v2887, 4294901760
      %v3190 = vsub.f32 %v2887, %v3189
      %v3191 = vand.u32 %v3190, 4294901760
      %v3192 = vsub.f32 %v3190, %v3191
      %v3193 = vand.u32 %v3192, 4294901760
      %3194 = vmatpush1.msra.mxu0 %v3193
      %3195 = vmatprep.subr.mxu0 0.0
      %v3196 = vand.u32 %v2888, 4294901760
      %v3197 = vsub.f32 %v2888, %v3196
      %v3198 = vand.u32 %v3197, 4294901760
      %v3199 = vsub.f32 %v3197, %v3198
      %v3200 = vand.u32 %v3199, 4294901760
      %3201 = vmatpush1.msra.mxu0 %v3200
      %3202 = vmatprep.subr.mxu0 0.0
      %v3203 = vand.u32 %v2889, 4294901760
      %v3204 = vsub.f32 %v2889, %v3203
      %v3205 = vand.u32 %v3204, 4294901760
      %v3206 = vsub.f32 %v3204, %v3205
      %v3207 = vand.u32 %v3206, 4294901760
      %3208 = vmatpush1.msra.mxu0 %v3207
      %3209 = vmatprep.subr.mxu0 0.0
      %v3210 = vand.u32 %v2890, 4294901760
      %v3211 = vsub.f32 %v2890, %v3210
      %v3212 = vand.u32 %v3211, 4294901760
      %v3213 = vsub.f32 %v3211, %v3212
      %v3214 = vand.u32 %v3213, 4294901760
      %3215 = vmatpush1.msra.mxu0 %v3214
      %3216 = vmatprep.subr.mxu0 0.0
      %v3217 = vand.u32 %v2891, 4294901760
      %v3218 = vsub.f32 %v2891, %v3217
      %v3219 = vand.u32 %v3218, 4294901760
      %v3220 = vsub.f32 %v3218, %v3219
      %v3221 = vand.u32 %v3220, 4294901760
      %3222 = vmatpush1.msra.mxu0 %v3221
      %3223 = vmatprep.subr.mxu0 0.0
      %v3224 = vand.u32 %v2892, 4294901760
      %v3225 = vsub.f32 %v2892, %v3224
      %v3226 = vand.u32 %v3225, 4294901760
      %v3227 = vsub.f32 %v3225, %v3226
      %v3228 = vand.u32 %v3227, 4294901760
      %3229 = vmatpush1.msra.mxu0 %v3228
      %3230 = vmatprep.subr.mxu0 0.0
      %v3231 = vand.u32 %v2893, 4294901760
      %v3232 = vsub.f32 %v2893, %v3231
      %v3233 = vand.u32 %v3232, 4294901760
      %v3234 = vsub.f32 %v3232, %v3233
      %v3235 = vand.u32 %v3234, 4294901760
      %3236 = vmatpush1.msra.mxu0 %v3235
      %3237 = vmatprep.subr.mxu0 0.0
      %v3238 = vand.u32 %v2894, 4294901760
      %v3239 = vsub.f32 %v2894, %v3238
      %v3240 = vand.u32 %v3239, 4294901760
      %v3241 = vsub.f32 %v3239, %v3240
      %v3242 = vand.u32 %v3241, 4294901760
      %3243 = vmatpush1.msra.mxu0 %v3242
      %3244 = vmatprep.subr.mxu0 0.0
      %v3245 = vand.u32 %v2895, 4294901760
      %v3246 = vsub.f32 %v2895, %v3245
      %v3247 = vand.u32 %v3246, 4294901760
      %v3248 = vsub.f32 %v3246, %v3247
      %v3249 = vand.u32 %v3248, 4294901760
      %3250 = vmatpush1.msra.mxu0 %v3249
      %3251 = vmatprep.subr.mxu0 0.0
      %v3252 = vand.u32 %v2896, 4294901760
      %v3253 = vsub.f32 %v2896, %v3252
      %v3254 = vand.u32 %v3253, 4294901760
      %v3255 = vsub.f32 %v3253, %v3254
      %v3256 = vand.u32 %v3255, 4294901760
      %3257 = vmatpush1.msra.mxu0 %v3256
      %3258 = vmatprep.subr.mxu0 0.0
      %v3259 = vand.u32 %v2897, 4294901760
      %v3260 = vsub.f32 %v2897, %v3259
      %v3261 = vand.u32 %v3260, 4294901760
      %v3262 = vsub.f32 %v3260, %v3261
      %v3263 = vand.u32 %v3262, 4294901760
      %3264 = vmatpush1.msra.mxu0 %v3263
      %3265 = vmatprep.subr.mxu0 0.0
      %v3266 = vand.u32 %v2898, 4294901760
      %v3267 = vsub.f32 %v2898, %v3266
      %v3268 = vand.u32 %v3267, 4294901760
      %v3269 = vsub.f32 %v3267, %v3268
      %v3270 = vand.u32 %v3269, 4294901760
      %3271 = vmatpush1.msra.mxu0 %v3270
      %3272 = vmatprep.subr.mxu0 0.0
      %v3273 = vand.u32 %v2899, 4294901760
      %v3274 = vsub.f32 %v2899, %v3273
      %v3275 = vand.u32 %v3274, 4294901760
      %v3276 = vsub.f32 %v3274, %v3275
      %v3277 = vand.u32 %v3276, 4294901760
      %3278 = vmatpush1.msra.mxu0 %v3277
      %3279 = vmatprep.subr.mxu0 0.0
      %v3280 = vand.u32 %v2900, 4294901760
      %v3281 = vsub.f32 %v2900, %v3280
      %v3282 = vand.u32 %v3281, 4294901760
      %v3283 = vsub.f32 %v3281, %v3282
      %v3284 = vand.u32 %v3283, 4294901760
      %3285 = vmatpush1.msra.mxu0 %v3284
      %3286 = vmatprep.subr.mxu0 0.0
      %3287 = vmatpush1.msra.mxu0 0.0
      %3288 = vmatprep.subr.mxu0 0.0
      %3289 = vmatpush1.msra.mxu0 0.0
      %3290 = vmatprep.subr.mxu0 0.0
      %3291 = vmatpush1.msra.mxu0 0.0
      %3292 = vmatprep.subr.mxu0 0.0
      %3293 = vmatpush1.msra.mxu0 0.0
      %3294 = vmatprep.subr.mxu0 0.0
      %3295 = vmatpush1.msra.mxu0 0.0
      %3296 = vmatprep.subr.mxu0 0.0
      %3297 = vmatpush1.msra.mxu0 0.0
      %3298 = vmatprep.subr.mxu0 0.0
      %3299 = vmatpush1.msra.mxu0 0.0
      %3300 = vmatprep.subr.mxu0 0.0
      %3301 = vmatpush1.msra.mxu0 0.0
      %3302 = vmatprep.subr.mxu0 0.0
      %3303 = vmatpush1.msra.mxu0 0.0
      %3304 = vmatprep.subr.mxu0 0.0
      %3305 = vmatpush1.msra.mxu0 0.0
      %3306 = vmatprep.subr.mxu0 0.0
      %3307 = vmatpush1.msra.mxu0 0.0
      %3308 = vmatprep.subr.mxu0 0.0
      %3309 = vmatpush1.msra.mxu0 0.0
      %3310 = vmatprep.subr.mxu0 0.0
      %3311 = vmatpush1.msra.mxu0 0.0
      %3312 = vmatprep.subr.mxu0 0.0
      %3313 = vmatpush1.msra.mxu0 0.0
      %3314 = vmatprep.subr.mxu0 0.0
      %3315 = vmatpush1.msra.mxu0 0.0
      %3316 = vmatprep.subr.mxu0 0.0
      %3317 = vmatpush1.msra.mxu0 0.0
      %3318 = vmatprep.mubr.f32.mxu0 0.0
      %v3319 = vand.u32 %v2917, 4294901760
      %3320 = vmatmul.mubr.f32.gmra.mrb[0].mxu0 %v3319
      %v3321 = vpop.f32.mrb[0].mxu0
      %v3322 = vadd.f32 %v3021, %v3321
      %v3323 = vpop.f32.mrb[0].mxu0
      %3324 = vmatprep.mubr.f32.mxu0 0.0
      %v3325 = vand.u32 %v2918, 4294901760
      %3326 = vmatmul.mubr.f32.gmra.mrb[0].mxu0 %v3325
      %v3327 = vpop.f32.mrb[0].mxu0
      %v3328 = vadd.f32 %v3031, %v3327
      %v3329 = vpop.f32.mrb[0].mxu0
      %3330 = vmatprep.mubr.f32.mxu0 0.0
      %v3331 = vand.u32 %v2919, 4294901760
      %3332 = vmatmul.mubr.f32.gmra.mrb[0].mxu0 %v3331
      %v3333 = vpop.f32.mrb[0].mxu0
      %v3334 = vadd.f32 %v3041, %v3333
      %v3335 = vpop.f32.mrb[0].mxu0
      %3336 = vmatprep.mubr.f32.mxu0 0.0
      %v3337 = vand.u32 %v2920, 4294901760
      %3338 = vmatmul.mubr.f32.gmra.mrb[0].mxu0 %v3337
      %v3339 = vpop.f32.mrb[0].mxu0
      %v3340 = vadd.f32 %v3051, %v3339
      %v3341 = vpop.f32.mrb[0].mxu0
      %3342 = vmatprep.mubr.f32.mxu0 0.0
      %v3343 = vand.u32 %v2921, 4294901760
      %3344 = vmatmul.mubr.f32.gmra.mrb[0].mxu0 %v3343
      %v3345 = vpop.f32.mrb[0].mxu0
      %v3346 = vadd.f32 %v3061, %v3345
      %v3347 = vpop.f32.mrb[0].mxu0
      %3348 = vmatprep.mubr.f32.mxu0 0.0
      %v3349 = vand.u32 %v2922, 4294901760
      %3350 = vmatmul.mubr.f32.gmra.mrb[0].mxu0 %v3349
      %v3351 = vpop.f32.mrb[0].mxu0
      %v3352 = vadd.f32 %v3071, %v3351
      %v3353 = vpop.f32.mrb[0].mxu0
      %3354 = vmatprep.mubr.f32.mxu0 0.0
      %v3355 = vand.u32 %v2923, 4294901760
      %3356 = vmatmul.mubr.f32.gmra.mrb[0].mxu0 %v3355
      %v3357 = vpop.f32.mrb[0].mxu0
      %v3358 = vadd.f32 %v3081, %v3357
      %v3359 = vpop.f32.mrb[0].mxu0
      %3360 = vmatprep.mubr.f32.mxu0 0.0
      %v3361 = vand.u32 %v2924, 4294901760
      %3362 = vmatmul.mubr.f32.gmra.mrb[0].mxu0 %v3361
      %v3363 = vpop.f32.mrb[0].mxu0
      %v3364 = vadd.f32 %v3091, %v3363
      %v3365 = vpop.f32.mrb[0].mxu0
      %3366 = vmatprep.mubr.f32.mxu0 0.0
      %v3367 = vand.u32 %v2925, 4294901760
      %3368 = vmatmul.mubr.f32.gmra.mrb[0].mxu0 %v3367
      %v3369 = vpop.f32.mrb[0].mxu0
      %v3370 = vadd.f32 %v3101, %v3369
      %v3371 = vpop.f32.mrb[0].mxu0
      %3372 = vmatprep.mubr.f32.mxu0 0.0
      %v3373 = vand.u32 %v2926, 4294901760
      %3374 = vmatmul.mubr.f32.gmra.mrb[0].mxu0 %v3373
      %v3375 = vpop.f32.mrb[0].mxu0
      %v3376 = vadd.f32 %v3111, %v3375
      %v3377 = vpop.f32.mrb[0].mxu0
      %3378 = vmatprep.mubr.f32.mxu0 0.0
      %v3379 = vand.u32 %v2927, 4294901760
      %3380 = vmatmul.mubr.f32.gmra.mrb[0].mxu0 %v3379
      %v3381 = vpop.f32.mrb[0].mxu0
      %v3382 = vadd.f32 %v3121, %v3381
      %v3383 = vpop.f32.mrb[0].mxu0
      %3384 = vmatprep.mubr.f32.mxu0 0.0
      %v3385 = vand.u32 %v2928, 4294901760
      %3386 = vmatmul.mubr.f32.gmra.mrb[0].mxu0 %v3385
      %v3387 = vpop.f32.mrb[0].mxu0
      %v3388 = vadd.f32 %v3131, %v3387
      %v3389 = vpop.f32.mrb[0].mxu0
      %3390 = vmatprep.mubr.f32.mxu0 0.0
      %v3391 = vand.u32 %v2929, 4294901760
      %3392 = vmatmul.mubr.f32.gmra.mrb[0].mxu0 %v3391
      %v3393 = vpop.f32.mrb[0].mxu0
      %v3394 = vadd.f32 %v3141, %v3393
      %v3395 = vpop.f32.mrb[0].mxu0
      %3396 = vmatprep.mubr.f32.mxu0 0.0
      %v3397 = vand.u32 %v2930, 4294901760
      %3398 = vmatmul.mubr.f32.gmra.mrb[0].mxu0 %v3397
      %v3399 = vpop.f32.mrb[0].mxu0
      %v3400 = vadd.f32 %v3151, %v3399
      %v3401 = vpop.f32.mrb[0].mxu0
      %3402 = vmatprep.mubr.f32.mxu0 0.0
      %v3403 = vand.u32 %v2931, 4294901760
      %3404 = vmatmul.mubr.f32.gmra.mrb[0].mxu0 %v3403
      %v3405 = vpop.f32.mrb[0].mxu0
      %v3406 = vadd.f32 %v3161, %v3405
      %v3407 = vpop.f32.mrb[0].mxu0
      %3408 = vmatprep.mubr.f32.mxu0 0.0
      %v3409 = vand.u32 %v2932, 4294901760
      %3410 = vmatmul.mubr.f32.gmra.mrb[0].mxu0 %v3409
      %v3411 = vpop.f32.mrb[0].mxu0
      %v3412 = vadd.f32 %v3171, %v3411
      %v3413 = vpop.f32.mrb[0].mxu0
      %3414 = vdwg.mxu0
      %3415 = vmatprep.subr.mxu0 0.0
      %v3416 = vand.u32 %v2885, 4294901760
      %v3417 = vsub.f32 %v2885, %v3416
      %3418 = vmatpush1.msra.mxu0 %v3417
      %3419 = vmatprep.subr.mxu0 0.0
      %v3420 = vand.u32 %v2886, 4294901760
      %v3421 = vsub.f32 %v2886, %v3420
      %3422 = vmatpush1.msra.mxu0 %v3421
      %3423 = vmatprep.subr.mxu0 0.0
      %v3424 = vand.u32 %v2887, 4294901760
      %v3425 = vsub.f32 %v2887, %v3424
      %3426 = vmatpush1.msra.mxu0 %v3425
      %3427 = vmatprep.subr.mxu0 0.0
      %v3428 = vand.u32 %v2888, 4294901760
      %v3429 = vsub.f32 %v2888, %v3428
      %3430 = vmatpush1.msra.mxu0 %v3429
      %3431 = vmatprep.subr.mxu0 0.0
      %v3432 = vand.u32 %v2889, 4294901760
      %v3433 = vsub.f32 %v2889, %v3432
      %3434 = vmatpush1.msra.mxu0 %v3433
      %3435 = vmatprep.subr.mxu0 0.0
      %v3436 = vand.u32 %v2890, 4294901760
      %v3437 = vsub.f32 %v2890, %v3436
      %3438 = vmatpush1.msra.mxu0 %v3437
      %3439 = vmatprep.subr.mxu0 0.0
      %v3440 = vand.u32 %v2891, 4294901760
      %v3441 = vsub.f32 %v2891, %v3440
      %3442 = vmatpush1.msra.mxu0 %v3441
      %3443 = vmatprep.subr.mxu0 0.0
      %v3444 = vand.u32 %v2892, 4294901760
      %v3445 = vsub.f32 %v2892, %v3444
      %3446 = vmatpush1.msra.mxu0 %v3445
      %3447 = vmatprep.subr.mxu0 0.0
      %v3448 = vand.u32 %v2893, 4294901760
      %v3449 = vsub.f32 %v2893, %v3448
      %3450 = vmatpush1.msra.mxu0 %v3449
      %3451 = vmatprep.subr.mxu0 0.0
      %v3452 = vand.u32 %v2894, 4294901760
      %v3453 = vsub.f32 %v2894, %v3452
      %3454 = vmatpush1.msra.mxu0 %v3453
      %3455 = vmatprep.subr.mxu0 0.0
      %v3456 = vand.u32 %v2895, 4294901760
      %v3457 = vsub.f32 %v2895, %v3456
      %3458 = vmatpush1.msra.mxu0 %v3457
      %3459 = vmatprep.subr.mxu0 0.0
      %v3460 = vand.u32 %v2896, 4294901760
      %v3461 = vsub.f32 %v2896, %v3460
      %3462 = vmatpush1.msra.mxu0 %v3461
      %3463 = vmatprep.subr.mxu0 0.0
      %v3464 = vand.u32 %v2897, 4294901760
      %v3465 = vsub.f32 %v2897, %v3464
      %3466 = vmatpush1.msra.mxu0 %v3465
      %3467 = vmatprep.subr.mxu0 0.0
      %v3468 = vand.u32 %v2898, 4294901760
      %v3469 = vsub.f32 %v2898, %v3468
      %3470 = vmatpush1.msra.mxu0 %v3469
      %3471 = vmatprep.subr.mxu0 0.0
      %v3472 = vand.u32 %v2899, 4294901760
      %v3473 = vsub.f32 %v2899, %v3472
      %3474 = vmatpush1.msra.mxu0 %v3473
      %3475 = vmatprep.subr.mxu0 0.0
      %v3476 = vand.u32 %v2900, 4294901760
      %v3477 = vsub.f32 %v2900, %v3476
      %3478 = vmatpush1.msra.mxu0 %v3477
      %3479 = vmatprep.subr.mxu0 0.0
      %3480 = vmatpush1.msra.mxu0 0.0
      %3481 = vmatprep.subr.mxu0 0.0
      %3482 = vmatpush1.msra.mxu0 0.0
      %3483 = vmatprep.subr.mxu0 0.0
      %3484 = vmatpush1.msra.mxu0 0.0
      %3485 = vmatprep.subr.mxu0 0.0
      %3486 = vmatpush1.msra.mxu0 0.0
      %3487 = vmatprep.subr.mxu0 0.0
      %3488 = vmatpush1.msra.mxu0 0.0
      %3489 = vmatprep.subr.mxu0 0.0
      %3490 = vmatpush1.msra.mxu0 0.0
      %3491 = vmatprep.subr.mxu0 0.0
      %3492 = vmatpush1.msra.mxu0 0.0
      %3493 = vmatprep.subr.mxu0 0.0
      %3494 = vmatpush1.msra.mxu0 0.0
      %3495 = vmatprep.subr.mxu0 0.0
      %3496 = vmatpush1.msra.mxu0 0.0
      %3497 = vmatprep.subr.mxu0 0.0
      %3498 = vmatpush1.msra.mxu0 0.0
      %3499 = vmatprep.subr.mxu0 0.0
      %3500 = vmatpush1.msra.mxu0 0.0
      %3501 = vmatprep.subr.mxu0 0.0
      %3502 = vmatpush1.msra.mxu0 0.0
      %3503 = vmatprep.subr.mxu0 0.0
      %3504 = vmatpush1.msra.mxu0 0.0
      %3505 = vmatprep.subr.mxu0 0.0
      %3506 = vmatpush1.msra.mxu0 0.0
      %3507 = vmatprep.subr.mxu0 0.0
      %3508 = vmatpush1.msra.mxu0 0.0
      %3509 = vmatprep.subr.mxu0 0.0
      %3510 = vmatpush1.msra.mxu0 0.0
      %3511 = vmatprep.mubr.f32.mxu0 0.0
      %v3512 = vand.u32 %v2917, 4294901760
      %v3513 = vsub.f32 %v2917, %v3512
      %3514 = vmatmul.mubr.f32.gmra.mrb[0].mxu0 %v3513
      %v3515 = vpop.f32.mrb[0].mxu0
      %v3516 = vadd.f32 %v3322, %v3515
      %v3517 = vpop.f32.mrb[0].mxu0
      %3518 = vmatprep.mubr.f32.mxu0 0.0
      %v3519 = vand.u32 %v2918, 4294901760
      %v3520 = vsub.f32 %v2918, %v3519
      %3521 = vmatmul.mubr.f32.gmra.mrb[0].mxu0 %v3520
      %v3522 = vpop.f32.mrb[0].mxu0
      %v3523 = vadd.f32 %v3328, %v3522
      %v3524 = vpop.f32.mrb[0].mxu0
      %3525 = vmatprep.mubr.f32.mxu0 0.0
      %v3526 = vand.u32 %v2919, 4294901760
      %v3527 = vsub.f32 %v2919, %v3526
      %3528 = vmatmul.mubr.f32.gmra.mrb[0].mxu0 %v3527
      %v3529 = vpop.f32.mrb[0].mxu0
      %v3530 = vadd.f32 %v3334, %v3529
      %v3531 = vpop.f32.mrb[0].mxu0
      %3532 = vmatprep.mubr.f32.mxu0 0.0
      %v3533 = vand.u32 %v2920, 4294901760
      %v3534 = vsub.f32 %v2920, %v3533
      %3535 = vmatmul.mubr.f32.gmra.mrb[0].mxu0 %v3534
      %v3536 = vpop.f32.mrb[0].mxu0
      %v3537 = vadd.f32 %v3340, %v3536
      %v3538 = vpop.f32.mrb[0].mxu0
      %3539 = vmatprep.mubr.f32.mxu0 0.0
      %v3540 = vand.u32 %v2921, 4294901760
      %v3541 = vsub.f32 %v2921, %v3540
      %3542 = vmatmul.mubr.f32.gmra.mrb[0].mxu0 %v3541
      %v3543 = vpop.f32.mrb[0].mxu0
      %v3544 = vadd.f32 %v3346, %v3543
      %v3545 = vpop.f32.mrb[0].mxu0
      %3546 = vmatprep.mubr.f32.mxu0 0.0
      %v3547 = vand.u32 %v2922, 4294901760
      %v3548 = vsub.f32 %v2922, %v3547
      %3549 = vmatmul.mubr.f32.gmra.mrb[0].mxu0 %v3548
      %v3550 = vpop.f32.mrb[0].mxu0
      %v3551 = vadd.f32 %v3352, %v3550
      %v3552 = vpop.f32.mrb[0].mxu0
      %3553 = vmatprep.mubr.f32.mxu0 0.0
      %v3554 = vand.u32 %v2923, 4294901760
      %v3555 = vsub.f32 %v2923, %v3554
      %3556 = vmatmul.mubr.f32.gmra.mrb[0].mxu0 %v3555
      %v3557 = vpop.f32.mrb[0].mxu0
      %v3558 = vadd.f32 %v3358, %v3557
      %v3559 = vpop.f32.mrb[0].mxu0
      %3560 = vmatprep.mubr.f32.mxu0 0.0
      %v3561 = vand.u32 %v2924, 4294901760
      %v3562 = vsub.f32 %v2924, %v3561
      %3563 = vmatmul.mubr.f32.gmra.mrb[0].mxu0 %v3562
      %v3564 = vpop.f32.mrb[0].mxu0
      %v3565 = vadd.f32 %v3364, %v3564
      %v3566 = vpop.f32.mrb[0].mxu0
      %3567 = vmatprep.mubr.f32.mxu0 0.0
      %v3568 = vand.u32 %v2925, 4294901760
      %v3569 = vsub.f32 %v2925, %v3568
      %3570 = vmatmul.mubr.f32.gmra.mrb[0].mxu0 %v3569
      %v3571 = vpop.f32.mrb[0].mxu0
      %v3572 = vadd.f32 %v3370, %v3571
      %v3573 = vpop.f32.mrb[0].mxu0
      %3574 = vmatprep.mubr.f32.mxu0 0.0
      %v3575 = vand.u32 %v2926, 4294901760
      %v3576 = vsub.f32 %v2926, %v3575
      %3577 = vmatmul.mubr.f32.gmra.mrb[0].mxu0 %v3576
      %v3578 = vpop.f32.mrb[0].mxu0
      %v3579 = vadd.f32 %v3376, %v3578
      %v3580 = vpop.f32.mrb[0].mxu0
      %3581 = vmatprep.mubr.f32.mxu0 0.0
      %v3582 = vand.u32 %v2927, 4294901760
      %v3583 = vsub.f32 %v2927, %v3582
      %3584 = vmatmul.mubr.f32.gmra.mrb[0].mxu0 %v3583
      %v3585 = vpop.f32.mrb[0].mxu0
      %v3586 = vadd.f32 %v3382, %v3585
      %v3587 = vpop.f32.mrb[0].mxu0
      %3588 = vmatprep.mubr.f32.mxu0 0.0
      %v3589 = vand.u32 %v2928, 4294901760
      %v3590 = vsub.f32 %v2928, %v3589
      %3591 = vmatmul.mubr.f32.gmra.mrb[0].mxu0 %v3590
      %v3592 = vpop.f32.mrb[0].mxu0
      %v3593 = vadd.f32 %v3388, %v3592
      %v3594 = vpop.f32.mrb[0].mxu0
      %3595 = vmatprep.mubr.f32.mxu0 0.0
      %v3596 = vand.u32 %v2929, 4294901760
      %v3597 = vsub.f32 %v2929, %v3596
      %3598 = vmatmul.mubr.f32.gmra.mrb[0].mxu0 %v3597
      %v3599 = vpop.f32.mrb[0].mxu0
      %v3600 = vadd.f32 %v3394, %v3599
      %v3601 = vpop.f32.mrb[0].mxu0
      %3602 = vmatprep.mubr.f32.mxu0 0.0
      %v3603 = vand.u32 %v2930, 4294901760
      %v3604 = vsub.f32 %v2930, %v3603
      %3605 = vmatmul.mubr.f32.gmra.mrb[0].mxu0 %v3604
      %v3606 = vpop.f32.mrb[0].mxu0
      %v3607 = vadd.f32 %v3400, %v3606
      %v3608 = vpop.f32.mrb[0].mxu0
      %3609 = vmatprep.mubr.f32.mxu0 0.0
      %v3610 = vand.u32 %v2931, 4294901760
      %v3611 = vsub.f32 %v2931, %v3610
      %3612 = vmatmul.mubr.f32.gmra.mrb[0].mxu0 %v3611
      %v3613 = vpop.f32.mrb[0].mxu0
      %v3614 = vadd.f32 %v3406, %v3613
      %v3615 = vpop.f32.mrb[0].mxu0
      %3616 = vmatprep.mubr.f32.mxu0 0.0
      %v3617 = vand.u32 %v2932, 4294901760
      %v3618 = vsub.f32 %v2932, %v3617
      %3619 = vmatmul.mubr.f32.gmra.mrb[0].mxu0 %v3618
      %v3620 = vpop.f32.mrb[0].mxu0
      %v3621 = vadd.f32 %v3412, %v3620
      %v3622 = vpop.f32.mrb[0].mxu0
      %3623 = vdwg.mxu0
      %3624 = vmatprep.subr.mxu0 0.0
      %v3625 = vand.u32 %v2885, 4294901760
      %3626 = vmatpush1.msra.mxu0 %v3625
      %3627 = vmatprep.subr.mxu0 0.0
      %v3628 = vand.u32 %v2886, 4294901760
      %3629 = vmatpush1.msra.mxu0 %v3628
      %3630 = vmatprep.subr.mxu0 0.0
      %v3631 = vand.u32 %v2887, 4294901760
      %3632 = vmatpush1.msra.mxu0 %v3631
      %3633 = vmatprep.subr.mxu0 0.0
      %v3634 = vand.u32 %v2888, 4294901760
      %3635 = vmatpush1.msra.mxu0 %v3634
      %3636 = vmatprep.subr.mxu0 0.0
      %v3637 = vand.u32 %v2889, 4294901760
      %3638 = vmatpush1.msra.mxu0 %v3637
      %3639 = vmatprep.subr.mxu0 0.0
      %v3640 = vand.u32 %v2890, 4294901760
      %3641 = vmatpush1.msra.mxu0 %v3640
      %3642 = vmatprep.subr.mxu0 0.0
      %v3643 = vand.u32 %v2891, 4294901760
      %3644 = vmatpush1.msra.mxu0 %v3643
      %3645 = vmatprep.subr.mxu0 0.0
      %v3646 = vand.u32 %v2892, 4294901760
      %3647 = vmatpush1.msra.mxu0 %v3646
      %3648 = vmatprep.subr.mxu0 0.0
      %v3649 = vand.u32 %v2893, 4294901760
      %3650 = vmatpush1.msra.mxu0 %v3649
      %3651 = vmatprep.subr.mxu0 0.0
      %v3652 = vand.u32 %v2894, 4294901760
      %3653 = vmatpush1.msra.mxu0 %v3652
      %3654 = vmatprep.subr.mxu0 0.0
      %v3655 = vand.u32 %v2895, 4294901760
      %3656 = vmatpush1.msra.mxu0 %v3655
      %3657 = vmatprep.subr.mxu0 0.0
      %v3658 = vand.u32 %v2896, 4294901760
      %3659 = vmatpush1.msra.mxu0 %v3658
      %3660 = vmatprep.subr.mxu0 0.0
      %v3661 = vand.u32 %v2897, 4294901760
      %3662 = vmatpush1.msra.mxu0 %v3661
      %3663 = vmatprep.subr.mxu0 0.0
      %v3664 = vand.u32 %v2898, 4294901760
      %3665 = vmatpush1.msra.mxu0 %v3664
      %3666 = vmatprep.subr.mxu0 0.0
      %v3667 = vand.u32 %v2899, 4294901760
      %3668 = vmatpush1.msra.mxu0 %v3667
      %3669 = vmatprep.subr.mxu0 0.0
      %v3670 = vand.u32 %v2900, 4294901760
      %3671 = vmatpush1.msra.mxu0 %v3670
      %3672 = vmatprep.subr.mxu0 0.0
      %3673 = vmatpush1.msra.mxu0 0.0
      %3674 = vmatprep.subr.mxu0 0.0
      %3675 = vmatpush1.msra.mxu0 0.0
      %3676 = vmatprep.subr.mxu0 0.0
      %3677 = vmatpush1.msra.mxu0 0.0
      %3678 = vmatprep.subr.mxu0 0.0
      %3679 = vmatpush1.msra.mxu0 0.0
      %3680 = vmatprep.subr.mxu0 0.0
      %3681 = vmatpush1.msra.mxu0 0.0
      %3682 = vmatprep.subr.mxu0 0.0
      %3683 = vmatpush1.msra.mxu0 0.0
      %3684 = vmatprep.subr.mxu0 0.0
      %3685 = vmatpush1.msra.mxu0 0.0
      %3686 = vmatprep.subr.mxu0 0.0
      %3687 = vmatpush1.msra.mxu0 0.0
      %3688 = vmatprep.subr.mxu0 0.0
      %3689 = vmatpush1.msra.mxu0 0.0
      %3690 = vmatprep.subr.mxu0 0.0
      %3691 = vmatpush1.msra.mxu0 0.0
      %3692 = vmatprep.subr.mxu0 0.0
      %3693 = vmatpush1.msra.mxu0 0.0
      %3694 = vmatprep.subr.mxu0 0.0
      %3695 = vmatpush1.msra.mxu0 0.0
      %3696 = vmatprep.subr.mxu0 0.0
      %3697 = vmatpush1.msra.mxu0 0.0
      %3698 = vmatprep.subr.mxu0 0.0
      %3699 = vmatpush1.msra.mxu0 0.0
      %3700 = vmatprep.subr.mxu0 0.0
      %3701 = vmatpush1.msra.mxu0 0.0
      %3702 = vmatprep.subr.mxu0 0.0
      %3703 = vmatpush1.msra.mxu0 0.0
      %3704 = vmatprep.mubr.f32.mxu0 0.0
      %v3705 = vand.u32 %v2917, 4294901760
      %v3706 = vsub.f32 %v2917, %v3705
      %v3707 = vand.u32 %v3706, 4294901760
      %3708 = vmatmul.mubr.f32.gmra.mrb[0].mxu0 %v3707
      %v3709 = vpop.f32.mrb[0].mxu0
      %v3710 = vadd.f32 %v3516, %v3709
      %v3711 = vpop.f32.mrb[0].mxu0
      %3712 = vmatprep.mubr.f32.mxu0 0.0
      %v3713 = vand.u32 %v2918, 4294901760
      %v3714 = vsub.f32 %v2918, %v3713
      %v3715 = vand.u32 %v3714, 4294901760
      %3716 = vmatmul.mubr.f32.gmra.mrb[0].mxu0 %v3715
      %v3717 = vpop.f32.mrb[0].mxu0
      %v3718 = vadd.f32 %v3523, %v3717
      %v3719 = vpop.f32.mrb[0].mxu0
      %3720 = vmatprep.mubr.f32.mxu0 0.0
      %v3721 = vand.u32 %v2919, 4294901760
      %v3722 = vsub.f32 %v2919, %v3721
      %v3723 = vand.u32 %v3722, 4294901760
      %3724 = vmatmul.mubr.f32.gmra.mrb[0].mxu0 %v3723
      %v3725 = vpop.f32.mrb[0].mxu0
      %v3726 = vadd.f32 %v3530, %v3725
      %v3727 = vpop.f32.mrb[0].mxu0
      %3728 = vmatprep.mubr.f32.mxu0 0.0
      %v3729 = vand.u32 %v2920, 4294901760
      %v3730 = vsub.f32 %v2920, %v3729
      %v3731 = vand.u32 %v3730, 4294901760
      %3732 = vmatmul.mubr.f32.gmra.mrb[0].mxu0 %v3731
      %v3733 = vpop.f32.mrb[0].mxu0
      %v3734 = vadd.f32 %v3537, %v3733
      %v3735 = vpop.f32.mrb[0].mxu0
      %3736 = vmatprep.mubr.f32.mxu0 0.0
      %v3737 = vand.u32 %v2921, 4294901760
      %v3738 = vsub.f32 %v2921, %v3737
      %v3739 = vand.u32 %v3738, 4294901760
      %3740 = vmatmul.mubr.f32.gmra.mrb[0].mxu0 %v3739
      %v3741 = vpop.f32.mrb[0].mxu0
      %v3742 = vadd.f32 %v3544, %v3741
      %v3743 = vpop.f32.mrb[0].mxu0
      %3744 = vmatprep.mubr.f32.mxu0 0.0
      %v3745 = vand.u32 %v2922, 4294901760
      %v3746 = vsub.f32 %v2922, %v3745
      %v3747 = vand.u32 %v3746, 4294901760
      %3748 = vmatmul.mubr.f32.gmra.mrb[0].mxu0 %v3747
      %v3749 = vpop.f32.mrb[0].mxu0
      %v3750 = vadd.f32 %v3551, %v3749
      %v3751 = vpop.f32.mrb[0].mxu0
      %3752 = vmatprep.mubr.f32.mxu0 0.0
      %v3753 = vand.u32 %v2923, 4294901760
      %v3754 = vsub.f32 %v2923, %v3753
      %v3755 = vand.u32 %v3754, 4294901760
      %3756 = vmatmul.mubr.f32.gmra.mrb[0].mxu0 %v3755
      %v3757 = vpop.f32.mrb[0].mxu0
      %v3758 = vadd.f32 %v3558, %v3757
      %v3759 = vpop.f32.mrb[0].mxu0
      %3760 = vmatprep.mubr.f32.mxu0 0.0
      %v3761 = vand.u32 %v2924, 4294901760
      %v3762 = vsub.f32 %v2924, %v3761
      %v3763 = vand.u32 %v3762, 4294901760
      %3764 = vmatmul.mubr.f32.gmra.mrb[0].mxu0 %v3763
      %v3765 = vpop.f32.mrb[0].mxu0
      %v3766 = vadd.f32 %v3565, %v3765
      %v3767 = vpop.f32.mrb[0].mxu0
      %3768 = vmatprep.mubr.f32.mxu0 0.0
      %v3769 = vand.u32 %v2925, 4294901760
      %v3770 = vsub.f32 %v2925, %v3769
      %v3771 = vand.u32 %v3770, 4294901760
      %3772 = vmatmul.mubr.f32.gmra.mrb[0].mxu0 %v3771
      %v3773 = vpop.f32.mrb[0].mxu0
      %v3774 = vadd.f32 %v3572, %v3773
      %v3775 = vpop.f32.mrb[0].mxu0
      %3776 = vmatprep.mubr.f32.mxu0 0.0
      %v3777 = vand.u32 %v2926, 4294901760
      %v3778 = vsub.f32 %v2926, %v3777
      %v3779 = vand.u32 %v3778, 4294901760
      %3780 = vmatmul.mubr.f32.gmra.mrb[0].mxu0 %v3779
      %v3781 = vpop.f32.mrb[0].mxu0
      %v3782 = vadd.f32 %v3579, %v3781
      %v3783 = vpop.f32.mrb[0].mxu0
      %3784 = vmatprep.mubr.f32.mxu0 0.0
      %v3785 = vand.u32 %v2927, 4294901760
      %v3786 = vsub.f32 %v2927, %v3785
      %v3787 = vand.u32 %v3786, 4294901760
      %3788 = vmatmul.mubr.f32.gmra.mrb[0].mxu0 %v3787
      %v3789 = vpop.f32.mrb[0].mxu0
      %v3790 = vadd.f32 %v3586, %v3789
      %v3791 = vpop.f32.mrb[0].mxu0
      %3792 = vmatprep.mubr.f32.mxu0 0.0
      %v3793 = vand.u32 %v2928, 4294901760
      %v3794 = vsub.f32 %v2928, %v3793
      %v3795 = vand.u32 %v3794, 4294901760
      %3796 = vmatmul.mubr.f32.gmra.mrb[0].mxu0 %v3795
      %v3797 = vpop.f32.mrb[0].mxu0
      %v3798 = vadd.f32 %v3593, %v3797
      %v3799 = vpop.f32.mrb[0].mxu0
      %3800 = vmatprep.mubr.f32.mxu0 0.0
      %v3801 = vand.u32 %v2929, 4294901760
      %v3802 = vsub.f32 %v2929, %v3801
      %v3803 = vand.u32 %v3802, 4294901760
      %3804 = vmatmul.mubr.f32.gmra.mrb[0].mxu0 %v3803
      %v3805 = vpop.f32.mrb[0].mxu0
      %v3806 = vadd.f32 %v3600, %v3805
      %v3807 = vpop.f32.mrb[0].mxu0
      %3808 = vmatprep.mubr.f32.mxu0 0.0
      %v3809 = vand.u32 %v2930, 4294901760
      %v3810 = vsub.f32 %v2930, %v3809
      %v3811 = vand.u32 %v3810, 4294901760
      %3812 = vmatmul.mubr.f32.gmra.mrb[0].mxu0 %v3811
      %v3813 = vpop.f32.mrb[0].mxu0
      %v3814 = vadd.f32 %v3607, %v3813
      %v3815 = vpop.f32.mrb[0].mxu0
      %3816 = vmatprep.mubr.f32.mxu0 0.0
      %v3817 = vand.u32 %v2931, 4294901760
      %v3818 = vsub.f32 %v2931, %v3817
      %v3819 = vand.u32 %v3818, 4294901760
      %3820 = vmatmul.mubr.f32.gmra.mrb[0].mxu0 %v3819
      %v3821 = vpop.f32.mrb[0].mxu0
      %v3822 = vadd.f32 %v3614, %v3821
      %v3823 = vpop.f32.mrb[0].mxu0
      %3824 = vmatprep.mubr.f32.mxu0 0.0
      %v3825 = vand.u32 %v2932, 4294901760
      %v3826 = vsub.f32 %v2932, %v3825
      %v3827 = vand.u32 %v3826, 4294901760
      %3828 = vmatmul.mubr.f32.gmra.mrb[0].mxu0 %v3827
      %v3829 = vpop.f32.mrb[0].mxu0
      %v3830 = vadd.f32 %v3621, %v3829
      %v3831 = vpop.f32.mrb[0].mxu0
      %3832 = vdwg.mxu0
      %3833 = vmatprep.subr.mxu0 0.0
      %v3834 = vand.u32 %v2885, 4294901760
      %v3835 = vsub.f32 %v2885, %v3834
      %v3836 = vand.u32 %v3835, 4294901760
      %3837 = vmatpush1.msra.mxu0 %v3836
      %3838 = vmatprep.subr.mxu0 0.0
      %v3839 = vand.u32 %v2886, 4294901760
      %v3840 = vsub.f32 %v2886, %v3839
      %v3841 = vand.u32 %v3840, 4294901760
      %3842 = vmatpush1.msra.mxu0 %v3841
      %3843 = vmatprep.subr.mxu0 0.0
      %v3844 = vand.u32 %v2887, 4294901760
      %v3845 = vsub.f32 %v2887, %v3844
      %v3846 = vand.u32 %v3845, 4294901760
      %3847 = vmatpush1.msra.mxu0 %v3846
      %3848 = vmatprep.subr.mxu0 0.0
      %v3849 = vand.u32 %v2888, 4294901760
      %v3850 = vsub.f32 %v2888, %v3849
      %v3851 = vand.u32 %v3850, 4294901760
      %3852 = vmatpush1.msra.mxu0 %v3851
      %3853 = vmatprep.subr.mxu0 0.0
      %v3854 = vand.u32 %v2889, 4294901760
      %v3855 = vsub.f32 %v2889, %v3854
      %v3856 = vand.u32 %v3855, 4294901760
      %3857 = vmatpush1.msra.mxu0 %v3856
      %3858 = vmatprep.subr.mxu0 0.0
      %v3859 = vand.u32 %v2890, 4294901760
      %v3860 = vsub.f32 %v2890, %v3859
      %v3861 = vand.u32 %v3860, 4294901760
      %3862 = vmatpush1.msra.mxu0 %v3861
      %3863 = vmatprep.subr.mxu0 0.0
      %v3864 = vand.u32 %v2891, 4294901760
      %v3865 = vsub.f32 %v2891, %v3864
      %v3866 = vand.u32 %v3865, 4294901760
      %3867 = vmatpush1.msra.mxu0 %v3866
      %3868 = vmatprep.subr.mxu0 0.0
      %v3869 = vand.u32 %v2892, 4294901760
      %v3870 = vsub.f32 %v2892, %v3869
      %v3871 = vand.u32 %v3870, 4294901760
      %3872 = vmatpush1.msra.mxu0 %v3871
      %3873 = vmatprep.subr.mxu0 0.0
      %v3874 = vand.u32 %v2893, 4294901760
      %v3875 = vsub.f32 %v2893, %v3874
      %v3876 = vand.u32 %v3875, 4294901760
      %3877 = vmatpush1.msra.mxu0 %v3876
      %3878 = vmatprep.subr.mxu0 0.0
      %v3879 = vand.u32 %v2894, 4294901760
      %v3880 = vsub.f32 %v2894, %v3879
      %v3881 = vand.u32 %v3880, 4294901760
      %3882 = vmatpush1.msra.mxu0 %v3881
      %3883 = vmatprep.subr.mxu0 0.0
      %v3884 = vand.u32 %v2895, 4294901760
      %v3885 = vsub.f32 %v2895, %v3884
      %v3886 = vand.u32 %v3885, 4294901760
      %3887 = vmatpush1.msra.mxu0 %v3886
      %3888 = vmatprep.subr.mxu0 0.0
      %v3889 = vand.u32 %v2896, 4294901760
      %v3890 = vsub.f32 %v2896, %v3889
      %v3891 = vand.u32 %v3890, 4294901760
      %3892 = vmatpush1.msra.mxu0 %v3891
      %3893 = vmatprep.subr.mxu0 0.0
      %v3894 = vand.u32 %v2897, 4294901760
      %v3895 = vsub.f32 %v2897, %v3894
      %v3896 = vand.u32 %v3895, 4294901760
      %3897 = vmatpush1.msra.mxu0 %v3896
      %3898 = vmatprep.subr.mxu0 0.0
      %v3899 = vand.u32 %v2898, 4294901760
      %v3900 = vsub.f32 %v2898, %v3899
      %v3901 = vand.u32 %v3900, 4294901760
      %3902 = vmatpush1.msra.mxu0 %v3901
      %3903 = vmatprep.subr.mxu0 0.0
      %v3904 = vand.u32 %v2899, 4294901760
      %v3905 = vsub.f32 %v2899, %v3904
      %v3906 = vand.u32 %v3905, 4294901760
      %3907 = vmatpush1.msra.mxu0 %v3906
      %3908 = vmatprep.subr.mxu0 0.0
      %v3909 = vand.u32 %v2900, 4294901760
      %v3910 = vsub.f32 %v2900, %v3909
      %v3911 = vand.u32 %v3910, 4294901760
      %3912 = vmatpush1.msra.mxu0 %v3911
      %3913 = vmatprep.subr.mxu0 0.0
      %3914 = vmatpush1.msra.mxu0 0.0
      %3915 = vmatprep.subr.mxu0 0.0
      %3916 = vmatpush1.msra.mxu0 0.0
      %3917 = vmatprep.subr.mxu0 0.0
      %3918 = vmatpush1.msra.mxu0 0.0
      %3919 = vmatprep.subr.mxu0 0.0
      %3920 = vmatpush1.msra.mxu0 0.0
      %3921 = vmatprep.subr.mxu0 0.0
      %3922 = vmatpush1.msra.mxu0 0.0
      %3923 = vmatprep.subr.mxu0 0.0
      %3924 = vmatpush1.msra.mxu0 0.0
      %3925 = vmatprep.subr.mxu0 0.0
      %3926 = vmatpush1.msra.mxu0 0.0
      %3927 = vmatprep.subr.mxu0 0.0
      %3928 = vmatpush1.msra.mxu0 0.0
      %3929 = vmatprep.subr.mxu0 0.0
      %3930 = vmatpush1.msra.mxu0 0.0
      %3931 = vmatprep.subr.mxu0 0.0
      %3932 = vmatpush1.msra.mxu0 0.0
      %3933 = vmatprep.subr.mxu0 0.0
      %3934 = vmatpush1.msra.mxu0 0.0
      %3935 = vmatprep.subr.mxu0 0.0
      %3936 = vmatpush1.msra.mxu0 0.0
      %3937 = vmatprep.subr.mxu0 0.0
      %3938 = vmatpush1.msra.mxu0 0.0
      %3939 = vmatprep.subr.mxu0 0.0
      %3940 = vmatpush1.msra.mxu0 0.0
      %3941 = vmatprep.subr.mxu0 0.0
      %3942 = vmatpush1.msra.mxu0 0.0
      %3943 = vmatprep.subr.mxu0 0.0
      %3944 = vmatpush1.msra.mxu0 0.0
      %3945 = vmatprep.mubr.f32.mxu0 0.0
      %v3946 = vand.u32 %v2917, 4294901760
      %3947 = vmatmul.mubr.f32.gmra.mrb[0].mxu0 %v3946
      %v3948 = vpop.f32.mrb[0].mxu0
      %v3949 = vadd.f32 %v3710, %v3948
      %v3950 = vpop.f32.mrb[0].mxu0
      %3951 = vmatprep.mubr.f32.mxu0 0.0
      %v3952 = vand.u32 %v2918, 4294901760
      %3953 = vmatmul.mubr.f32.gmra.mrb[0].mxu0 %v3952
      %v3954 = vpop.f32.mrb[0].mxu0
      %v3955 = vadd.f32 %v3718, %v3954
      %v3956 = vpop.f32.mrb[0].mxu0
      %3957 = vmatprep.mubr.f32.mxu0 0.0
      %v3958 = vand.u32 %v2919, 4294901760
      %3959 = vmatmul.mubr.f32.gmra.mrb[0].mxu0 %v3958
      %v3960 = vpop.f32.mrb[0].mxu0
      %v3961 = vadd.f32 %v3726, %v3960
      %v3962 = vpop.f32.mrb[0].mxu0
      %3963 = vmatprep.mubr.f32.mxu0 0.0
      %v3964 = vand.u32 %v2920, 4294901760
      %3965 = vmatmul.mubr.f32.gmra.mrb[0].mxu0 %v3964
      %v3966 = vpop.f32.mrb[0].mxu0
      %v3967 = vadd.f32 %v3734, %v3966
      %v3968 = vpop.f32.mrb[0].mxu0
      %3969 = vmatprep.mubr.f32.mxu0 0.0
      %v3970 = vand.u32 %v2921, 4294901760
      %3971 = vmatmul.mubr.f32.gmra.mrb[0].mxu0 %v3970
      %v3972 = vpop.f32.mrb[0].mxu0
      %v3973 = vadd.f32 %v3742, %v3972
      %v3974 = vpop.f32.mrb[0].mxu0
      %3975 = vmatprep.mubr.f32.mxu0 0.0
      %v3976 = vand.u32 %v2922, 4294901760
      %3977 = vmatmul.mubr.f32.gmra.mrb[0].mxu0 %v3976
      %v3978 = vpop.f32.mrb[0].mxu0
      %v3979 = vadd.f32 %v3750, %v3978
      %v3980 = vpop.f32.mrb[0].mxu0
      %3981 = vmatprep.mubr.f32.mxu0 0.0
      %v3982 = vand.u32 %v2923, 4294901760
      %3983 = vmatmul.mubr.f32.gmra.mrb[0].mxu0 %v3982
      %v3984 = vpop.f32.mrb[0].mxu0
      %v3985 = vadd.f32 %v3758, %v3984
      %v3986 = vpop.f32.mrb[0].mxu0
      %3987 = vmatprep.mubr.f32.mxu0 0.0
      %v3988 = vand.u32 %v2924, 4294901760
      %3989 = vmatmul.mubr.f32.gmra.mrb[0].mxu0 %v3988
      %v3990 = vpop.f32.mrb[0].mxu0
      %v3991 = vadd.f32 %v3766, %v3990
      %v3992 = vpop.f32.mrb[0].mxu0
      %3993 = vmatprep.mubr.f32.mxu0 0.0
      %v3994 = vand.u32 %v2925, 4294901760
      %3995 = vmatmul.mubr.f32.gmra.mrb[0].mxu0 %v3994
      %v3996 = vpop.f32.mrb[0].mxu0
      %v3997 = vadd.f32 %v3774, %v3996
      %v3998 = vpop.f32.mrb[0].mxu0
      %3999 = vmatprep.mubr.f32.mxu0 0.0
      %v4000 = vand.u32 %v2926, 4294901760
      %4001 = vmatmul.mubr.f32.gmra.mrb[0].mxu0 %v4000
      %v4002 = vpop.f32.mrb[0].mxu0
      %v4003 = vadd.f32 %v3782, %v4002
      %v4004 = vpop.f32.mrb[0].mxu0
      %4005 = vmatprep.mubr.f32.mxu0 0.0
      %v4006 = vand.u32 %v2927, 4294901760
      %4007 = vmatmul.mubr.f32.gmra.mrb[0].mxu0 %v4006
      %v4008 = vpop.f32.mrb[0].mxu0
      %v4009 = vadd.f32 %v3790, %v4008
      %v4010 = vpop.f32.mrb[0].mxu0
      %4011 = vmatprep.mubr.f32.mxu0 0.0
      %v4012 = vand.u32 %v2928, 4294901760
      %4013 = vmatmul.mubr.f32.gmra.mrb[0].mxu0 %v4012
      %v4014 = vpop.f32.mrb[0].mxu0
      %v4015 = vadd.f32 %v3798, %v4014
      %v4016 = vpop.f32.mrb[0].mxu0
      %4017 = vmatprep.mubr.f32.mxu0 0.0
      %v4018 = vand.u32 %v2929, 4294901760
      %4019 = vmatmul.mubr.f32.gmra.mrb[0].mxu0 %v4018
      %v4020 = vpop.f32.mrb[0].mxu0
      %v4021 = vadd.f32 %v3806, %v4020
      %v4022 = vpop.f32.mrb[0].mxu0
      %4023 = vmatprep.mubr.f32.mxu0 0.0
      %v4024 = vand.u32 %v2930, 4294901760
      %4025 = vmatmul.mubr.f32.gmra.mrb[0].mxu0 %v4024
      %v4026 = vpop.f32.mrb[0].mxu0
      %v4027 = vadd.f32 %v3814, %v4026
      %v4028 = vpop.f32.mrb[0].mxu0
      %4029 = vmatprep.mubr.f32.mxu0 0.0
      %v4030 = vand.u32 %v2931, 4294901760
      %4031 = vmatmul.mubr.f32.gmra.mrb[0].mxu0 %v4030
      %v4032 = vpop.f32.mrb[0].mxu0
      %v4033 = vadd.f32 %v3822, %v4032
      %v4034 = vpop.f32.mrb[0].mxu0
      %4035 = vmatprep.mubr.f32.mxu0 0.0
      %v4036 = vand.u32 %v2932, 4294901760
      %4037 = vmatmul.mubr.f32.gmra.mrb[0].mxu0 %v4036
      %v4038 = vpop.f32.mrb[0].mxu0
      %v4039 = vadd.f32 %v3830, %v4038
      %v4040 = vpop.f32.mrb[0].mxu0
      %4041 = vdwg.mxu0
      %4042 = vmatprep.subr.mxu0 0.0
      %v4043 = vand.u32 %v2885, 4294901760
      %4044 = vmatpush1.msra.mxu0 %v4043
      %4045 = vmatprep.subr.mxu0 0.0
      %v4046 = vand.u32 %v2886, 4294901760
      %4047 = vmatpush1.msra.mxu0 %v4046
      %4048 = vmatprep.subr.mxu0 0.0
      %v4049 = vand.u32 %v2887, 4294901760
      %4050 = vmatpush1.msra.mxu0 %v4049
      %4051 = vmatprep.subr.mxu0 0.0
      %v4052 = vand.u32 %v2888, 4294901760
      %4053 = vmatpush1.msra.mxu0 %v4052
      %4054 = vmatprep.subr.mxu0 0.0
      %v4055 = vand.u32 %v2889, 4294901760
      %4056 = vmatpush1.msra.mxu0 %v4055
      %4057 = vmatprep.subr.mxu0 0.0
      %v4058 = vand.u32 %v2890, 4294901760
      %4059 = vmatpush1.msra.mxu0 %v4058
      %4060 = vmatprep.subr.mxu0 0.0
      %v4061 = vand.u32 %v2891, 4294901760
      %4062 = vmatpush1.msra.mxu0 %v4061
      %4063 = vmatprep.subr.mxu0 0.0
      %v4064 = vand.u32 %v2892, 4294901760
      %4065 = vmatpush1.msra.mxu0 %v4064
      %4066 = vmatprep.subr.mxu0 0.0
      %v4067 = vand.u32 %v2893, 4294901760
      %4068 = vmatpush1.msra.mxu0 %v4067
      %4069 = vmatprep.subr.mxu0 0.0
      %v4070 = vand.u32 %v2894, 4294901760
      %4071 = vmatpush1.msra.mxu0 %v4070
      %4072 = vmatprep.subr.mxu0 0.0
      %v4073 = vand.u32 %v2895, 4294901760
      %4074 = vmatpush1.msra.mxu0 %v4073
      %4075 = vmatprep.subr.mxu0 0.0
      %v4076 = vand.u32 %v2896, 4294901760
      %4077 = vmatpush1.msra.mxu0 %v4076
      %4078 = vmatprep.subr.mxu0 0.0
      %v4079 = vand.u32 %v2897, 4294901760
      %4080 = vmatpush1.msra.mxu0 %v4079
      %4081 = vmatprep.subr.mxu0 0.0
      %v4082 = vand.u32 %v2898, 4294901760
      %4083 = vmatpush1.msra.mxu0 %v4082
      %4084 = vmatprep.subr.mxu0 0.0
      %v4085 = vand.u32 %v2899, 4294901760
      %4086 = vmatpush1.msra.mxu0 %v4085
      %4087 = vmatprep.subr.mxu0 0.0
      %v4088 = vand.u32 %v2900, 4294901760
      %4089 = vmatpush1.msra.mxu0 %v4088
      %4090 = vmatprep.subr.mxu0 0.0
      %4091 = vmatpush1.msra.mxu0 0.0
      %4092 = vmatprep.subr.mxu0 0.0
      %4093 = vmatpush1.msra.mxu0 0.0
      %4094 = vmatprep.subr.mxu0 0.0
      %4095 = vmatpush1.msra.mxu0 0.0
      %4096 = vmatprep.subr.mxu0 0.0
      %4097 = vmatpush1.msra.mxu0 0.0
      %4098 = vmatprep.subr.mxu0 0.0
      %4099 = vmatpush1.msra.mxu0 0.0
      %4100 = vmatprep.subr.mxu0 0.0
      %4101 = vmatpush1.msra.mxu0 0.0
      %4102 = vmatprep.subr.mxu0 0.0
      %4103 = vmatpush1.msra.mxu0 0.0
      %4104 = vmatprep.subr.mxu0 0.0
      %4105 = vmatpush1.msra.mxu0 0.0
      %4106 = vmatprep.subr.mxu0 0.0
      %4107 = vmatpush1.msra.mxu0 0.0
      %4108 = vmatprep.subr.mxu0 0.0
      %4109 = vmatpush1.msra.mxu0 0.0
      %4110 = vmatprep.subr.mxu0 0.0
      %4111 = vmatpush1.msra.mxu0 0.0
      %4112 = vmatprep.subr.mxu0 0.0
      %4113 = vmatpush1.msra.mxu0 0.0
      %4114 = vmatprep.subr.mxu0 0.0
      %4115 = vmatpush1.msra.mxu0 0.0
      %4116 = vmatprep.subr.mxu0 0.0
      %4117 = vmatpush1.msra.mxu0 0.0
      %4118 = vmatprep.subr.mxu0 0.0
      %4119 = vmatpush1.msra.mxu0 0.0
      %4120 = vmatprep.subr.mxu0 0.0
      %4121 = vmatpush1.msra.mxu0 0.0
      %4122 = vmatprep.mubr.f32.mxu0 0.0
      %v4123 = vand.u32 %v2917, 4294901760
      %4124 = vmatmul.mubr.f32.gmra.mrb[0].mxu0 %v4123
      %v4125 = vpop.f32.mrb[0].mxu0
      %v4126 = vadd.f32 %v3949, %v4125
      %v4127 = vpop.f32.mrb[0].mxu0
      %4128 = vmatprep.mubr.f32.mxu0 0.0
      %v4129 = vand.u32 %v2918, 4294901760
      %4130 = vmatmul.mubr.f32.gmra.mrb[0].mxu0 %v4129
      %v4131 = vpop.f32.mrb[0].mxu0
      %v4132 = vadd.f32 %v3955, %v4131
      %v4133 = vpop.f32.mrb[0].mxu0
      %4134 = vmatprep.mubr.f32.mxu0 0.0
      %v4135 = vand.u32 %v2919, 4294901760
      %4136 = vmatmul.mubr.f32.gmra.mrb[0].mxu0 %v4135
      %v4137 = vpop.f32.mrb[0].mxu0
      %v4138 = vadd.f32 %v3961, %v4137
      %v4139 = vpop.f32.mrb[0].mxu0
      %4140 = vmatprep.mubr.f32.mxu0 0.0
      %v4141 = vand.u32 %v2920, 4294901760
      %4142 = vmatmul.mubr.f32.gmra.mrb[0].mxu0 %v4141
      %v4143 = vpop.f32.mrb[0].mxu0
      %v4144 = vadd.f32 %v3967, %v4143
      %v4145 = vpop.f32.mrb[0].mxu0
      %4146 = vmatprep.mubr.f32.mxu0 0.0
      %v4147 = vand.u32 %v2921, 4294901760
      %4148 = vmatmul.mubr.f32.gmra.mrb[0].mxu0 %v4147
      %v4149 = vpop.f32.mrb[0].mxu0
      %v4150 = vadd.f32 %v3973, %v4149
      %v4151 = vpop.f32.mrb[0].mxu0
      %4152 = vmatprep.mubr.f32.mxu0 0.0
      %v4153 = vand.u32 %v2922, 4294901760
      %4154 = vmatmul.mubr.f32.gmra.mrb[0].mxu0 %v4153
      %v4155 = vpop.f32.mrb[0].mxu0
      %v4156 = vadd.f32 %v3979, %v4155
      %v4157 = vpop.f32.mrb[0].mxu0
      %4158 = vmatprep.mubr.f32.mxu0 0.0
      %v4159 = vand.u32 %v2923, 4294901760
      %4160 = vmatmul.mubr.f32.gmra.mrb[0].mxu0 %v4159
      %v4161 = vpop.f32.mrb[0].mxu0
      %v4162 = vadd.f32 %v3985, %v4161
      %v4163 = vpop.f32.mrb[0].mxu0
      %4164 = vmatprep.mubr.f32.mxu0 0.0
      %v4165 = vand.u32 %v2924, 4294901760
      %4166 = vmatmul.mubr.f32.gmra.mrb[0].mxu0 %v4165
      %v4167 = vpop.f32.mrb[0].mxu0
      %v4168 = vadd.f32 %v3991, %v4167
      %v4169 = vpop.f32.mrb[0].mxu0
      %4170 = vmatprep.mubr.f32.mxu0 0.0
      %v4171 = vand.u32 %v2925, 4294901760
      %4172 = vmatmul.mubr.f32.gmra.mrb[0].mxu0 %v4171
      %v4173 = vpop.f32.mrb[0].mxu0
      %v4174 = vadd.f32 %v3997, %v4173
      %v4175 = vpop.f32.mrb[0].mxu0
      %4176 = vmatprep.mubr.f32.mxu0 0.0
      %v4177 = vand.u32 %v2926, 4294901760
      %4178 = vmatmul.mubr.f32.gmra.mrb[0].mxu0 %v4177
      %v4179 = vpop.f32.mrb[0].mxu0
      %v4180 = vadd.f32 %v4003, %v4179
      %v4181 = vpop.f32.mrb[0].mxu0
      %4182 = vmatprep.mubr.f32.mxu0 0.0
      %v4183 = vand.u32 %v2927, 4294901760
      %4184 = vmatmul.mubr.f32.gmra.mrb[0].mxu0 %v4183
      %v4185 = vpop.f32.mrb[0].mxu0
      %v4186 = vadd.f32 %v4009, %v4185
      %v4187 = vpop.f32.mrb[0].mxu0
      %4188 = vmatprep.mubr.f32.mxu0 0.0
      %v4189 = vand.u32 %v2928, 4294901760
      %4190 = vmatmul.mubr.f32.gmra.mrb[0].mxu0 %v4189
      %v4191 = vpop.f32.mrb[0].mxu0
      %v4192 = vadd.f32 %v4015, %v4191
      %v4193 = vpop.f32.mrb[0].mxu0
      %4194 = vmatprep.mubr.f32.mxu0 0.0
      %v4195 = vand.u32 %v2929, 4294901760
      %4196 = vmatmul.mubr.f32.gmra.mrb[0].mxu0 %v4195
      %v4197 = vpop.f32.mrb[0].mxu0
      %v4198 = vadd.f32 %v4021, %v4197
      %v4199 = vpop.f32.mrb[0].mxu0
      %4200 = vmatprep.mubr.f32.mxu0 0.0
      %v4201 = vand.u32 %v2930, 4294901760
      %4202 = vmatmul.mubr.f32.gmra.mrb[0].mxu0 %v4201
      %v4203 = vpop.f32.mrb[0].mxu0
      %v4204 = vadd.f32 %v4027, %v4203
      %v4205 = vpop.f32.mrb[0].mxu0
      %4206 = vmatprep.mubr.f32.mxu0 0.0
      %v4207 = vand.u32 %v2931, 4294901760
      %4208 = vmatmul.mubr.f32.gmra.mrb[0].mxu0 %v4207
      %v4209 = vpop.f32.mrb[0].mxu0
      %v4210 = vadd.f32 %v4033, %v4209
      %v4211 = vpop.f32.mrb[0].mxu0
      %4212 = vmatprep.mubr.f32.mxu0 0.0
      %v4213 = vand.u32 %v2932, 4294901760
      %4214 = vmatmul.mubr.f32.gmra.mrb[0].mxu0 %v4213
      %v4215 = vpop.f32.mrb[0].mxu0
      %v4216 = vadd.f32 %v4039, %v4215
      %v4217 = vpop.f32.mrb[0].mxu0
      %4218 = vdwg.mxu0
      %v4219 = vmul.f32 %v4126, 0.0078125
      %v4220 = vmul.f32 %v4132, 0.0078125
      %v4221 = vmul.f32 %v4138, 0.0078125
      %v4222 = vmul.f32 %v4144, 0.0078125
      %v4223 = vmul.f32 %v4150, 0.0078125
      %v4224 = vmul.f32 %v4156, 0.0078125
      %v4225 = vmul.f32 %v4162, 0.0078125
      %v4226 = vmul.f32 %v4168, 0.0078125
      %v4227 = vmul.f32 %v4174, 0.0078125
      %v4228 = vmul.f32 %v4180, 0.0078125
      %v4229 = vmul.f32 %v4186, 0.0078125
      %v4230 = vmul.f32 %v4192, 0.0078125
      %v4231 = vmul.f32 %v4198, 0.0078125
      %v4232 = vmul.f32 %v4204, 0.0078125
      %v4233 = vmul.f32 %v4210, 0.0078125
      %v4234 = vmul.f32 %v4216, 0.0078125
      %v4235 = vmul.f32 %v2853, %v2853
      %v4236 = vmul.f32 %v2854, %v2854
      %v4237 = vmul.f32 %v2855, %v2855
      %v4238 = vmul.f32 %v2856, %v2856
      %v4239 = vmul.f32 %v2857, %v2857
      %v4240 = vmul.f32 %v2858, %v2858
      %v4241 = vmul.f32 %v2859, %v2859
      %v4242 = vmul.f32 %v2860, %v2860
      %v4243 = vmul.f32 %v2861, %v2861
      %v4244 = vmul.f32 %v2862, %v2862
      %v4245 = vmul.f32 %v2863, %v2863
      %v4246 = vmul.f32 %v2864, %v2864
      %v4247 = vmul.f32 %v2865, %v2865
      %v4248 = vmul.f32 %v2866, %v2866
      %v4249 = vmul.f32 %v2867, %v2867
      %v4250 = vmul.f32 %v2868, %v2868
      %v4251 = vsub.f32 %v4219, %v4235
      %v4252 = vsub.f32 %v4220, %v4236
      %v4253 = vsub.f32 %v4221, %v4237
      %v4254 = vsub.f32 %v4222, %v4238
      %v4255 = vsub.f32 %v4223, %v4239
      %v4256 = vsub.f32 %v4224, %v4240
      %v4257 = vsub.f32 %v4225, %v4241
      %v4258 = vsub.f32 %v4226, %v4242
      %v4259 = vsub.f32 %v4227, %v4243
      %v4260 = vsub.f32 %v4228, %v4244
      %v4261 = vsub.f32 %v4229, %v4245
      %v4262 = vsub.f32 %v4230, %v4246
      %v4263 = vsub.f32 %v4231, %v4247
      %v4264 = vsub.f32 %v4232, %v4248
      %v4265 = vsub.f32 %v4233, %v4249
      %v4266 = vsub.f32 %v4234, %v4250
      %v4267 = vmax.f32 %v4251, 0.0
      %v4268 = vmax.f32 %v4252, 0.0
      %v4269 = vmax.f32 %v4253, 0.0
      %v4270 = vmax.f32 %v4254, 0.0
      %v4271 = vmax.f32 %v4255, 0.0
      %v4272 = vmax.f32 %v4256, 0.0
      %v4273 = vmax.f32 %v4257, 0.0
      %v4274 = vmax.f32 %v4258, 0.0
      %v4275 = vmax.f32 %v4259, 0.0
      %v4276 = vmax.f32 %v4260, 0.0
      %v4277 = vmax.f32 %v4261, 0.0
      %v4278 = vmax.f32 %v4262, 0.0
      %v4279 = vmax.f32 %v4263, 0.0
      %v4280 = vmax.f32 %v4264, 0.0
      %v4281 = vmax.f32 %v4265, 0.0
      %v4282 = vmax.f32 %v4266, 0.0
      %v4283 = vadd.f32 %v4267, 1e-05
      %v4284 = vadd.f32 %v4268, 1e-05
      %v4285 = vadd.f32 %v4269, 1e-05
      %v4286 = vadd.f32 %v4270, 1e-05
      %v4287 = vadd.f32 %v4271, 1e-05
      %v4288 = vadd.f32 %v4272, 1e-05
      %v4289 = vadd.f32 %v4273, 1e-05
      %v4290 = vadd.f32 %v4274, 1e-05
      %v4291 = vadd.f32 %v4275, 1e-05
      %v4292 = vadd.f32 %v4276, 1e-05
      %v4293 = vadd.f32 %v4277, 1e-05
      %v4294 = vadd.f32 %v4278, 1e-05
      %v4295 = vadd.f32 %v4279, 1e-05
      %v4296 = vadd.f32 %v4280, 1e-05
      %v4297 = vadd.f32 %v4281, 1e-05
      %v4298 = vadd.f32 %v4282, 1e-05
      %v4299 = vrsqrt.pop %v4283
      %v4300 = vrsqrt.pop %v4284
      %v4301 = vrsqrt.pop %v4285
      %v4302 = vrsqrt.pop %v4286
      %v4303 = vrsqrt.pop %v4287
      %v4304 = vrsqrt.pop %v4288
      %v4305 = vrsqrt.pop %v4289
      %v4306 = vrsqrt.pop %v4290
      %v4307 = vrsqrt.pop %v4291
      %v4308 = vrsqrt.pop %v4292
      %v4309 = vrsqrt.pop %v4293
      %v4310 = vrsqrt.pop %v4294
      %v4311 = vrsqrt.pop %v4295
      %v4312 = vrsqrt.pop %v4296
      %v4313 = vrsqrt.pop %v4297
      %v4314 = vrsqrt.pop %v4298
      %v4315 = vmul.f32 %v285, %v4299
      %v4316 = vmul.f32 %v286, %v4300
      %v4317 = vmul.f32 %v287, %v4301
      %v4318 = vmul.f32 %v288, %v4302
      %v4319 = vmul.f32 %v289, %v4303
      %v4320 = vmul.f32 %v290, %v4304
      %v4321 = vmul.f32 %v291, %v4305
      %v4322 = vmul.f32 %v292, %v4306
      %v4323 = vmul.f32 %v293, %v4307
      %v4324 = vmul.f32 %v294, %v4308
      %v4325 = vmul.f32 %v295, %v4309
      %v4326 = vmul.f32 %v296, %v4310
      %v4327 = vmul.f32 %v297, %v4311
      %v4328 = vmul.f32 %v298, %v4312
      %v4329 = vmul.f32 %v299, %v4313
      %v4330 = vmul.f32 %v300, %v4314
      %4331 = vmatprep.subr.mxu0 0.0
      %v4332 = vand.u32 %v4315, 4294901760
      %4333 = vmatpush1.msra.mxu0 %v4332
      %4334 = vmatprep.subr.mxu0 0.0
      %v4335 = vand.u32 %v4316, 4294901760
      %4336 = vmatpush1.msra.mxu0 %v4335
      %4337 = vmatprep.subr.mxu0 0.0
      %v4338 = vand.u32 %v4317, 4294901760
      %4339 = vmatpush1.msra.mxu0 %v4338
      %4340 = vmatprep.subr.mxu0 0.0
      %v4341 = vand.u32 %v4318, 4294901760
      %4342 = vmatpush1.msra.mxu0 %v4341
      %4343 = vmatprep.subr.mxu0 0.0
      %v4344 = vand.u32 %v4319, 4294901760
      %4345 = vmatpush1.msra.mxu0 %v4344
      %4346 = vmatprep.subr.mxu0 0.0
      %v4347 = vand.u32 %v4320, 4294901760
      %4348 = vmatpush1.msra.mxu0 %v4347
      %4349 = vmatprep.subr.mxu0 0.0
      %v4350 = vand.u32 %v4321, 4294901760
      %4351 = vmatpush1.msra.mxu0 %v4350
      %4352 = vmatprep.subr.mxu0 0.0
      %v4353 = vand.u32 %v4322, 4294901760
      %4354 = vmatpush1.msra.mxu0 %v4353
      %4355 = vmatprep.subr.mxu0 0.0
      %v4356 = vand.u32 %v4323, 4294901760
      %4357 = vmatpush1.msra.mxu0 %v4356
      %4358 = vmatprep.subr.mxu0 0.0
      %v4359 = vand.u32 %v4324, 4294901760
      %4360 = vmatpush1.msra.mxu0 %v4359
      %4361 = vmatprep.subr.mxu0 0.0
      %v4362 = vand.u32 %v4325, 4294901760
      %4363 = vmatpush1.msra.mxu0 %v4362
      %4364 = vmatprep.subr.mxu0 0.0
      %v4365 = vand.u32 %v4326, 4294901760
      %4366 = vmatpush1.msra.mxu0 %v4365
      %4367 = vmatprep.subr.mxu0 0.0
      %v4368 = vand.u32 %v4327, 4294901760
      %4369 = vmatpush1.msra.mxu0 %v4368
      %4370 = vmatprep.subr.mxu0 0.0
      %v4371 = vand.u32 %v4328, 4294901760
      %4372 = vmatpush1.msra.mxu0 %v4371
      %4373 = vmatprep.subr.mxu0 0.0
      %v4374 = vand.u32 %v4329, 4294901760
      %4375 = vmatpush1.msra.mxu0 %v4374
      %4376 = vmatprep.subr.mxu0 0.0
      %v4377 = vand.u32 %v4330, 4294901760
      %4378 = vmatpush1.msra.mxu0 %v4377
      %4379 = vmatprep.subr.mxu0 0.0
      %4380 = vmatpush1.msra.mxu0 0.0
      %4381 = vmatprep.subr.mxu0 0.0
      %4382 = vmatpush1.msra.mxu0 0.0
      %4383 = vmatprep.subr.mxu0 0.0
      %4384 = vmatpush1.msra.mxu0 0.0
      %4385 = vmatprep.subr.mxu0 0.0
      %4386 = vmatpush1.msra.mxu0 0.0
      %4387 = vmatprep.subr.mxu0 0.0
      %4388 = vmatpush1.msra.mxu0 0.0
      %4389 = vmatprep.subr.mxu0 0.0
      %4390 = vmatpush1.msra.mxu0 0.0
      %4391 = vmatprep.subr.mxu0 0.0
      %4392 = vmatpush1.msra.mxu0 0.0
      %4393 = vmatprep.subr.mxu0 0.0
      %4394 = vmatpush1.msra.mxu0 0.0
      %4395 = vmatprep.subr.mxu0 0.0
      %4396 = vmatpush1.msra.mxu0 0.0
      %4397 = vmatprep.subr.mxu0 0.0
      %4398 = vmatpush1.msra.mxu0 0.0
      %4399 = vmatprep.subr.mxu0 0.0
      %4400 = vmatpush1.msra.mxu0 0.0
      %4401 = vmatprep.subr.mxu0 0.0
      %4402 = vmatpush1.msra.mxu0 0.0
      %4403 = vmatprep.subr.mxu0 0.0
      %4404 = vmatpush1.msra.mxu0 0.0
      %4405 = vmatprep.subr.mxu0 0.0
      %4406 = vmatpush1.msra.mxu0 0.0
      %4407 = vmatprep.subr.mxu0 0.0
      %4408 = vmatpush1.msra.mxu0 0.0
      %4409 = vmatprep.subr.mxu0 0.0
      %4410 = vmatpush1.msra.mxu0 0.0
      %4411 = vmatprep.mubr.f32.mxu0 0.0
      %v4412 = vand.u32 %v1519, 4294901760
      %v4413 = vsub.f32 %v1519, %v4412
      %v4414 = vand.u32 %v4413, 4294901760
      %v4415 = vsub.f32 %v4413, %v4414
      %v4416 = vand.u32 %v4415, 4294901760
      %4417 = vmatmul.mubr.f32.gmra.mrb[0].mxu0 %v4416
      %v4418 = vpop.f32.mrb[0].mxu0
      %v4419 = vadd.f32 0.0, %v4418
      %v4420 = vpop.f32.mrb[0].mxu0
      %4421 = vmatprep.mubr.f32.mxu0 0.0
      %v4422 = vand.u32 %v1520, 4294901760
      %v4423 = vsub.f32 %v1520, %v4422
      %v4424 = vand.u32 %v4423, 4294901760
      %v4425 = vsub.f32 %v4423, %v4424
      %v4426 = vand.u32 %v4425, 4294901760
      %4427 = vmatmul.mubr.f32.gmra.mrb[0].mxu0 %v4426
      %v4428 = vpop.f32.mrb[0].mxu0
      %v4429 = vadd.f32 0.0, %v4428
      %v4430 = vpop.f32.mrb[0].mxu0
      %4431 = vmatprep.mubr.f32.mxu0 0.0
      %v4432 = vand.u32 %v1521, 4294901760
      %v4433 = vsub.f32 %v1521, %v4432
      %v4434 = vand.u32 %v4433, 4294901760
      %v4435 = vsub.f32 %v4433, %v4434
      %v4436 = vand.u32 %v4435, 4294901760
      %4437 = vmatmul.mubr.f32.gmra.mrb[0].mxu0 %v4436
      %v4438 = vpop.f32.mrb[0].mxu0
      %v4439 = vadd.f32 0.0, %v4438
      %v4440 = vpop.f32.mrb[0].mxu0
      %4441 = vmatprep.mubr.f32.mxu0 0.0
      %v4442 = vand.u32 %v1522, 4294901760
      %v4443 = vsub.f32 %v1522, %v4442
      %v4444 = vand.u32 %v4443, 4294901760
      %v4445 = vsub.f32 %v4443, %v4444
      %v4446 = vand.u32 %v4445, 4294901760
      %4447 = vmatmul.mubr.f32.gmra.mrb[0].mxu0 %v4446
      %v4448 = vpop.f32.mrb[0].mxu0
      %v4449 = vadd.f32 0.0, %v4448
      %v4450 = vpop.f32.mrb[0].mxu0
      %4451 = vmatprep.mubr.f32.mxu0 0.0
      %v4452 = vand.u32 %v1523, 4294901760
      %v4453 = vsub.f32 %v1523, %v4452
      %v4454 = vand.u32 %v4453, 4294901760
      %v4455 = vsub.f32 %v4453, %v4454
      %v4456 = vand.u32 %v4455, 4294901760
      %4457 = vmatmul.mubr.f32.gmra.mrb[0].mxu0 %v4456
      %v4458 = vpop.f32.mrb[0].mxu0
      %v4459 = vadd.f32 0.0, %v4458
      %v4460 = vpop.f32.mrb[0].mxu0
      %4461 = vmatprep.mubr.f32.mxu0 0.0
      %v4462 = vand.u32 %v1524, 4294901760
      %v4463 = vsub.f32 %v1524, %v4462
      %v4464 = vand.u32 %v4463, 4294901760
      %v4465 = vsub.f32 %v4463, %v4464
      %v4466 = vand.u32 %v4465, 4294901760
      %4467 = vmatmul.mubr.f32.gmra.mrb[0].mxu0 %v4466
      %v4468 = vpop.f32.mrb[0].mxu0
      %v4469 = vadd.f32 0.0, %v4468
      %v4470 = vpop.f32.mrb[0].mxu0
      %4471 = vmatprep.mubr.f32.mxu0 0.0
      %v4472 = vand.u32 %v1525, 4294901760
      %v4473 = vsub.f32 %v1525, %v4472
      %v4474 = vand.u32 %v4473, 4294901760
      %v4475 = vsub.f32 %v4473, %v4474
      %v4476 = vand.u32 %v4475, 4294901760
      %4477 = vmatmul.mubr.f32.gmra.mrb[0].mxu0 %v4476
      %v4478 = vpop.f32.mrb[0].mxu0
      %v4479 = vadd.f32 0.0, %v4478
      %v4480 = vpop.f32.mrb[0].mxu0
      %4481 = vmatprep.mubr.f32.mxu0 0.0
      %v4482 = vand.u32 %v1526, 4294901760
      %v4483 = vsub.f32 %v1526, %v4482
      %v4484 = vand.u32 %v4483, 4294901760
      %v4485 = vsub.f32 %v4483, %v4484
      %v4486 = vand.u32 %v4485, 4294901760
      %4487 = vmatmul.mubr.f32.gmra.mrb[0].mxu0 %v4486
      %v4488 = vpop.f32.mrb[0].mxu0
      %v4489 = vadd.f32 0.0, %v4488
      %v4490 = vpop.f32.mrb[0].mxu0
      %4491 = vmatprep.mubr.f32.mxu0 0.0
      %v4492 = vand.u32 %v1527, 4294901760
      %v4493 = vsub.f32 %v1527, %v4492
      %v4494 = vand.u32 %v4493, 4294901760
      %v4495 = vsub.f32 %v4493, %v4494
      %v4496 = vand.u32 %v4495, 4294901760
      %4497 = vmatmul.mubr.f32.gmra.mrb[0].mxu0 %v4496
      %v4498 = vpop.f32.mrb[0].mxu0
      %v4499 = vadd.f32 0.0, %v4498
      %v4500 = vpop.f32.mrb[0].mxu0
      %4501 = vmatprep.mubr.f32.mxu0 0.0
      %v4502 = vand.u32 %v1528, 4294901760
      %v4503 = vsub.f32 %v1528, %v4502
      %v4504 = vand.u32 %v4503, 4294901760
      %v4505 = vsub.f32 %v4503, %v4504
      %v4506 = vand.u32 %v4505, 4294901760
      %4507 = vmatmul.mubr.f32.gmra.mrb[0].mxu0 %v4506
      %v4508 = vpop.f32.mrb[0].mxu0
      %v4509 = vadd.f32 0.0, %v4508
      %v4510 = vpop.f32.mrb[0].mxu0
      %4511 = vmatprep.mubr.f32.mxu0 0.0
      %v4512 = vand.u32 %v1529, 4294901760
      %v4513 = vsub.f32 %v1529, %v4512
      %v4514 = vand.u32 %v4513, 4294901760
      %v4515 = vsub.f32 %v4513, %v4514
      %v4516 = vand.u32 %v4515, 4294901760
      %4517 = vmatmul.mubr.f32.gmra.mrb[0].mxu0 %v4516
      %v4518 = vpop.f32.mrb[0].mxu0
      %v4519 = vadd.f32 0.0, %v4518
      %v4520 = vpop.f32.mrb[0].mxu0
      %4521 = vmatprep.mubr.f32.mxu0 0.0
      %v4522 = vand.u32 %v1530, 4294901760
      %v4523 = vsub.f32 %v1530, %v4522
      %v4524 = vand.u32 %v4523, 4294901760
      %v4525 = vsub.f32 %v4523, %v4524
      %v4526 = vand.u32 %v4525, 4294901760
      %4527 = vmatmul.mubr.f32.gmra.mrb[0].mxu0 %v4526
      %v4528 = vpop.f32.mrb[0].mxu0
      %v4529 = vadd.f32 0.0, %v4528
      %v4530 = vpop.f32.mrb[0].mxu0
      %4531 = vmatprep.mubr.f32.mxu0 0.0
      %v4532 = vand.u32 %v1531, 4294901760
      %v4533 = vsub.f32 %v1531, %v4532
      %v4534 = vand.u32 %v4533, 4294901760
      %v4535 = vsub.f32 %v4533, %v4534
      %v4536 = vand.u32 %v4535, 4294901760
      %4537 = vmatmul.mubr.f32.gmra.mrb[0].mxu0 %v4536
      %v4538 = vpop.f32.mrb[0].mxu0
      %v4539 = vadd.f32 0.0, %v4538
      %v4540 = vpop.f32.mrb[0].mxu0
      %4541 = vmatprep.mubr.f32.mxu0 0.0
      %v4542 = vand.u32 %v1532, 4294901760
      %v4543 = vsub.f32 %v1532, %v4542
      %v4544 = vand.u32 %v4543, 4294901760
      %v4545 = vsub.f32 %v4543, %v4544
      %v4546 = vand.u32 %v4545, 4294901760
      %4547 = vmatmul.mubr.f32.gmra.mrb[0].mxu0 %v4546
      %v4548 = vpop.f32.mrb[0].mxu0
      %v4549 = vadd.f32 0.0, %v4548
      %v4550 = vpop.f32.mrb[0].mxu0
      %4551 = vmatprep.mubr.f32.mxu0 0.0
      %v4552 = vand.u32 %v1533, 4294901760
      %v4553 = vsub.f32 %v1533, %v4552
      %v4554 = vand.u32 %v4553, 4294901760
      %v4555 = vsub.f32 %v4553, %v4554
      %v4556 = vand.u32 %v4555, 4294901760
      %4557 = vmatmul.mubr.f32.gmra.mrb[0].mxu0 %v4556
      %v4558 = vpop.f32.mrb[0].mxu0
      %v4559 = vadd.f32 0.0, %v4558
      %v4560 = vpop.f32.mrb[0].mxu0
      %4561 = vmatprep.mubr.f32.mxu0 0.0
      %v4562 = vand.u32 %v1534, 4294901760
      %v4563 = vsub.f32 %v1534, %v4562
      %v4564 = vand.u32 %v4563, 4294901760
      %v4565 = vsub.f32 %v4563, %v4564
      %v4566 = vand.u32 %v4565, 4294901760
      %4567 = vmatmul.mubr.f32.gmra.mrb[0].mxu0 %v4566
      %v4568 = vpop.f32.mrb[0].mxu0
      %v4569 = vadd.f32 0.0, %v4568
      %v4570 = vpop.f32.mrb[0].mxu0
      %4571 = vdwg.mxu0
      %4572 = vmatprep.subr.mxu0 0.0
      %v4573 = vand.u32 %v4315, 4294901760
      %v4574 = vsub.f32 %v4315, %v4573
      %v4575 = vand.u32 %v4574, 4294901760
      %v4576 = vsub.f32 %v4574, %v4575
      %v4577 = vand.u32 %v4576, 4294901760
      %4578 = vmatpush1.msra.mxu0 %v4577
      %4579 = vmatprep.subr.mxu0 0.0
      %v4580 = vand.u32 %v4316, 4294901760
      %v4581 = vsub.f32 %v4316, %v4580
      %v4582 = vand.u32 %v4581, 4294901760
      %v4583 = vsub.f32 %v4581, %v4582
      %v4584 = vand.u32 %v4583, 4294901760
      %4585 = vmatpush1.msra.mxu0 %v4584
      %4586 = vmatprep.subr.mxu0 0.0
      %v4587 = vand.u32 %v4317, 4294901760
      %v4588 = vsub.f32 %v4317, %v4587
      %v4589 = vand.u32 %v4588, 4294901760
      %v4590 = vsub.f32 %v4588, %v4589
      %v4591 = vand.u32 %v4590, 4294901760
      %4592 = vmatpush1.msra.mxu0 %v4591
      %4593 = vmatprep.subr.mxu0 0.0
      %v4594 = vand.u32 %v4318, 4294901760
      %v4595 = vsub.f32 %v4318, %v4594
      %v4596 = vand.u32 %v4595, 4294901760
      %v4597 = vsub.f32 %v4595, %v4596
      %v4598 = vand.u32 %v4597, 4294901760
      %4599 = vmatpush1.msra.mxu0 %v4598
      %4600 = vmatprep.subr.mxu0 0.0
      %v4601 = vand.u32 %v4319, 4294901760
      %v4602 = vsub.f32 %v4319, %v4601
      %v4603 = vand.u32 %v4602, 4294901760
      %v4604 = vsub.f32 %v4602, %v4603
      %v4605 = vand.u32 %v4604, 4294901760
      %4606 = vmatpush1.msra.mxu0 %v4605
      %4607 = vmatprep.subr.mxu0 0.0
      %v4608 = vand.u32 %v4320, 4294901760
      %v4609 = vsub.f32 %v4320, %v4608
      %v4610 = vand.u32 %v4609, 4294901760
      %v4611 = vsub.f32 %v4609, %v4610
      %v4612 = vand.u32 %v4611, 4294901760
      %4613 = vmatpush1.msra.mxu0 %v4612
      %4614 = vmatprep.subr.mxu0 0.0
      %v4615 = vand.u32 %v4321, 4294901760
      %v4616 = vsub.f32 %v4321, %v4615
      %v4617 = vand.u32 %v4616, 4294901760
      %v4618 = vsub.f32 %v4616, %v4617
      %v4619 = vand.u32 %v4618, 4294901760
      %4620 = vmatpush1.msra.mxu0 %v4619
      %4621 = vmatprep.subr.mxu0 0.0
      %v4622 = vand.u32 %v4322, 4294901760
      %v4623 = vsub.f32 %v4322, %v4622
      %v4624 = vand.u32 %v4623, 4294901760
      %v4625 = vsub.f32 %v4623, %v4624
      %v4626 = vand.u32 %v4625, 4294901760
      %4627 = vmatpush1.msra.mxu0 %v4626
      %4628 = vmatprep.subr.mxu0 0.0
      %v4629 = vand.u32 %v4323, 4294901760
      %v4630 = vsub.f32 %v4323, %v4629
      %v4631 = vand.u32 %v4630, 4294901760
      %v4632 = vsub.f32 %v4630, %v4631
      %v4633 = vand.u32 %v4632, 4294901760
      %4634 = vmatpush1.msra.mxu0 %v4633
      %4635 = vmatprep.subr.mxu0 0.0
      %v4636 = vand.u32 %v4324, 4294901760
      %v4637 = vsub.f32 %v4324, %v4636
      %v4638 = vand.u32 %v4637, 4294901760
      %v4639 = vsub.f32 %v4637, %v4638
      %v4640 = vand.u32 %v4639, 4294901760
      %4641 = vmatpush1.msra.mxu0 %v4640
      %4642 = vmatprep.subr.mxu0 0.0
      %v4643 = vand.u32 %v4325, 4294901760
      %v4644 = vsub.f32 %v4325, %v4643
      %v4645 = vand.u32 %v4644, 4294901760
      %v4646 = vsub.f32 %v4644, %v4645
      %v4647 = vand.u32 %v4646, 4294901760
      %4648 = vmatpush1.msra.mxu0 %v4647
      %4649 = vmatprep.subr.mxu0 0.0
      %v4650 = vand.u32 %v4326, 4294901760
      %v4651 = vsub.f32 %v4326, %v4650
      %v4652 = vand.u32 %v4651, 4294901760
      %v4653 = vsub.f32 %v4651, %v4652
      %v4654 = vand.u32 %v4653, 4294901760
      %4655 = vmatpush1.msra.mxu0 %v4654
      %4656 = vmatprep.subr.mxu0 0.0
      %v4657 = vand.u32 %v4327, 4294901760
      %v4658 = vsub.f32 %v4327, %v4657
      %v4659 = vand.u32 %v4658, 4294901760
      %v4660 = vsub.f32 %v4658, %v4659
      %v4661 = vand.u32 %v4660, 4294901760
      %4662 = vmatpush1.msra.mxu0 %v4661
      %4663 = vmatprep.subr.mxu0 0.0
      %v4664 = vand.u32 %v4328, 4294901760
      %v4665 = vsub.f32 %v4328, %v4664
      %v4666 = vand.u32 %v4665, 4294901760
      %v4667 = vsub.f32 %v4665, %v4666
      %v4668 = vand.u32 %v4667, 4294901760
      %4669 = vmatpush1.msra.mxu0 %v4668
      %4670 = vmatprep.subr.mxu0 0.0
      %v4671 = vand.u32 %v4329, 4294901760
      %v4672 = vsub.f32 %v4329, %v4671
      %v4673 = vand.u32 %v4672, 4294901760
      %v4674 = vsub.f32 %v4672, %v4673
      %v4675 = vand.u32 %v4674, 4294901760
      %4676 = vmatpush1.msra.mxu0 %v4675
      %4677 = vmatprep.subr.mxu0 0.0
      %v4678 = vand.u32 %v4330, 4294901760
      %v4679 = vsub.f32 %v4330, %v4678
      %v4680 = vand.u32 %v4679, 4294901760
      %v4681 = vsub.f32 %v4679, %v4680
      %v4682 = vand.u32 %v4681, 4294901760
      %4683 = vmatpush1.msra.mxu0 %v4682
      %4684 = vmatprep.subr.mxu0 0.0
      %4685 = vmatpush1.msra.mxu0 0.0
      %4686 = vmatprep.subr.mxu0 0.0
      %4687 = vmatpush1.msra.mxu0 0.0
      %4688 = vmatprep.subr.mxu0 0.0
      %4689 = vmatpush1.msra.mxu0 0.0
      %4690 = vmatprep.subr.mxu0 0.0
      %4691 = vmatpush1.msra.mxu0 0.0
      %4692 = vmatprep.subr.mxu0 0.0
      %4693 = vmatpush1.msra.mxu0 0.0
      %4694 = vmatprep.subr.mxu0 0.0
      %4695 = vmatpush1.msra.mxu0 0.0
      %4696 = vmatprep.subr.mxu0 0.0
      %4697 = vmatpush1.msra.mxu0 0.0
      %4698 = vmatprep.subr.mxu0 0.0
      %4699 = vmatpush1.msra.mxu0 0.0
      %4700 = vmatprep.subr.mxu0 0.0
      %4701 = vmatpush1.msra.mxu0 0.0
      %4702 = vmatprep.subr.mxu0 0.0
      %4703 = vmatpush1.msra.mxu0 0.0
      %4704 = vmatprep.subr.mxu0 0.0
      %4705 = vmatpush1.msra.mxu0 0.0
      %4706 = vmatprep.subr.mxu0 0.0
      %4707 = vmatpush1.msra.mxu0 0.0
      %4708 = vmatprep.subr.mxu0 0.0
      %4709 = vmatpush1.msra.mxu0 0.0
      %4710 = vmatprep.subr.mxu0 0.0
      %4711 = vmatpush1.msra.mxu0 0.0
      %4712 = vmatprep.subr.mxu0 0.0
      %4713 = vmatpush1.msra.mxu0 0.0
      %4714 = vmatprep.subr.mxu0 0.0
      %4715 = vmatpush1.msra.mxu0 0.0
      %4716 = vmatprep.mubr.f32.mxu0 0.0
      %v4717 = vand.u32 %v1519, 4294901760
      %4718 = vmatmul.mubr.f32.gmra.mrb[0].mxu0 %v4717
      %v4719 = vpop.f32.mrb[0].mxu0
      %v4720 = vadd.f32 %v4419, %v4719
      %v4721 = vpop.f32.mrb[0].mxu0
      %4722 = vmatprep.mubr.f32.mxu0 0.0
      %v4723 = vand.u32 %v1520, 4294901760
      %4724 = vmatmul.mubr.f32.gmra.mrb[0].mxu0 %v4723
      %v4725 = vpop.f32.mrb[0].mxu0
      %v4726 = vadd.f32 %v4429, %v4725
      %v4727 = vpop.f32.mrb[0].mxu0
      %4728 = vmatprep.mubr.f32.mxu0 0.0
      %v4729 = vand.u32 %v1521, 4294901760
      %4730 = vmatmul.mubr.f32.gmra.mrb[0].mxu0 %v4729
      %v4731 = vpop.f32.mrb[0].mxu0
      %v4732 = vadd.f32 %v4439, %v4731
      %v4733 = vpop.f32.mrb[0].mxu0
      %4734 = vmatprep.mubr.f32.mxu0 0.0
      %v4735 = vand.u32 %v1522, 4294901760
      %4736 = vmatmul.mubr.f32.gmra.mrb[0].mxu0 %v4735
      %v4737 = vpop.f32.mrb[0].mxu0
      %v4738 = vadd.f32 %v4449, %v4737
      %v4739 = vpop.f32.mrb[0].mxu0
      %4740 = vmatprep.mubr.f32.mxu0 0.0
      %v4741 = vand.u32 %v1523, 4294901760
      %4742 = vmatmul.mubr.f32.gmra.mrb[0].mxu0 %v4741
      %v4743 = vpop.f32.mrb[0].mxu0
      %v4744 = vadd.f32 %v4459, %v4743
      %v4745 = vpop.f32.mrb[0].mxu0
      %4746 = vmatprep.mubr.f32.mxu0 0.0
      %v4747 = vand.u32 %v1524, 4294901760
      %4748 = vmatmul.mubr.f32.gmra.mrb[0].mxu0 %v4747
      %v4749 = vpop.f32.mrb[0].mxu0
      %v4750 = vadd.f32 %v4469, %v4749
      %v4751 = vpop.f32.mrb[0].mxu0
      %4752 = vmatprep.mubr.f32.mxu0 0.0
      %v4753 = vand.u32 %v1525, 4294901760
      %4754 = vmatmul.mubr.f32.gmra.mrb[0].mxu0 %v4753
      %v4755 = vpop.f32.mrb[0].mxu0
      %v4756 = vadd.f32 %v4479, %v4755
      %v4757 = vpop.f32.mrb[0].mxu0
      %4758 = vmatprep.mubr.f32.mxu0 0.0
      %v4759 = vand.u32 %v1526, 4294901760
      %4760 = vmatmul.mubr.f32.gmra.mrb[0].mxu0 %v4759
      %v4761 = vpop.f32.mrb[0].mxu0
      %v4762 = vadd.f32 %v4489, %v4761
      %v4763 = vpop.f32.mrb[0].mxu0
      %4764 = vmatprep.mubr.f32.mxu0 0.0
      %v4765 = vand.u32 %v1527, 4294901760
      %4766 = vmatmul.mubr.f32.gmra.mrb[0].mxu0 %v4765
      %v4767 = vpop.f32.mrb[0].mxu0
      %v4768 = vadd.f32 %v4499, %v4767
      %v4769 = vpop.f32.mrb[0].mxu0
      %4770 = vmatprep.mubr.f32.mxu0 0.0
      %v4771 = vand.u32 %v1528, 4294901760
      %4772 = vmatmul.mubr.f32.gmra.mrb[0].mxu0 %v4771
      %v4773 = vpop.f32.mrb[0].mxu0
      %v4774 = vadd.f32 %v4509, %v4773
      %v4775 = vpop.f32.mrb[0].mxu0
      %4776 = vmatprep.mubr.f32.mxu0 0.0
      %v4777 = vand.u32 %v1529, 4294901760
      %4778 = vmatmul.mubr.f32.gmra.mrb[0].mxu0 %v4777
      %v4779 = vpop.f32.mrb[0].mxu0
      %v4780 = vadd.f32 %v4519, %v4779
      %v4781 = vpop.f32.mrb[0].mxu0
      %4782 = vmatprep.mubr.f32.mxu0 0.0
      %v4783 = vand.u32 %v1530, 4294901760
      %4784 = vmatmul.mubr.f32.gmra.mrb[0].mxu0 %v4783
      %v4785 = vpop.f32.mrb[0].mxu0
      %v4786 = vadd.f32 %v4529, %v4785
      %v4787 = vpop.f32.mrb[0].mxu0
      %4788 = vmatprep.mubr.f32.mxu0 0.0
      %v4789 = vand.u32 %v1531, 4294901760
      %4790 = vmatmul.mubr.f32.gmra.mrb[0].mxu0 %v4789
      %v4791 = vpop.f32.mrb[0].mxu0
      %v4792 = vadd.f32 %v4539, %v4791
      %v4793 = vpop.f32.mrb[0].mxu0
      %4794 = vmatprep.mubr.f32.mxu0 0.0
      %v4795 = vand.u32 %v1532, 4294901760
      %4796 = vmatmul.mubr.f32.gmra.mrb[0].mxu0 %v4795
      %v4797 = vpop.f32.mrb[0].mxu0
      %v4798 = vadd.f32 %v4549, %v4797
      %v4799 = vpop.f32.mrb[0].mxu0
      %4800 = vmatprep.mubr.f32.mxu0 0.0
      %v4801 = vand.u32 %v1533, 4294901760
      %4802 = vmatmul.mubr.f32.gmra.mrb[0].mxu0 %v4801
      %v4803 = vpop.f32.mrb[0].mxu0
      %v4804 = vadd.f32 %v4559, %v4803
      %v4805 = vpop.f32.mrb[0].mxu0
      %4806 = vmatprep.mubr.f32.mxu0 0.0
      %v4807 = vand.u32 %v1534, 4294901760
      %4808 = vmatmul.mubr.f32.gmra.mrb[0].mxu0 %v4807
      %v4809 = vpop.f32.mrb[0].mxu0
      %v4810 = vadd.f32 %v4569, %v4809
      %v4811 = vpop.f32.mrb[0].mxu0
      %4812 = vdwg.mxu0
      %4813 = vmatprep.subr.mxu0 0.0
      %v4814 = vand.u32 %v4315, 4294901760
      %v4815 = vsub.f32 %v4315, %v4814
      %4816 = vmatpush1.msra.mxu0 %v4815
      %4817 = vmatprep.subr.mxu0 0.0
      %v4818 = vand.u32 %v4316, 4294901760
      %v4819 = vsub.f32 %v4316, %v4818
      %4820 = vmatpush1.msra.mxu0 %v4819
      %4821 = vmatprep.subr.mxu0 0.0
      %v4822 = vand.u32 %v4317, 4294901760
      %v4823 = vsub.f32 %v4317, %v4822
      %4824 = vmatpush1.msra.mxu0 %v4823
      %4825 = vmatprep.subr.mxu0 0.0
      %v4826 = vand.u32 %v4318, 4294901760
      %v4827 = vsub.f32 %v4318, %v4826
      %4828 = vmatpush1.msra.mxu0 %v4827
      %4829 = vmatprep.subr.mxu0 0.0
      %v4830 = vand.u32 %v4319, 4294901760
      %v4831 = vsub.f32 %v4319, %v4830
      %4832 = vmatpush1.msra.mxu0 %v4831
      %4833 = vmatprep.subr.mxu0 0.0
      %v4834 = vand.u32 %v4320, 4294901760
      %v4835 = vsub.f32 %v4320, %v4834
      %4836 = vmatpush1.msra.mxu0 %v4835
      %4837 = vmatprep.subr.mxu0 0.0
      %v4838 = vand.u32 %v4321, 4294901760
      %v4839 = vsub.f32 %v4321, %v4838
      %4840 = vmatpush1.msra.mxu0 %v4839
      %4841 = vmatprep.subr.mxu0 0.0
      %v4842 = vand.u32 %v4322, 4294901760
      %v4843 = vsub.f32 %v4322, %v4842
      %4844 = vmatpush1.msra.mxu0 %v4843
      %4845 = vmatprep.subr.mxu0 0.0
      %v4846 = vand.u32 %v4323, 4294901760
      %v4847 = vsub.f32 %v4323, %v4846
      %4848 = vmatpush1.msra.mxu0 %v4847
      %4849 = vmatprep.subr.mxu0 0.0
      %v4850 = vand.u32 %v4324, 4294901760
      %v4851 = vsub.f32 %v4324, %v4850
      %4852 = vmatpush1.msra.mxu0 %v4851
      %4853 = vmatprep.subr.mxu0 0.0
      %v4854 = vand.u32 %v4325, 4294901760
      %v4855 = vsub.f32 %v4325, %v4854
      %4856 = vmatpush1.msra.mxu0 %v4855
      %4857 = vmatprep.subr.mxu0 0.0
      %v4858 = vand.u32 %v4326, 4294901760
      %v4859 = vsub.f32 %v4326, %v4858
      %4860 = vmatpush1.msra.mxu0 %v4859
      %4861 = vmatprep.subr.mxu0 0.0
      %v4862 = vand.u32 %v4327, 4294901760
      %v4863 = vsub.f32 %v4327, %v4862
      %4864 = vmatpush1.msra.mxu0 %v4863
      %4865 = vmatprep.subr.mxu0 0.0
      %v4866 = vand.u32 %v4328, 4294901760
      %v4867 = vsub.f32 %v4328, %v4866
      %4868 = vmatpush1.msra.mxu0 %v4867
      %4869 = vmatprep.subr.mxu0 0.0
      %v4870 = vand.u32 %v4329, 4294901760
      %v4871 = vsub.f32 %v4329, %v4870
      %4872 = vmatpush1.msra.mxu0 %v4871
      %4873 = vmatprep.subr.mxu0 0.0
      %v4874 = vand.u32 %v4330, 4294901760
      %v4875 = vsub.f32 %v4330, %v4874
      %4876 = vmatpush1.msra.mxu0 %v4875
      %4877 = vmatprep.subr.mxu0 0.0
      %4878 = vmatpush1.msra.mxu0 0.0
      %4879 = vmatprep.subr.mxu0 0.0
      %4880 = vmatpush1.msra.mxu0 0.0
      %4881 = vmatprep.subr.mxu0 0.0
      %4882 = vmatpush1.msra.mxu0 0.0
      %4883 = vmatprep.subr.mxu0 0.0
      %4884 = vmatpush1.msra.mxu0 0.0
      %4885 = vmatprep.subr.mxu0 0.0
      %4886 = vmatpush1.msra.mxu0 0.0
      %4887 = vmatprep.subr.mxu0 0.0
      %4888 = vmatpush1.msra.mxu0 0.0
      %4889 = vmatprep.subr.mxu0 0.0
      %4890 = vmatpush1.msra.mxu0 0.0
      %4891 = vmatprep.subr.mxu0 0.0
      %4892 = vmatpush1.msra.mxu0 0.0
      %4893 = vmatprep.subr.mxu0 0.0
      %4894 = vmatpush1.msra.mxu0 0.0
      %4895 = vmatprep.subr.mxu0 0.0
      %4896 = vmatpush1.msra.mxu0 0.0
      %4897 = vmatprep.subr.mxu0 0.0
      %4898 = vmatpush1.msra.mxu0 0.0
      %4899 = vmatprep.subr.mxu0 0.0
      %4900 = vmatpush1.msra.mxu0 0.0
      %4901 = vmatprep.subr.mxu0 0.0
      %4902 = vmatpush1.msra.mxu0 0.0
      %4903 = vmatprep.subr.mxu0 0.0
      %4904 = vmatpush1.msra.mxu0 0.0
      %4905 = vmatprep.subr.mxu0 0.0
      %4906 = vmatpush1.msra.mxu0 0.0
      %4907 = vmatprep.subr.mxu0 0.0
      %4908 = vmatpush1.msra.mxu0 0.0
      %4909 = vmatprep.mubr.f32.mxu0 0.0
      %v4910 = vand.u32 %v1519, 4294901760
      %v4911 = vsub.f32 %v1519, %v4910
      %4912 = vmatmul.mubr.f32.gmra.mrb[0].mxu0 %v4911
      %v4913 = vpop.f32.mrb[0].mxu0
      %v4914 = vadd.f32 %v4720, %v4913
      %v4915 = vpop.f32.mrb[0].mxu0
      %4916 = vmatprep.mubr.f32.mxu0 0.0
      %v4917 = vand.u32 %v1520, 4294901760
      %v4918 = vsub.f32 %v1520, %v4917
      %4919 = vmatmul.mubr.f32.gmra.mrb[0].mxu0 %v4918
      %v4920 = vpop.f32.mrb[0].mxu0
      %v4921 = vadd.f32 %v4726, %v4920
      %v4922 = vpop.f32.mrb[0].mxu0
      %4923 = vmatprep.mubr.f32.mxu0 0.0
      %v4924 = vand.u32 %v1521, 4294901760
      %v4925 = vsub.f32 %v1521, %v4924
      %4926 = vmatmul.mubr.f32.gmra.mrb[0].mxu0 %v4925
      %v4927 = vpop.f32.mrb[0].mxu0
      %v4928 = vadd.f32 %v4732, %v4927
      %v4929 = vpop.f32.mrb[0].mxu0
      %4930 = vmatprep.mubr.f32.mxu0 0.0
      %v4931 = vand.u32 %v1522, 4294901760
      %v4932 = vsub.f32 %v1522, %v4931
      %4933 = vmatmul.mubr.f32.gmra.mrb[0].mxu0 %v4932
      %v4934 = vpop.f32.mrb[0].mxu0
      %v4935 = vadd.f32 %v4738, %v4934
      %v4936 = vpop.f32.mrb[0].mxu0
      %4937 = vmatprep.mubr.f32.mxu0 0.0
      %v4938 = vand.u32 %v1523, 4294901760
      %v4939 = vsub.f32 %v1523, %v4938
      %4940 = vmatmul.mubr.f32.gmra.mrb[0].mxu0 %v4939
      %v4941 = vpop.f32.mrb[0].mxu0
      %v4942 = vadd.f32 %v4744, %v4941
      %v4943 = vpop.f32.mrb[0].mxu0
      %4944 = vmatprep.mubr.f32.mxu0 0.0
      %v4945 = vand.u32 %v1524, 4294901760
      %v4946 = vsub.f32 %v1524, %v4945
      %4947 = vmatmul.mubr.f32.gmra.mrb[0].mxu0 %v4946
      %v4948 = vpop.f32.mrb[0].mxu0
      %v4949 = vadd.f32 %v4750, %v4948
      %v4950 = vpop.f32.mrb[0].mxu0
      %4951 = vmatprep.mubr.f32.mxu0 0.0
      %v4952 = vand.u32 %v1525, 4294901760
      %v4953 = vsub.f32 %v1525, %v4952
      %4954 = vmatmul.mubr.f32.gmra.mrb[0].mxu0 %v4953
      %v4955 = vpop.f32.mrb[0].mxu0
      %v4956 = vadd.f32 %v4756, %v4955
      %v4957 = vpop.f32.mrb[0].mxu0
      %4958 = vmatprep.mubr.f32.mxu0 0.0
      %v4959 = vand.u32 %v1526, 4294901760
      %v4960 = vsub.f32 %v1526, %v4959
      %4961 = vmatmul.mubr.f32.gmra.mrb[0].mxu0 %v4960
      %v4962 = vpop.f32.mrb[0].mxu0
      %v4963 = vadd.f32 %v4762, %v4962
      %v4964 = vpop.f32.mrb[0].mxu0
      %4965 = vmatprep.mubr.f32.mxu0 0.0
      %v4966 = vand.u32 %v1527, 4294901760
      %v4967 = vsub.f32 %v1527, %v4966
      %4968 = vmatmul.mubr.f32.gmra.mrb[0].mxu0 %v4967
      %v4969 = vpop.f32.mrb[0].mxu0
      %v4970 = vadd.f32 %v4768, %v4969
      %v4971 = vpop.f32.mrb[0].mxu0
      %4972 = vmatprep.mubr.f32.mxu0 0.0
      %v4973 = vand.u32 %v1528, 4294901760
      %v4974 = vsub.f32 %v1528, %v4973
      %4975 = vmatmul.mubr.f32.gmra.mrb[0].mxu0 %v4974
      %v4976 = vpop.f32.mrb[0].mxu0
      %v4977 = vadd.f32 %v4774, %v4976
      %v4978 = vpop.f32.mrb[0].mxu0
      %4979 = vmatprep.mubr.f32.mxu0 0.0
      %v4980 = vand.u32 %v1529, 4294901760
      %v4981 = vsub.f32 %v1529, %v4980
      %4982 = vmatmul.mubr.f32.gmra.mrb[0].mxu0 %v4981
      %v4983 = vpop.f32.mrb[0].mxu0
      %v4984 = vadd.f32 %v4780, %v4983
      %v4985 = vpop.f32.mrb[0].mxu0
      %4986 = vmatprep.mubr.f32.mxu0 0.0
      %v4987 = vand.u32 %v1530, 4294901760
      %v4988 = vsub.f32 %v1530, %v4987
      %4989 = vmatmul.mubr.f32.gmra.mrb[0].mxu0 %v4988
      %v4990 = vpop.f32.mrb[0].mxu0
      %v4991 = vadd.f32 %v4786, %v4990
      %v4992 = vpop.f32.mrb[0].mxu0
      %4993 = vmatprep.mubr.f32.mxu0 0.0
      %v4994 = vand.u32 %v1531, 4294901760
      %v4995 = vsub.f32 %v1531, %v4994
      %4996 = vmatmul.mubr.f32.gmra.mrb[0].mxu0 %v4995
      %v4997 = vpop.f32.mrb[0].mxu0
      %v4998 = vadd.f32 %v4792, %v4997
      %v4999 = vpop.f32.mrb[0].mxu0
      %5000 = vmatprep.mubr.f32.mxu0 0.0
      %v5001 = vand.u32 %v1532, 4294901760
      %v5002 = vsub.f32 %v1532, %v5001
      %5003 = vmatmul.mubr.f32.gmra.mrb[0].mxu0 %v5002
      %v5004 = vpop.f32.mrb[0].mxu0
      %v5005 = vadd.f32 %v4798, %v5004
      %v5006 = vpop.f32.mrb[0].mxu0
      %5007 = vmatprep.mubr.f32.mxu0 0.0
      %v5008 = vand.u32 %v1533, 4294901760
      %v5009 = vsub.f32 %v1533, %v5008
      %5010 = vmatmul.mubr.f32.gmra.mrb[0].mxu0 %v5009
      %v5011 = vpop.f32.mrb[0].mxu0
      %v5012 = vadd.f32 %v4804, %v5011
      %v5013 = vpop.f32.mrb[0].mxu0
      %5014 = vmatprep.mubr.f32.mxu0 0.0
      %v5015 = vand.u32 %v1534, 4294901760
      %v5016 = vsub.f32 %v1534, %v5015
      %5017 = vmatmul.mubr.f32.gmra.mrb[0].mxu0 %v5016
      %v5018 = vpop.f32.mrb[0].mxu0
      %v5019 = vadd.f32 %v4810, %v5018
      %v5020 = vpop.f32.mrb[0].mxu0
      %5021 = vdwg.mxu0
      %5022 = vmatprep.subr.mxu0 0.0
      %v5023 = vand.u32 %v4315, 4294901760
      %5024 = vmatpush1.msra.mxu0 %v5023
      %5025 = vmatprep.subr.mxu0 0.0
      %v5026 = vand.u32 %v4316, 4294901760
      %5027 = vmatpush1.msra.mxu0 %v5026
      %5028 = vmatprep.subr.mxu0 0.0
      %v5029 = vand.u32 %v4317, 4294901760
      %5030 = vmatpush1.msra.mxu0 %v5029
      %5031 = vmatprep.subr.mxu0 0.0
      %v5032 = vand.u32 %v4318, 4294901760
      %5033 = vmatpush1.msra.mxu0 %v5032
      %5034 = vmatprep.subr.mxu0 0.0
      %v5035 = vand.u32 %v4319, 4294901760
      %5036 = vmatpush1.msra.mxu0 %v5035
      %5037 = vmatprep.subr.mxu0 0.0
      %v5038 = vand.u32 %v4320, 4294901760
      %5039 = vmatpush1.msra.mxu0 %v5038
      %5040 = vmatprep.subr.mxu0 0.0
      %v5041 = vand.u32 %v4321, 4294901760
      %5042 = vmatpush1.msra.mxu0 %v5041
      %5043 = vmatprep.subr.mxu0 0.0
      %v5044 = vand.u32 %v4322, 4294901760
      %5045 = vmatpush1.msra.mxu0 %v5044
      %5046 = vmatprep.subr.mxu0 0.0
      %v5047 = vand.u32 %v4323, 4294901760
      %5048 = vmatpush1.msra.mxu0 %v5047
      %5049 = vmatprep.subr.mxu0 0.0
      %v5050 = vand.u32 %v4324, 4294901760
      %5051 = vmatpush1.msra.mxu0 %v5050
      %5052 = vmatprep.subr.mxu0 0.0
      %v5053 = vand.u32 %v4325, 4294901760
      %5054 = vmatpush1.msra.mxu0 %v5053
      %5055 = vmatprep.subr.mxu0 0.0
      %v5056 = vand.u32 %v4326, 4294901760
      %5057 = vmatpush1.msra.mxu0 %v5056
      %5058 = vmatprep.subr.mxu0 0.0
      %v5059 = vand.u32 %v4327, 4294901760
      %5060 = vmatpush1.msra.mxu0 %v5059
      %5061 = vmatprep.subr.mxu0 0.0
      %v5062 = vand.u32 %v4328, 4294901760
      %5063 = vmatpush1.msra.mxu0 %v5062
      %5064 = vmatprep.subr.mxu0 0.0
      %v5065 = vand.u32 %v4329, 4294901760
      %5066 = vmatpush1.msra.mxu0 %v5065
      %5067 = vmatprep.subr.mxu0 0.0
      %v5068 = vand.u32 %v4330, 4294901760
      %5069 = vmatpush1.msra.mxu0 %v5068
      %5070 = vmatprep.subr.mxu0 0.0
      %5071 = vmatpush1.msra.mxu0 0.0
      %5072 = vmatprep.subr.mxu0 0.0
      %5073 = vmatpush1.msra.mxu0 0.0
      %5074 = vmatprep.subr.mxu0 0.0
      %5075 = vmatpush1.msra.mxu0 0.0
      %5076 = vmatprep.subr.mxu0 0.0
      %5077 = vmatpush1.msra.mxu0 0.0
      %5078 = vmatprep.subr.mxu0 0.0
      %5079 = vmatpush1.msra.mxu0 0.0
      %5080 = vmatprep.subr.mxu0 0.0
      %5081 = vmatpush1.msra.mxu0 0.0
      %5082 = vmatprep.subr.mxu0 0.0
      %5083 = vmatpush1.msra.mxu0 0.0
      %5084 = vmatprep.subr.mxu0 0.0
      %5085 = vmatpush1.msra.mxu0 0.0
      %5086 = vmatprep.subr.mxu0 0.0
      %5087 = vmatpush1.msra.mxu0 0.0
      %5088 = vmatprep.subr.mxu0 0.0
      %5089 = vmatpush1.msra.mxu0 0.0
      %5090 = vmatprep.subr.mxu0 0.0
      %5091 = vmatpush1.msra.mxu0 0.0
      %5092 = vmatprep.subr.mxu0 0.0
      %5093 = vmatpush1.msra.mxu0 0.0
      %5094 = vmatprep.subr.mxu0 0.0
      %5095 = vmatpush1.msra.mxu0 0.0
      %5096 = vmatprep.subr.mxu0 0.0
      %5097 = vmatpush1.msra.mxu0 0.0
      %5098 = vmatprep.subr.mxu0 0.0
      %5099 = vmatpush1.msra.mxu0 0.0
      %5100 = vmatprep.subr.mxu0 0.0
      %5101 = vmatpush1.msra.mxu0 0.0
      %5102 = vmatprep.mubr.f32.mxu0 0.0
      %v5103 = vand.u32 %v1519, 4294901760
      %v5104 = vsub.f32 %v1519, %v5103
      %v5105 = vand.u32 %v5104, 4294901760
      %5106 = vmatmul.mubr.f32.gmra.mrb[0].mxu0 %v5105
      %v5107 = vpop.f32.mrb[0].mxu0
      %v5108 = vadd.f32 %v4914, %v5107
      %v5109 = vpop.f32.mrb[0].mxu0
      %5110 = vmatprep.mubr.f32.mxu0 0.0
      %v5111 = vand.u32 %v1520, 4294901760
      %v5112 = vsub.f32 %v1520, %v5111
      %v5113 = vand.u32 %v5112, 4294901760
      %5114 = vmatmul.mubr.f32.gmra.mrb[0].mxu0 %v5113
      %v5115 = vpop.f32.mrb[0].mxu0
      %v5116 = vadd.f32 %v4921, %v5115
      %v5117 = vpop.f32.mrb[0].mxu0
      %5118 = vmatprep.mubr.f32.mxu0 0.0
      %v5119 = vand.u32 %v1521, 4294901760
      %v5120 = vsub.f32 %v1521, %v5119
      %v5121 = vand.u32 %v5120, 4294901760
      %5122 = vmatmul.mubr.f32.gmra.mrb[0].mxu0 %v5121
      %v5123 = vpop.f32.mrb[0].mxu0
      %v5124 = vadd.f32 %v4928, %v5123
      %v5125 = vpop.f32.mrb[0].mxu0
      %5126 = vmatprep.mubr.f32.mxu0 0.0
      %v5127 = vand.u32 %v1522, 4294901760
      %v5128 = vsub.f32 %v1522, %v5127
      %v5129 = vand.u32 %v5128, 4294901760
      %5130 = vmatmul.mubr.f32.gmra.mrb[0].mxu0 %v5129
      %v5131 = vpop.f32.mrb[0].mxu0
      %v5132 = vadd.f32 %v4935, %v5131
      %v5133 = vpop.f32.mrb[0].mxu0
      %5134 = vmatprep.mubr.f32.mxu0 0.0
      %v5135 = vand.u32 %v1523, 4294901760
      %v5136 = vsub.f32 %v1523, %v5135
      %v5137 = vand.u32 %v5136, 4294901760
      %5138 = vmatmul.mubr.f32.gmra.mrb[0].mxu0 %v5137
      %v5139 = vpop.f32.mrb[0].mxu0
      %v5140 = vadd.f32 %v4942, %v5139
      %v5141 = vpop.f32.mrb[0].mxu0
      %5142 = vmatprep.mubr.f32.mxu0 0.0
      %v5143 = vand.u32 %v1524, 4294901760
      %v5144 = vsub.f32 %v1524, %v5143
      %v5145 = vand.u32 %v5144, 4294901760
      %5146 = vmatmul.mubr.f32.gmra.mrb[0].mxu0 %v5145
      %v5147 = vpop.f32.mrb[0].mxu0
      %v5148 = vadd.f32 %v4949, %v5147
      %v5149 = vpop.f32.mrb[0].mxu0
      %5150 = vmatprep.mubr.f32.mxu0 0.0
      %v5151 = vand.u32 %v1525, 4294901760
      %v5152 = vsub.f32 %v1525, %v5151
      %v5153 = vand.u32 %v5152, 4294901760
      %5154 = vmatmul.mubr.f32.gmra.mrb[0].mxu0 %v5153
      %v5155 = vpop.f32.mrb[0].mxu0
      %v5156 = vadd.f32 %v4956, %v5155
      %v5157 = vpop.f32.mrb[0].mxu0
      %5158 = vmatprep.mubr.f32.mxu0 0.0
      %v5159 = vand.u32 %v1526, 4294901760
      %v5160 = vsub.f32 %v1526, %v5159
      %v5161 = vand.u32 %v5160, 4294901760
      %5162 = vmatmul.mubr.f32.gmra.mrb[0].mxu0 %v5161
      %v5163 = vpop.f32.mrb[0].mxu0
      %v5164 = vadd.f32 %v4963, %v5163
      %v5165 = vpop.f32.mrb[0].mxu0
      %5166 = vmatprep.mubr.f32.mxu0 0.0
      %v5167 = vand.u32 %v1527, 4294901760
      %v5168 = vsub.f32 %v1527, %v5167
      %v5169 = vand.u32 %v5168, 4294901760
      %5170 = vmatmul.mubr.f32.gmra.mrb[0].mxu0 %v5169
      %v5171 = vpop.f32.mrb[0].mxu0
      %v5172 = vadd.f32 %v4970, %v5171
      %v5173 = vpop.f32.mrb[0].mxu0
      %5174 = vmatprep.mubr.f32.mxu0 0.0
      %v5175 = vand.u32 %v1528, 4294901760
      %v5176 = vsub.f32 %v1528, %v5175
      %v5177 = vand.u32 %v5176, 4294901760
      %5178 = vmatmul.mubr.f32.gmra.mrb[0].mxu0 %v5177
      %v5179 = vpop.f32.mrb[0].mxu0
      %v5180 = vadd.f32 %v4977, %v5179
      %v5181 = vpop.f32.mrb[0].mxu0
      %5182 = vmatprep.mubr.f32.mxu0 0.0
      %v5183 = vand.u32 %v1529, 4294901760
      %v5184 = vsub.f32 %v1529, %v5183
      %v5185 = vand.u32 %v5184, 4294901760
      %5186 = vmatmul.mubr.f32.gmra.mrb[0].mxu0 %v5185
      %v5187 = vpop.f32.mrb[0].mxu0
      %v5188 = vadd.f32 %v4984, %v5187
      %v5189 = vpop.f32.mrb[0].mxu0
      %5190 = vmatprep.mubr.f32.mxu0 0.0
      %v5191 = vand.u32 %v1530, 4294901760
      %v5192 = vsub.f32 %v1530, %v5191
      %v5193 = vand.u32 %v5192, 4294901760
      %5194 = vmatmul.mubr.f32.gmra.mrb[0].mxu0 %v5193
      %v5195 = vpop.f32.mrb[0].mxu0
      %v5196 = vadd.f32 %v4991, %v5195
      %v5197 = vpop.f32.mrb[0].mxu0
      %5198 = vmatprep.mubr.f32.mxu0 0.0
      %v5199 = vand.u32 %v1531, 4294901760
      %v5200 = vsub.f32 %v1531, %v5199
      %v5201 = vand.u32 %v5200, 4294901760
      %5202 = vmatmul.mubr.f32.gmra.mrb[0].mxu0 %v5201
      %v5203 = vpop.f32.mrb[0].mxu0
      %v5204 = vadd.f32 %v4998, %v5203
      %v5205 = vpop.f32.mrb[0].mxu0
      %5206 = vmatprep.mubr.f32.mxu0 0.0
      %v5207 = vand.u32 %v1532, 4294901760
      %v5208 = vsub.f32 %v1532, %v5207
      %v5209 = vand.u32 %v5208, 4294901760
      %5210 = vmatmul.mubr.f32.gmra.mrb[0].mxu0 %v5209
      %v5211 = vpop.f32.mrb[0].mxu0
      %v5212 = vadd.f32 %v5005, %v5211
      %v5213 = vpop.f32.mrb[0].mxu0
      %5214 = vmatprep.mubr.f32.mxu0 0.0
      %v5215 = vand.u32 %v1533, 4294901760
      %v5216 = vsub.f32 %v1533, %v5215
      %v5217 = vand.u32 %v5216, 4294901760
      %5218 = vmatmul.mubr.f32.gmra.mrb[0].mxu0 %v5217
      %v5219 = vpop.f32.mrb[0].mxu0
      %v5220 = vadd.f32 %v5012, %v5219
      %v5221 = vpop.f32.mrb[0].mxu0
      %5222 = vmatprep.mubr.f32.mxu0 0.0
      %v5223 = vand.u32 %v1534, 4294901760
      %v5224 = vsub.f32 %v1534, %v5223
      %v5225 = vand.u32 %v5224, 4294901760
      %5226 = vmatmul.mubr.f32.gmra.mrb[0].mxu0 %v5225
      %v5227 = vpop.f32.mrb[0].mxu0
      %v5228 = vadd.f32 %v5019, %v5227
      %v5229 = vpop.f32.mrb[0].mxu0
      %5230 = vdwg.mxu0
      %5231 = vmatprep.subr.mxu0 0.0
      %v5232 = vand.u32 %v4315, 4294901760
      %v5233 = vsub.f32 %v4315, %v5232
      %v5234 = vand.u32 %v5233, 4294901760
      %5235 = vmatpush1.msra.mxu0 %v5234
      %5236 = vmatprep.subr.mxu0 0.0
      %v5237 = vand.u32 %v4316, 4294901760
      %v5238 = vsub.f32 %v4316, %v5237
      %v5239 = vand.u32 %v5238, 4294901760
      %5240 = vmatpush1.msra.mxu0 %v5239
      %5241 = vmatprep.subr.mxu0 0.0
      %v5242 = vand.u32 %v4317, 4294901760
      %v5243 = vsub.f32 %v4317, %v5242
      %v5244 = vand.u32 %v5243, 4294901760
      %5245 = vmatpush1.msra.mxu0 %v5244
      %5246 = vmatprep.subr.mxu0 0.0
      %v5247 = vand.u32 %v4318, 4294901760
      %v5248 = vsub.f32 %v4318, %v5247
      %v5249 = vand.u32 %v5248, 4294901760
      %5250 = vmatpush1.msra.mxu0 %v5249
      %5251 = vmatprep.subr.mxu0 0.0
      %v5252 = vand.u32 %v4319, 4294901760
      %v5253 = vsub.f32 %v4319, %v5252
      %v5254 = vand.u32 %v5253, 4294901760
      %5255 = vmatpush1.msra.mxu0 %v5254
      %5256 = vmatprep.subr.mxu0 0.0
      %v5257 = vand.u32 %v4320, 4294901760
      %v5258 = vsub.f32 %v4320, %v5257
      %v5259 = vand.u32 %v5258, 4294901760
      %5260 = vmatpush1.msra.mxu0 %v5259
      %5261 = vmatprep.subr.mxu0 0.0
      %v5262 = vand.u32 %v4321, 4294901760
      %v5263 = vsub.f32 %v4321, %v5262
      %v5264 = vand.u32 %v5263, 4294901760
      %5265 = vmatpush1.msra.mxu0 %v5264
      %5266 = vmatprep.subr.mxu0 0.0
      %v5267 = vand.u32 %v4322, 4294901760
      %v5268 = vsub.f32 %v4322, %v5267
      %v5269 = vand.u32 %v5268, 4294901760
      %5270 = vmatpush1.msra.mxu0 %v5269
      %5271 = vmatprep.subr.mxu0 0.0
      %v5272 = vand.u32 %v4323, 4294901760
      %v5273 = vsub.f32 %v4323, %v5272
      %v5274 = vand.u32 %v5273, 4294901760
      %5275 = vmatpush1.msra.mxu0 %v5274
      %5276 = vmatprep.subr.mxu0 0.0
      %v5277 = vand.u32 %v4324, 4294901760
      %v5278 = vsub.f32 %v4324, %v5277
      %v5279 = vand.u32 %v5278, 4294901760
      %5280 = vmatpush1.msra.mxu0 %v5279
      %5281 = vmatprep.subr.mxu0 0.0
      %v5282 = vand.u32 %v4325, 4294901760
      %v5283 = vsub.f32 %v4325, %v5282
      %v5284 = vand.u32 %v5283, 4294901760
      %5285 = vmatpush1.msra.mxu0 %v5284
      %5286 = vmatprep.subr.mxu0 0.0
      %v5287 = vand.u32 %v4326, 4294901760
      %v5288 = vsub.f32 %v4326, %v5287
      %v5289 = vand.u32 %v5288, 4294901760
      %5290 = vmatpush1.msra.mxu0 %v5289
      %5291 = vmatprep.subr.mxu0 0.0
      %v5292 = vand.u32 %v4327, 4294901760
      %v5293 = vsub.f32 %v4327, %v5292
      %v5294 = vand.u32 %v5293, 4294901760
      %5295 = vmatpush1.msra.mxu0 %v5294
      %5296 = vmatprep.subr.mxu0 0.0
      %v5297 = vand.u32 %v4328, 4294901760
      %v5298 = vsub.f32 %v4328, %v5297
      %v5299 = vand.u32 %v5298, 4294901760
      %5300 = vmatpush1.msra.mxu0 %v5299
      %5301 = vmatprep.subr.mxu0 0.0
      %v5302 = vand.u32 %v4329, 4294901760
      %v5303 = vsub.f32 %v4329, %v5302
      %v5304 = vand.u32 %v5303, 4294901760
      %5305 = vmatpush1.msra.mxu0 %v5304
      %5306 = vmatprep.subr.mxu0 0.0
      %v5307 = vand.u32 %v4330, 4294901760
      %v5308 = vsub.f32 %v4330, %v5307
      %v5309 = vand.u32 %v5308, 4294901760
      %5310 = vmatpush1.msra.mxu0 %v5309
      %5311 = vmatprep.subr.mxu0 0.0
      %5312 = vmatpush1.msra.mxu0 0.0
      %5313 = vmatprep.subr.mxu0 0.0
      %5314 = vmatpush1.msra.mxu0 0.0
      %5315 = vmatprep.subr.mxu0 0.0
      %5316 = vmatpush1.msra.mxu0 0.0
      %5317 = vmatprep.subr.mxu0 0.0
      %5318 = vmatpush1.msra.mxu0 0.0
      %5319 = vmatprep.subr.mxu0 0.0
      %5320 = vmatpush1.msra.mxu0 0.0
      %5321 = vmatprep.subr.mxu0 0.0
      %5322 = vmatpush1.msra.mxu0 0.0
      %5323 = vmatprep.subr.mxu0 0.0
      %5324 = vmatpush1.msra.mxu0 0.0
      %5325 = vmatprep.subr.mxu0 0.0
      %5326 = vmatpush1.msra.mxu0 0.0
      %5327 = vmatprep.subr.mxu0 0.0
      %5328 = vmatpush1.msra.mxu0 0.0
      %5329 = vmatprep.subr.mxu0 0.0
      %5330 = vmatpush1.msra.mxu0 0.0
      %5331 = vmatprep.subr.mxu0 0.0
      %5332 = vmatpush1.msra.mxu0 0.0
      %5333 = vmatprep.subr.mxu0 0.0
      %5334 = vmatpush1.msra.mxu0 0.0
      %5335 = vmatprep.subr.mxu0 0.0
      %5336 = vmatpush1.msra.mxu0 0.0
      %5337 = vmatprep.subr.mxu0 0.0
      %5338 = vmatpush1.msra.mxu0 0.0
      %5339 = vmatprep.subr.mxu0 0.0
      %5340 = vmatpush1.msra.mxu0 0.0
      %5341 = vmatprep.subr.mxu0 0.0
      %5342 = vmatpush1.msra.mxu0 0.0
      %5343 = vmatprep.mubr.f32.mxu0 0.0
      %v5344 = vand.u32 %v1519, 4294901760
      %5345 = vmatmul.mubr.f32.gmra.mrb[0].mxu0 %v5344
      %v5346 = vpop.f32.mrb[0].mxu0
      %v5347 = vadd.f32 %v5108, %v5346
      %v5348 = vpop.f32.mrb[0].mxu0
      %5349 = vmatprep.mubr.f32.mxu0 0.0
      %v5350 = vand.u32 %v1520, 4294901760
      %5351 = vmatmul.mubr.f32.gmra.mrb[0].mxu0 %v5350
      %v5352 = vpop.f32.mrb[0].mxu0
      %v5353 = vadd.f32 %v5116, %v5352
      %v5354 = vpop.f32.mrb[0].mxu0
      %5355 = vmatprep.mubr.f32.mxu0 0.0
      %v5356 = vand.u32 %v1521, 4294901760
      %5357 = vmatmul.mubr.f32.gmra.mrb[0].mxu0 %v5356
      %v5358 = vpop.f32.mrb[0].mxu0
      %v5359 = vadd.f32 %v5124, %v5358
      %v5360 = vpop.f32.mrb[0].mxu0
      %5361 = vmatprep.mubr.f32.mxu0 0.0
      %v5362 = vand.u32 %v1522, 4294901760
      %5363 = vmatmul.mubr.f32.gmra.mrb[0].mxu0 %v5362
      %v5364 = vpop.f32.mrb[0].mxu0
      %v5365 = vadd.f32 %v5132, %v5364
      %v5366 = vpop.f32.mrb[0].mxu0
      %5367 = vmatprep.mubr.f32.mxu0 0.0
      %v5368 = vand.u32 %v1523, 4294901760
      %5369 = vmatmul.mubr.f32.gmra.mrb[0].mxu0 %v5368
      %v5370 = vpop.f32.mrb[0].mxu0
      %v5371 = vadd.f32 %v5140, %v5370
      %v5372 = vpop.f32.mrb[0].mxu0
      %5373 = vmatprep.mubr.f32.mxu0 0.0
      %v5374 = vand.u32 %v1524, 4294901760
      %5375 = vmatmul.mubr.f32.gmra.mrb[0].mxu0 %v5374
      %v5376 = vpop.f32.mrb[0].mxu0
      %v5377 = vadd.f32 %v5148, %v5376
      %v5378 = vpop.f32.mrb[0].mxu0
      %5379 = vmatprep.mubr.f32.mxu0 0.0
      %v5380 = vand.u32 %v1525, 4294901760
      %5381 = vmatmul.mubr.f32.gmra.mrb[0].mxu0 %v5380
      %v5382 = vpop.f32.mrb[0].mxu0
      %v5383 = vadd.f32 %v5156, %v5382
      %v5384 = vpop.f32.mrb[0].mxu0
      %5385 = vmatprep.mubr.f32.mxu0 0.0
      %v5386 = vand.u32 %v1526, 4294901760
      %5387 = vmatmul.mubr.f32.gmra.mrb[0].mxu0 %v5386
      %v5388 = vpop.f32.mrb[0].mxu0
      %v5389 = vadd.f32 %v5164, %v5388
      %v5390 = vpop.f32.mrb[0].mxu0
      %5391 = vmatprep.mubr.f32.mxu0 0.0
      %v5392 = vand.u32 %v1527, 4294901760
      %5393 = vmatmul.mubr.f32.gmra.mrb[0].mxu0 %v5392
      %v5394 = vpop.f32.mrb[0].mxu0
      %v5395 = vadd.f32 %v5172, %v5394
      %v5396 = vpop.f32.mrb[0].mxu0
      %5397 = vmatprep.mubr.f32.mxu0 0.0
      %v5398 = vand.u32 %v1528, 4294901760
      %5399 = vmatmul.mubr.f32.gmra.mrb[0].mxu0 %v5398
      %v5400 = vpop.f32.mrb[0].mxu0
      %v5401 = vadd.f32 %v5180, %v5400
      %v5402 = vpop.f32.mrb[0].mxu0
      %5403 = vmatprep.mubr.f32.mxu0 0.0
      %v5404 = vand.u32 %v1529, 4294901760
      %5405 = vmatmul.mubr.f32.gmra.mrb[0].mxu0 %v5404
      %v5406 = vpop.f32.mrb[0].mxu0
      %v5407 = vadd.f32 %v5188, %v5406
      %v5408 = vpop.f32.mrb[0].mxu0
      %5409 = vmatprep.mubr.f32.mxu0 0.0
      %v5410 = vand.u32 %v1530, 4294901760
      %5411 = vmatmul.mubr.f32.gmra.mrb[0].mxu0 %v5410
      %v5412 = vpop.f32.mrb[0].mxu0
      %v5413 = vadd.f32 %v5196, %v5412
      %v5414 = vpop.f32.mrb[0].mxu0
      %5415 = vmatprep.mubr.f32.mxu0 0.0
      %v5416 = vand.u32 %v1531, 4294901760
      %5417 = vmatmul.mubr.f32.gmra.mrb[0].mxu0 %v5416
      %v5418 = vpop.f32.mrb[0].mxu0
      %v5419 = vadd.f32 %v5204, %v5418
      %v5420 = vpop.f32.mrb[0].mxu0
      %5421 = vmatprep.mubr.f32.mxu0 0.0
      %v5422 = vand.u32 %v1532, 4294901760
      %5423 = vmatmul.mubr.f32.gmra.mrb[0].mxu0 %v5422
      %v5424 = vpop.f32.mrb[0].mxu0
      %v5425 = vadd.f32 %v5212, %v5424
      %v5426 = vpop.f32.mrb[0].mxu0
      %5427 = vmatprep.mubr.f32.mxu0 0.0
      %v5428 = vand.u32 %v1533, 4294901760
      %5429 = vmatmul.mubr.f32.gmra.mrb[0].mxu0 %v5428
      %v5430 = vpop.f32.mrb[0].mxu0
      %v5431 = vadd.f32 %v5220, %v5430
      %v5432 = vpop.f32.mrb[0].mxu0
      %5433 = vmatprep.mubr.f32.mxu0 0.0
      %v5434 = vand.u32 %v1534, 4294901760
      %5435 = vmatmul.mubr.f32.gmra.mrb[0].mxu0 %v5434
      %v5436 = vpop.f32.mrb[0].mxu0
      %v5437 = vadd.f32 %v5228, %v5436
      %v5438 = vpop.f32.mrb[0].mxu0
      %5439 = vdwg.mxu0
      %5440 = vmatprep.subr.mxu0 0.0
      %v5441 = vand.u32 %v4315, 4294901760
      %5442 = vmatpush1.msra.mxu0 %v5441
      %5443 = vmatprep.subr.mxu0 0.0
      %v5444 = vand.u32 %v4316, 4294901760
      %5445 = vmatpush1.msra.mxu0 %v5444
      %5446 = vmatprep.subr.mxu0 0.0
      %v5447 = vand.u32 %v4317, 4294901760
      %5448 = vmatpush1.msra.mxu0 %v5447
      %5449 = vmatprep.subr.mxu0 0.0
      %v5450 = vand.u32 %v4318, 4294901760
      %5451 = vmatpush1.msra.mxu0 %v5450
      %5452 = vmatprep.subr.mxu0 0.0
      %v5453 = vand.u32 %v4319, 4294901760
      %5454 = vmatpush1.msra.mxu0 %v5453
      %5455 = vmatprep.subr.mxu0 0.0
      %v5456 = vand.u32 %v4320, 4294901760
      %5457 = vmatpush1.msra.mxu0 %v5456
      %5458 = vmatprep.subr.mxu0 0.0
      %v5459 = vand.u32 %v4321, 4294901760
      %5460 = vmatpush1.msra.mxu0 %v5459
      %5461 = vmatprep.subr.mxu0 0.0
      %v5462 = vand.u32 %v4322, 4294901760
      %5463 = vmatpush1.msra.mxu0 %v5462
      %5464 = vmatprep.subr.mxu0 0.0
      %v5465 = vand.u32 %v4323, 4294901760
      %5466 = vmatpush1.msra.mxu0 %v5465
      %5467 = vmatprep.subr.mxu0 0.0
      %v5468 = vand.u32 %v4324, 4294901760
      %5469 = vmatpush1.msra.mxu0 %v5468
      %5470 = vmatprep.subr.mxu0 0.0
      %v5471 = vand.u32 %v4325, 4294901760
      %5472 = vmatpush1.msra.mxu0 %v5471
      %5473 = vmatprep.subr.mxu0 0.0
      %v5474 = vand.u32 %v4326, 4294901760
      %5475 = vmatpush1.msra.mxu0 %v5474
      %5476 = vmatprep.subr.mxu0 0.0
      %v5477 = vand.u32 %v4327, 4294901760
      %5478 = vmatpush1.msra.mxu0 %v5477
      %5479 = vmatprep.subr.mxu0 0.0
      %v5480 = vand.u32 %v4328, 4294901760
      %5481 = vmatpush1.msra.mxu0 %v5480
      %5482 = vmatprep.subr.mxu0 0.0
      %v5483 = vand.u32 %v4329, 4294901760
      %5484 = vmatpush1.msra.mxu0 %v5483
      %5485 = vmatprep.subr.mxu0 0.0
      %v5486 = vand.u32 %v4330, 4294901760
      %5487 = vmatpush1.msra.mxu0 %v5486
      %5488 = vmatprep.subr.mxu0 0.0
      %5489 = vmatpush1.msra.mxu0 0.0
      %5490 = vmatprep.subr.mxu0 0.0
      %5491 = vmatpush1.msra.mxu0 0.0
      %5492 = vmatprep.subr.mxu0 0.0
      %5493 = vmatpush1.msra.mxu0 0.0
      %5494 = vmatprep.subr.mxu0 0.0
      %5495 = vmatpush1.msra.mxu0 0.0
      %5496 = vmatprep.subr.mxu0 0.0
      %5497 = vmatpush1.msra.mxu0 0.0
      %5498 = vmatprep.subr.mxu0 0.0
      %5499 = vmatpush1.msra.mxu0 0.0
      %5500 = vmatprep.subr.mxu0 0.0
      %5501 = vmatpush1.msra.mxu0 0.0
      %5502 = vmatprep.subr.mxu0 0.0
      %5503 = vmatpush1.msra.mxu0 0.0
      %5504 = vmatprep.subr.mxu0 0.0
      %5505 = vmatpush1.msra.mxu0 0.0
      %5506 = vmatprep.subr.mxu0 0.0
      %5507 = vmatpush1.msra.mxu0 0.0
      %5508 = vmatprep.subr.mxu0 0.0
      %5509 = vmatpush1.msra.mxu0 0.0
      %5510 = vmatprep.subr.mxu0 0.0
      %5511 = vmatpush1.msra.mxu0 0.0
      %5512 = vmatprep.subr.mxu0 0.0
      %5513 = vmatpush1.msra.mxu0 0.0
      %5514 = vmatprep.subr.mxu0 0.0
      %5515 = vmatpush1.msra.mxu0 0.0
      %5516 = vmatprep.subr.mxu0 0.0
      %5517 = vmatpush1.msra.mxu0 0.0
      %5518 = vmatprep.subr.mxu0 0.0
      %5519 = vmatpush1.msra.mxu0 0.0
      %5520 = vmatprep.mubr.f32.mxu0 0.0
      %v5521 = vand.u32 %v1519, 4294901760
      %5522 = vmatmul.mubr.f32.gmra.mrb[0].mxu0 %v5521
      %v5523 = vpop.f32.mrb[0].mxu0
      %v5524 = vadd.f32 %v5347, %v5523
      %v5525 = vpop.f32.mrb[0].mxu0
      %5526 = vmatprep.mubr.f32.mxu0 0.0
      %v5527 = vand.u32 %v1520, 4294901760
      %5528 = vmatmul.mubr.f32.gmra.mrb[0].mxu0 %v5527
      %v5529 = vpop.f32.mrb[0].mxu0
      %v5530 = vadd.f32 %v5353, %v5529
      %v5531 = vpop.f32.mrb[0].mxu0
      %5532 = vmatprep.mubr.f32.mxu0 0.0
      %v5533 = vand.u32 %v1521, 4294901760
      %5534 = vmatmul.mubr.f32.gmra.mrb[0].mxu0 %v5533
      %v5535 = vpop.f32.mrb[0].mxu0
      %v5536 = vadd.f32 %v5359, %v5535
      %v5537 = vpop.f32.mrb[0].mxu0
      %5538 = vmatprep.mubr.f32.mxu0 0.0
      %v5539 = vand.u32 %v1522, 4294901760
      %5540 = vmatmul.mubr.f32.gmra.mrb[0].mxu0 %v5539
      %v5541 = vpop.f32.mrb[0].mxu0
      %v5542 = vadd.f32 %v5365, %v5541
      %v5543 = vpop.f32.mrb[0].mxu0
      %5544 = vmatprep.mubr.f32.mxu0 0.0
      %v5545 = vand.u32 %v1523, 4294901760
      %5546 = vmatmul.mubr.f32.gmra.mrb[0].mxu0 %v5545
      %v5547 = vpop.f32.mrb[0].mxu0
      %v5548 = vadd.f32 %v5371, %v5547
      %v5549 = vpop.f32.mrb[0].mxu0
      %5550 = vmatprep.mubr.f32.mxu0 0.0
      %v5551 = vand.u32 %v1524, 4294901760
      %5552 = vmatmul.mubr.f32.gmra.mrb[0].mxu0 %v5551
      %v5553 = vpop.f32.mrb[0].mxu0
      %v5554 = vadd.f32 %v5377, %v5553
      %v5555 = vpop.f32.mrb[0].mxu0
      %5556 = vmatprep.mubr.f32.mxu0 0.0
      %v5557 = vand.u32 %v1525, 4294901760
      %5558 = vmatmul.mubr.f32.gmra.mrb[0].mxu0 %v5557
      %v5559 = vpop.f32.mrb[0].mxu0
      %v5560 = vadd.f32 %v5383, %v5559
      %v5561 = vpop.f32.mrb[0].mxu0
      %5562 = vmatprep.mubr.f32.mxu0 0.0
      %v5563 = vand.u32 %v1526, 4294901760
      %5564 = vmatmul.mubr.f32.gmra.mrb[0].mxu0 %v5563
      %v5565 = vpop.f32.mrb[0].mxu0
      %v5566 = vadd.f32 %v5389, %v5565
      %v5567 = vpop.f32.mrb[0].mxu0
      %5568 = vmatprep.mubr.f32.mxu0 0.0
      %v5569 = vand.u32 %v1527, 4294901760
      %5570 = vmatmul.mubr.f32.gmra.mrb[0].mxu0 %v5569
      %v5571 = vpop.f32.mrb[0].mxu0
      %v5572 = vadd.f32 %v5395, %v5571
      %v5573 = vpop.f32.mrb[0].mxu0
      %5574 = vmatprep.mubr.f32.mxu0 0.0
      %v5575 = vand.u32 %v1528, 4294901760
      %5576 = vmatmul.mubr.f32.gmra.mrb[0].mxu0 %v5575
      %v5577 = vpop.f32.mrb[0].mxu0
      %v5578 = vadd.f32 %v5401, %v5577
      %v5579 = vpop.f32.mrb[0].mxu0
      %5580 = vmatprep.mubr.f32.mxu0 0.0
      %v5581 = vand.u32 %v1529, 4294901760
      %5582 = vmatmul.mubr.f32.gmra.mrb[0].mxu0 %v5581
      %v5583 = vpop.f32.mrb[0].mxu0
      %v5584 = vadd.f32 %v5407, %v5583
      %v5585 = vpop.f32.mrb[0].mxu0
      %5586 = vmatprep.mubr.f32.mxu0 0.0
      %v5587 = vand.u32 %v1530, 4294901760
      %5588 = vmatmul.mubr.f32.gmra.mrb[0].mxu0 %v5587
      %v5589 = vpop.f32.mrb[0].mxu0
      %v5590 = vadd.f32 %v5413, %v5589
      %v5591 = vpop.f32.mrb[0].mxu0
      %5592 = vmatprep.mubr.f32.mxu0 0.0
      %v5593 = vand.u32 %v1531, 4294901760
      %5594 = vmatmul.mubr.f32.gmra.mrb[0].mxu0 %v5593
      %v5595 = vpop.f32.mrb[0].mxu0
      %v5596 = vadd.f32 %v5419, %v5595
      %v5597 = vpop.f32.mrb[0].mxu0
      %5598 = vmatprep.mubr.f32.mxu0 0.0
      %v5599 = vand.u32 %v1532, 4294901760
      %5600 = vmatmul.mubr.f32.gmra.mrb[0].mxu0 %v5599
      %v5601 = vpop.f32.mrb[0].mxu0
      %v5602 = vadd.f32 %v5425, %v5601
      %v5603 = vpop.f32.mrb[0].mxu0
      %5604 = vmatprep.mubr.f32.mxu0 0.0
      %v5605 = vand.u32 %v1533, 4294901760
      %5606 = vmatmul.mubr.f32.gmra.mrb[0].mxu0 %v5605
      %v5607 = vpop.f32.mrb[0].mxu0
      %v5608 = vadd.f32 %v5431, %v5607
      %v5609 = vpop.f32.mrb[0].mxu0
      %5610 = vmatprep.mubr.f32.mxu0 0.0
      %v5611 = vand.u32 %v1534, 4294901760
      %5612 = vmatmul.mubr.f32.gmra.mrb[0].mxu0 %v5611
      %v5613 = vpop.f32.mrb[0].mxu0
      %v5614 = vadd.f32 %v5437, %v5613
      %v5615 = vpop.f32.mrb[0].mxu0
      %5616 = vdwg.mxu0
      %v5617 = vmul.f32 %v2853, %v4315
      %v5618 = vmul.f32 %v2854, %v4316
      %v5619 = vmul.f32 %v2855, %v4317
      %v5620 = vmul.f32 %v2856, %v4318
      %v5621 = vmul.f32 %v2857, %v4319
      %v5622 = vmul.f32 %v2858, %v4320
      %v5623 = vmul.f32 %v2859, %v4321
      %v5624 = vmul.f32 %v2860, %v4322
      %v5625 = vmul.f32 %v2861, %v4323
      %v5626 = vmul.f32 %v2862, %v4324
      %v5627 = vmul.f32 %v2863, %v4325
      %v5628 = vmul.f32 %v2864, %v4326
      %v5629 = vmul.f32 %v2865, %v4327
      %v5630 = vmul.f32 %v2866, %v4328
      %v5631 = vmul.f32 %v2867, %v4329
      %v5632 = vmul.f32 %v2868, %v4330
      %v5633 = vsub.f32 %v301, %v5617
      %v5634 = vsub.f32 %v302, %v5618
      %v5635 = vsub.f32 %v303, %v5619
      %v5636 = vsub.f32 %v304, %v5620
      %v5637 = vsub.f32 %v305, %v5621
      %v5638 = vsub.f32 %v306, %v5622
      %v5639 = vsub.f32 %v307, %v5623
      %v5640 = vsub.f32 %v308, %v5624
      %v5641 = vsub.f32 %v309, %v5625
      %v5642 = vsub.f32 %v310, %v5626
      %v5643 = vsub.f32 %v311, %v5627
      %v5644 = vsub.f32 %v312, %v5628
      %v5645 = vsub.f32 %v313, %v5629
      %v5646 = vsub.f32 %v314, %v5630
      %v5647 = vsub.f32 %v315, %v5631
      %v5648 = vsub.f32 %v316, %v5632
      %v5649 = vadd.f32 %v5633, %v5634
      %v5650 = vadd.f32 %v5649, %v5635
      %v5651 = vadd.f32 %v5650, %v5636
      %v5652 = vadd.f32 %v5651, %v5637
      %v5653 = vadd.f32 %v5652, %v5638
      %v5654 = vadd.f32 %v5653, %v5639
      %v5655 = vadd.f32 %v5654, %v5640
      %v5656 = vadd.f32 %v5655, %v5641
      %v5657 = vadd.f32 %v5656, %v5642
      %v5658 = vadd.f32 %v5657, %v5643
      %v5659 = vadd.f32 %v5658, %v5644
      %v5660 = vadd.f32 %v5659, %v5645
      %v5661 = vadd.f32 %v5660, %v5646
      %v5662 = vadd.f32 %v5661, %v5647
      %v5663 = vadd.f32 %v5662, %v5648
      %v5664 = vrot.slane %v5663, 4
      %v5665 = vadd.f32 %v5663, %v5664
      %v5666 = vrot.slane %v5665, 2
      %v5667 = vadd.f32 %v5665, %v5666
      %v5668 = vrot.slane %v5667, 1
      %v5669 = vadd.f32 %v5667, %v5668
      %v5670 = vmul.f32 %v1226, %v5524
      %v5671 = vmul.f32 %v1227, %v5530
      %v5672 = vmul.f32 %v1228, %v5536
      %v5673 = vmul.f32 %v1229, %v5542
      %v5674 = vmul.f32 %v1230, %v5548
      %v5675 = vmul.f32 %v1231, %v5554
      %v5676 = vmul.f32 %v1232, %v5560
      %v5677 = vmul.f32 %v1233, %v5566
      %v5678 = vmul.f32 %v1234, %v5572
      %v5679 = vmul.f32 %v1235, %v5578
      %v5680 = vmul.f32 %v1236, %v5584
      %v5681 = vmul.f32 %v1237, %v5590
      %v5682 = vmul.f32 %v1238, %v5596
      %v5683 = vmul.f32 %v1239, %v5602
      %v5684 = vmul.f32 %v1240, %v5608
      %v5685 = vmul.f32 %v1241, %v5614
      %v5686 = vadd.f32 %v5670, %v5669
      %v5687 = vadd.f32 %v5671, %v5669
      %v5688 = vadd.f32 %v5672, %v5669
      %v5689 = vadd.f32 %v5673, %v5669
      %v5690 = vadd.f32 %v5674, %v5669
      %v5691 = vadd.f32 %v5675, %v5669
      %v5692 = vadd.f32 %v5676, %v5669
      %v5693 = vadd.f32 %v5677, %v5669
      %v5694 = vadd.f32 %v5678, %v5669
      %v5695 = vadd.f32 %v5679, %v5669
      %v5696 = vadd.f32 %v5680, %v5669
      %v5697 = vadd.f32 %v5681, %v5669
      %v5698 = vadd.f32 %v5682, %v5669
      %v5699 = vadd.f32 %v5683, %v5669
      %v5700 = vadd.f32 %v5684, %v5669
      %v5701 = vadd.f32 %v5685, %v5669
      %v5702 = vmul.f32 %v5686, 0.01
      %v5703 = vmul.f32 %v5687, 0.01
      %v5704 = vmul.f32 %v5688, 0.01
      %v5705 = vmul.f32 %v5689, 0.01
      %v5706 = vmul.f32 %v5690, 0.01
      %v5707 = vmul.f32 %v5691, 0.01
      %v5708 = vmul.f32 %v5692, 0.01
      %v5709 = vmul.f32 %v5693, 0.01
      %v5710 = vmul.f32 %v5694, 0.01
      %v5711 = vmul.f32 %v5695, 0.01
      %v5712 = vmul.f32 %v5696, 0.01
      %v5713 = vmul.f32 %v5697, 0.01
      %v5714 = vmul.f32 %v5698, 0.01
      %v5715 = vmul.f32 %v5699, 0.01
      %v5716 = vmul.f32 %v5700, 0.01
      %v5717 = vmul.f32 %v5701, 0.01
      %v5718 = vadd.f32 %v1226, %v5702
      %v5719 = vadd.f32 %v1227, %v5703
      %v5720 = vadd.f32 %v1228, %v5704
      %v5721 = vadd.f32 %v1229, %v5705
      %v5722 = vadd.f32 %v1230, %v5706
      %v5723 = vadd.f32 %v1231, %v5707
      %v5724 = vadd.f32 %v1232, %v5708
      %v5725 = vadd.f32 %v1233, %v5709
      %v5726 = vadd.f32 %v1234, %v5710
      %v5727 = vadd.f32 %v1235, %v5711
      %v5728 = vadd.f32 %v1236, %v5712
      %v5729 = vadd.f32 %v1237, %v5713
      %v5730 = vadd.f32 %v1238, %v5714
      %v5731 = vadd.f32 %v1239, %v5715
      %v5732 = vadd.f32 %v1240, %v5716
      %v5733 = vadd.f32 %v1241, %v5717
      %v5734 = vlaneseq
      %v5735 = vshrl.u32 %v5734, 7
      %v5736 = vsub.s32 0, %v5735
      %v5737 = vrot.slane %v353, %v5736
      %5738 = vmatprep.subr.mxu0 0.0
      %5739 = vmatpush1.msra.mxu0 %v333
      %5740 = vmatprep.subr.mxu0 0.0
      %5741 = vmatpush1.msra.mxu0 %v334
      %5742 = vmatprep.subr.mxu0 0.0
      %5743 = vmatpush1.msra.mxu0 %v335
      %5744 = vmatprep.subr.mxu0 0.0
      %5745 = vmatpush1.msra.mxu0 %v336
      %5746 = vmatprep.subr.mxu0 0.0
      %5747 = vmatpush1.msra.mxu0 %v337
      %5748 = vmatprep.subr.mxu0 0.0
      %5749 = vmatpush1.msra.mxu0 %v338
      %5750 = vmatprep.subr.mxu0 0.0
      %5751 = vmatpush1.msra.mxu0 %v339
      %5752 = vmatprep.subr.mxu0 0.0
      %5753 = vmatpush1.msra.mxu0 %v340
      %5754 = vmatprep.subr.mxu0 0.0
      %5755 = vmatpush1.msra.mxu0 %v341
      %5756 = vmatprep.subr.mxu0 0.0
      %5757 = vmatpush1.msra.mxu0 %v342
      %5758 = vmatprep.subr.mxu0 0.0
      %5759 = vmatpush1.msra.mxu0 %v343
      %5760 = vmatprep.subr.mxu0 0.0
      %5761 = vmatpush1.msra.mxu0 %v344
      %5762 = vmatprep.subr.mxu0 0.0
      %5763 = vmatpush1.msra.mxu0 %v345
      %5764 = vmatprep.subr.mxu0 0.0
      %5765 = vmatpush1.msra.mxu0 %v346
      %5766 = vmatprep.subr.mxu0 0.0
      %5767 = vmatpush1.msra.mxu0 %v347
      %5768 = vmatprep.subr.mxu0 0.0
      %5769 = vmatpush1.msra.mxu0 %v348
      %5770 = vmatprep.subr.mxu0 0.0
      %5771 = vmatpush1.msra.mxu0 0.0
      %5772 = vmatprep.subr.mxu0 0.0
      %5773 = vmatpush1.msra.mxu0 0.0
      %5774 = vmatprep.subr.mxu0 0.0
      %5775 = vmatpush1.msra.mxu0 0.0
      %5776 = vmatprep.subr.mxu0 0.0
      %5777 = vmatpush1.msra.mxu0 0.0
      %5778 = vmatprep.subr.mxu0 0.0
      %5779 = vmatpush1.msra.mxu0 0.0
      %5780 = vmatprep.subr.mxu0 0.0
      %5781 = vmatpush1.msra.mxu0 0.0
      %5782 = vmatprep.subr.mxu0 0.0
      %5783 = vmatpush1.msra.mxu0 0.0
      %5784 = vmatprep.subr.mxu0 0.0
      %5785 = vmatpush1.msra.mxu0 0.0
      %5786 = vmatprep.subr.mxu0 0.0
      %5787 = vmatpush1.msra.mxu0 0.0
      %5788 = vmatprep.subr.mxu0 0.0
      %5789 = vmatpush1.msra.mxu0 0.0
      %5790 = vmatprep.subr.mxu0 0.0
      %5791 = vmatpush1.msra.mxu0 0.0
      %5792 = vmatprep.subr.mxu0 0.0
      %5793 = vmatpush1.msra.mxu0 0.0
      %5794 = vmatprep.subr.mxu0 0.0
      %5795 = vmatpush1.msra.mxu0 0.0
      %5796 = vmatprep.subr.mxu0 0.0
      %5797 = vmatpush1.msra.mxu0 0.0
      %5798 = vmatprep.subr.mxu0 0.0
      %5799 = vmatpush1.msra.mxu0 0.0
      %5800 = vmatprep.subr.mxu0 0.0
      %5801 = vmatpush1.msra.mxu0 0.0
      %5802 = vmatprep.mubr.f32.mxu0 0.0
      %5803 = vmatmul.mubr.f32.gmra.mrb[0].mxu0 %v5718
      %v5804 = vpop.f32.mrb[0].mxu0
      %v5805 = vadd.f32 %v5737, %v5804
      %v5806 = vpop.f32.mrb[0].mxu0
      %5807 = vmatprep.mubr.f32.mxu0 0.0
      %5808 = vmatmul.mubr.f32.gmra.mrb[0].mxu0 %v5719
      %v5809 = vpop.f32.mrb[0].mxu0
      %v5810 = vadd.f32 %v5737, %v5809
      %v5811 = vpop.f32.mrb[0].mxu0
      %5812 = vmatprep.mubr.f32.mxu0 0.0
      %5813 = vmatmul.mubr.f32.gmra.mrb[0].mxu0 %v5720
      %v5814 = vpop.f32.mrb[0].mxu0
      %v5815 = vadd.f32 %v5737, %v5814
      %v5816 = vpop.f32.mrb[0].mxu0
      %5817 = vmatprep.mubr.f32.mxu0 0.0
      %5818 = vmatmul.mubr.f32.gmra.mrb[0].mxu0 %v5721
      %v5819 = vpop.f32.mrb[0].mxu0
      %v5820 = vadd.f32 %v5737, %v5819
      %v5821 = vpop.f32.mrb[0].mxu0
      %5822 = vmatprep.mubr.f32.mxu0 0.0
      %5823 = vmatmul.mubr.f32.gmra.mrb[0].mxu0 %v5722
      %v5824 = vpop.f32.mrb[0].mxu0
      %v5825 = vadd.f32 %v5737, %v5824
      %v5826 = vpop.f32.mrb[0].mxu0
      %5827 = vmatprep.mubr.f32.mxu0 0.0
      %5828 = vmatmul.mubr.f32.gmra.mrb[0].mxu0 %v5723
      %v5829 = vpop.f32.mrb[0].mxu0
      %v5830 = vadd.f32 %v5737, %v5829
      %v5831 = vpop.f32.mrb[0].mxu0
      %5832 = vmatprep.mubr.f32.mxu0 0.0
      %5833 = vmatmul.mubr.f32.gmra.mrb[0].mxu0 %v5724
      %v5834 = vpop.f32.mrb[0].mxu0
      %v5835 = vadd.f32 %v5737, %v5834
      %v5836 = vpop.f32.mrb[0].mxu0
      %5837 = vmatprep.mubr.f32.mxu0 0.0
      %5838 = vmatmul.mubr.f32.gmra.mrb[0].mxu0 %v5725
      %v5839 = vpop.f32.mrb[0].mxu0
      %v5840 = vadd.f32 %v5737, %v5839
      %v5841 = vpop.f32.mrb[0].mxu0
      %5842 = vmatprep.mubr.f32.mxu0 0.0
      %5843 = vmatmul.mubr.f32.gmra.mrb[0].mxu0 %v5726
      %v5844 = vpop.f32.mrb[0].mxu0
      %v5845 = vadd.f32 %v5737, %v5844
      %v5846 = vpop.f32.mrb[0].mxu0
      %5847 = vmatprep.mubr.f32.mxu0 0.0
      %5848 = vmatmul.mubr.f32.gmra.mrb[0].mxu0 %v5727
      %v5849 = vpop.f32.mrb[0].mxu0
      %v5850 = vadd.f32 %v5737, %v5849
      %v5851 = vpop.f32.mrb[0].mxu0
      %5852 = vmatprep.mubr.f32.mxu0 0.0
      %5853 = vmatmul.mubr.f32.gmra.mrb[0].mxu0 %v5728
      %v5854 = vpop.f32.mrb[0].mxu0
      %v5855 = vadd.f32 %v5737, %v5854
      %v5856 = vpop.f32.mrb[0].mxu0
      %5857 = vmatprep.mubr.f32.mxu0 0.0
      %5858 = vmatmul.mubr.f32.gmra.mrb[0].mxu0 %v5729
      %v5859 = vpop.f32.mrb[0].mxu0
      %v5860 = vadd.f32 %v5737, %v5859
      %v5861 = vpop.f32.mrb[0].mxu0
      %5862 = vmatprep.mubr.f32.mxu0 0.0
      %5863 = vmatmul.mubr.f32.gmra.mrb[0].mxu0 %v5730
      %v5864 = vpop.f32.mrb[0].mxu0
      %v5865 = vadd.f32 %v5737, %v5864
      %v5866 = vpop.f32.mrb[0].mxu0
      %5867 = vmatprep.mubr.f32.mxu0 0.0
      %5868 = vmatmul.mubr.f32.gmra.mrb[0].mxu0 %v5731
      %v5869 = vpop.f32.mrb[0].mxu0
      %v5870 = vadd.f32 %v5737, %v5869
      %v5871 = vpop.f32.mrb[0].mxu0
      %5872 = vmatprep.mubr.f32.mxu0 0.0
      %5873 = vmatmul.mubr.f32.gmra.mrb[0].mxu0 %v5732
      %v5874 = vpop.f32.mrb[0].mxu0
      %v5875 = vadd.f32 %v5737, %v5874
      %v5876 = vpop.f32.mrb[0].mxu0
      %5877 = vmatprep.mubr.f32.mxu0 0.0
      %5878 = vmatmul.mubr.f32.gmra.mrb[0].mxu0 %v5733
      %v5879 = vpop.f32.mrb[0].mxu0
      %v5880 = vadd.f32 %v5737, %v5879
      %v5881 = vpop.f32.mrb[0].mxu0
      %5882 = vdwg.mxu0
      %5883 = vmax.xlane.f32.xlu0 %v5805
      %v5884 = vpop.xlane.xlu0 %5883
      %5885 = vmax.xlane.f32.xlu0 %v5810
      %v5886 = vpop.xlane.xlu0 %5885
      %5887 = vmax.xlane.f32.xlu0 %v5815
      %v5888 = vpop.xlane.xlu0 %5887
      %5889 = vmax.xlane.f32.xlu0 %v5820
      %v5890 = vpop.xlane.xlu0 %5889
      %5891 = vmax.xlane.f32.xlu0 %v5825
      %v5892 = vpop.xlane.xlu0 %5891
      %5893 = vmax.xlane.f32.xlu0 %v5830
      %v5894 = vpop.xlane.xlu0 %5893
      %5895 = vmax.xlane.f32.xlu0 %v5835
      %v5896 = vpop.xlane.xlu0 %5895
      %5897 = vmax.xlane.f32.xlu0 %v5840
      %v5898 = vpop.xlane.xlu0 %5897
      %5899 = vmax.xlane.f32.xlu0 %v5845
      %v5900 = vpop.xlane.xlu0 %5899
      %5901 = vmax.xlane.f32.xlu0 %v5850
      %v5902 = vpop.xlane.xlu0 %5901
      %5903 = vmax.xlane.f32.xlu0 %v5855
      %v5904 = vpop.xlane.xlu0 %5903
      %5905 = vmax.xlane.f32.xlu0 %v5860
      %v5906 = vpop.xlane.xlu0 %5905
      %5907 = vmax.xlane.f32.xlu0 %v5865
      %v5908 = vpop.xlane.xlu0 %5907
      %5909 = vmax.xlane.f32.xlu0 %v5870
      %v5910 = vpop.xlane.xlu0 %5909
      %5911 = vmax.xlane.f32.xlu0 %v5875
      %v5912 = vpop.xlane.xlu0 %5911
      %5913 = vmax.xlane.f32.xlu0 %v5880
      %v5914 = vpop.xlane.xlu0 %5913
      %v5915 = vsub.f32 %v5805, %v5884
      %v5916 = vsub.f32 %v5810, %v5886
      %v5917 = vsub.f32 %v5815, %v5888
      %v5918 = vsub.f32 %v5820, %v5890
      %v5919 = vsub.f32 %v5825, %v5892
      %v5920 = vsub.f32 %v5830, %v5894
      %v5921 = vsub.f32 %v5835, %v5896
      %v5922 = vsub.f32 %v5840, %v5898
      %v5923 = vsub.f32 %v5845, %v5900
      %v5924 = vsub.f32 %v5850, %v5902
      %v5925 = vsub.f32 %v5855, %v5904
      %v5926 = vsub.f32 %v5860, %v5906
      %v5927 = vsub.f32 %v5865, %v5908
      %v5928 = vsub.f32 %v5870, %v5910
      %v5929 = vsub.f32 %v5875, %v5912
      %v5930 = vsub.f32 %v5880, %v5914
      %v5931 = vmul.f32 %v5915, 1.442695
      %v5932 = vpow.pop %v5931
      %v5933 = vmul.f32 %v5916, 1.442695
      %v5934 = vpow.pop %v5933
      %v5935 = vmul.f32 %v5917, 1.442695
      %v5936 = vpow.pop %v5935
      %v5937 = vmul.f32 %v5918, 1.442695
      %v5938 = vpow.pop %v5937
      %v5939 = vmul.f32 %v5919, 1.442695
      %v5940 = vpow.pop %v5939
      %v5941 = vmul.f32 %v5920, 1.442695
      %v5942 = vpow.pop %v5941
      %v5943 = vmul.f32 %v5921, 1.442695
      %v5944 = vpow.pop %v5943
      %v5945 = vmul.f32 %v5922, 1.442695
      %v5946 = vpow.pop %v5945
      %v5947 = vmul.f32 %v5923, 1.442695
      %v5948 = vpow.pop %v5947
      %v5949 = vmul.f32 %v5924, 1.442695
      %v5950 = vpow.pop %v5949
      %v5951 = vmul.f32 %v5925, 1.442695
      %v5952 = vpow.pop %v5951
      %v5953 = vmul.f32 %v5926, 1.442695
      %v5954 = vpow.pop %v5953
      %v5955 = vmul.f32 %v5927, 1.442695
      %v5956 = vpow.pop %v5955
      %v5957 = vmul.f32 %v5928, 1.442695
      %v5958 = vpow.pop %v5957
      %v5959 = vmul.f32 %v5929, 1.442695
      %v5960 = vpow.pop %v5959
      %v5961 = vmul.f32 %v5930, 1.442695
      %v5962 = vpow.pop %v5961
      %5963 = vadd.xlane.f32.xlu0 %v5932
      %v5964 = vpop.xlane.xlu0 %5963
      %5965 = vadd.xlane.f32.xlu0 %v5934
      %v5966 = vpop.xlane.xlu0 %5965
      %5967 = vadd.xlane.f32.xlu0 %v5936
      %v5968 = vpop.xlane.xlu0 %5967
      %5969 = vadd.xlane.f32.xlu0 %v5938
      %v5970 = vpop.xlane.xlu0 %5969
      %5971 = vadd.xlane.f32.xlu0 %v5940
      %v5972 = vpop.xlane.xlu0 %5971
      %5973 = vadd.xlane.f32.xlu0 %v5942
      %v5974 = vpop.xlane.xlu0 %5973
      %5975 = vadd.xlane.f32.xlu0 %v5944
      %v5976 = vpop.xlane.xlu0 %5975
      %5977 = vadd.xlane.f32.xlu0 %v5946
      %v5978 = vpop.xlane.xlu0 %5977
      %5979 = vadd.xlane.f32.xlu0 %v5948
      %v5980 = vpop.xlane.xlu0 %5979
      %5981 = vadd.xlane.f32.xlu0 %v5950
      %v5982 = vpop.xlane.xlu0 %5981
      %5983 = vadd.xlane.f32.xlu0 %v5952
      %v5984 = vpop.xlane.xlu0 %5983
      %5985 = vadd.xlane.f32.xlu0 %v5954
      %v5986 = vpop.xlane.xlu0 %5985
      %5987 = vadd.xlane.f32.xlu0 %v5956
      %v5988 = vpop.xlane.xlu0 %5987
      %5989 = vadd.xlane.f32.xlu0 %v5958
      %v5990 = vpop.xlane.xlu0 %5989
      %5991 = vadd.xlane.f32.xlu0 %v5960
      %v5992 = vpop.xlane.xlu0 %5991
      %5993 = vadd.xlane.f32.xlu0 %v5962
      %v5994 = vpop.xlane.xlu0 %5993
      %v5995 = vrcp.pop %v5964
      %v5996 = vrcp.pop %v5966
      %v5997 = vrcp.pop %v5968
      %v5998 = vrcp.pop %v5970
      %v5999 = vrcp.pop %v5972
      %v6000 = vrcp.pop %v5974
      %v6001 = vrcp.pop %v5976
      %v6002 = vrcp.pop %v5978
      %v6003 = vrcp.pop %v5980
      %v6004 = vrcp.pop %v5982
      %v6005 = vrcp.pop %v5984
      %v6006 = vrcp.pop %v5986
      %v6007 = vrcp.pop %v5988
      %v6008 = vrcp.pop %v5990
      %v6009 = vrcp.pop %v5992
      %v6010 = vrcp.pop %v5994
      %v6011 = vmul.f32 %v5932, %v5995
      %v6012 = vmul.f32 %v5934, %v5996
      %v6013 = vmul.f32 %v5936, %v5997
      %v6014 = vmul.f32 %v5938, %v5998
      %v6015 = vmul.f32 %v5940, %v5999
      %v6016 = vmul.f32 %v5942, %v6000
      %v6017 = vmul.f32 %v5944, %v6001
      %v6018 = vmul.f32 %v5946, %v6002
      %v6019 = vmul.f32 %v5948, %v6003
      %v6020 = vmul.f32 %v5950, %v6004
      %v6021 = vmul.f32 %v5952, %v6005
      %v6022 = vmul.f32 %v5954, %v6006
      %v6023 = vmul.f32 %v5956, %v6007
      %v6024 = vmul.f32 %v5958, %v6008
      %v6025 = vmul.f32 %v5960, %v6009
      %v6026 = vmul.f32 %v5962, %v6010
      %6027 = vst [vmem:[%s217] sm:$0xff] %v6011
      %6028 = vst [vmem:[%s217 + $0x8] sm:$0xff] %v6012
      %6029 = vst [vmem:[%s217 + $0x10] sm:$0xff] %v6013
      %6030 = vst [vmem:[%s217 + $0x18] sm:$0xff] %v6014
      %6031 = vst [vmem:[%s217 + $0x20] sm:$0xff] %v6015
      %6032 = vst [vmem:[%s217 + $0x28] sm:$0xff] %v6016
      %6033 = vst [vmem:[%s217 + $0x30] sm:$0xff] %v6017
      %6034 = vst [vmem:[%s217 + $0x38] sm:$0xff] %v6018
      %6035 = vst [vmem:[%s217 + $0x40] sm:$0xff] %v6019
      %6036 = vst [vmem:[%s217 + $0x48] sm:$0xff] %v6020
      %6037 = vst [vmem:[%s217 + $0x50] sm:$0xff] %v6021
      %6038 = vst [vmem:[%s217 + $0x58] sm:$0xff] %v6022
      %6039 = vst [vmem:[%s217 + $0x60] sm:$0xff] %v6023
      %6040 = vst [vmem:[%s217 + $0x68] sm:$0xff] %v6024
      %6041 = vst [vmem:[%s217 + $0x70] sm:$0xff] %v6025
      %6042 = vst [vmem:[%s217 + $0x78] sm:$0xff] %v6026
      %p6043 = scmp.lt.s32.totalorder %s15, 3
      %s6044 = scalar_select %p6043, %s15, 3
      %s6045 = smul.addr %s6044, 16
      %s6046 = smul.addr %s6045, 8
      %s6047 = scalar_lea.vmem %s4, %s6046
      // Predicated region
      $region37: #{gnn_dgn_forward.1} parent=35 // pred_check
        %p6048 = pneg %p127
      $region38: #{gnn_dgn_forward.1} parent=35 // pred_check_branch
        %6050 = sbr.rel (%p6048) target = $region40
      $region39: #{gnn_dgn_forward.1} parent=35 // pred_region
        _
      $region40: #{gnn_dgn_forward.1} parent=35 // pred_fallthru
        _
    $region36: #{gnn_dgn_forward.1} parent=5 // pred_fallthru
      _
    %p6051 = scmp.le.s32.totalorder 2, %s10
    // Predicated region
    $region41: #{gnn_dgn_forward.1} parent=5 // pred_check
      %p6052 = pneg %p6051
    $region42: #{gnn_dgn_forward.1} parent=5 // pred_check_branch
      %6054 = sbr.rel (%p6052) target = $region44
    $region43: #{gnn_dgn_forward.1} parent=5 // pred_region
      %s6055 = ssub.s32 %s10, 2
      // Predicated region
      $region45: #{gnn_dgn_forward.1} parent=43 // pred_check
        %p6056 = pneg %p133
      $region46: #{gnn_dgn_forward.1} parent=43 // pred_check_branch
        %6058 = sbr.rel (%p6056) target = $region48
      $region47: #{gnn_dgn_forward.1} parent=43 // pred_region
        %p6059 = scmp.lt.s32.totalorder %s16, 3
        %s6060 = scalar_select %p6059, %s16, 3
        %s6061 = smul.addr %s6060, 16
        %s6062 = smul.addr %s6061, 8
        %s6063 = scalar_lea.vmem %s4, %s6062
      $region48: #{gnn_dgn_forward.1} parent=43 // pred_fallthru
        _
    $region44: #{gnn_dgn_forward.1} parent=5 // pred_fallthru
      _
  $region6: #{gnn_dgn_forward.1} parent=0 // loop_footer
    %s14 = sadd.s32 1, %s10
  $region7: #{gnn_dgn_forward.1} parent=0 // loop_footer_branch
    %9 = sbr.rel target = $region3
  $region8: #{gnn_dgn_forward.1} parent=0 // loop_exit
    _

</llo_original>
